<compile_context>
chip_gen: v7x
topology: tpu7x:2x2x1
jax: 0.10.0
libtpu: 0.0.40
codegen_flags: <defaults>
</compile_context>

<pallas_src>
import math

import jax
import jax.numpy as jnp
from jax.experimental import pallas as pl
from jax.experimental.pallas import tpu as pltpu

_VMEM_LIMIT = 32 * 1024 * 1024   # safe scoped limit on v5e/v6e/v7x


# ----------------------------- Pallas kernels ------------------------------ #

def maxpool_kernel(a_ref, b_ref, c_ref, d_ref, o_ref):
    # 2x2 max pool as elementwise max of the 4 sub-grids (lane-dense (TM,400)).
    o_ref[...] = jnp.maximum(jnp.maximum(a_ref[...], b_ref[...]),
                             jnp.maximum(c_ref[...], d_ref[...]))


def stage1_kernel(x_ref, mw_ref, cw_ref, cb_ref, o_ref):
    # Fused conv1 + MNN1 over the shared im2col tile.
    #   x:(TM,25) f32   mw:(10,25) f32
    #   cw:(25,128) f32 (real channels at lanes 10..29)   cb:(1,128) f32
    #   out:(TM,128) f32  lanes [0:10]=MNN1, [10:30]=conv1, rest = 0
    x = x_ref[...]
    out = jnp.dot(x, cw_ref[...],
                  preferred_element_type=jnp.float32) + cb_ref[...]      # (TM,128)
    lane = jax.lax.broadcasted_iota(jnp.int32, out.shape, 1)
    mw = mw_ref[...]
    # Max-plus unrolled over the 10 output channels: the live intermediate is a
    # single (TM,25) tile per channel (no (TM,10,25) broadcast), and each result
    # is placed into its lane with one VPU select (no cross-lane concatenate).
    for o in range(10):
        mp_o = jnp.max(x + mw[o:o + 1, :], axis=-1, keepdims=True)       # (TM,1)
        out = jnp.where(lane == o, mp_o, out)
    o_ref[...] = out


def stage2_kernel(mx_ref, mw_ref, cx_ref, cw_ref, cb_ref, o_ref):
    # Fused conv2 (bf16 operands, f32 accumulation) + MNN2 (max-plus, f32).
    #   mx:(TM,250) f32  mw:(5,250) f32  cx:(TM,500) bf16
    #   cw:(500,128) bf16 (real channels at lanes 5..14)  cb:(1,128) f32
    #   out:(TM,128) f32  lanes [0:5]=MNN2, [5:15]=conv2, rest = 0
    out = jnp.dot(cx_ref[...], cw_ref[...],
                  preferred_element_type=jnp.float32) + cb_ref[...]      # (TM,128)
    lane = jax.lax.broadcasted_iota(jnp.int32, out.shape, 1)
    mx = mx_ref[...]
    mw = mw_ref[...]
    for o in range(5):
        mp_o = jnp.max(mx + mw[o:o + 1, :], axis=-1, keepdims=True)      # (TM,1)
        out = jnp.where(lane == o, mp_o, out)
    o_ref[...] = out


def mlp_head_kernel(x_ref, w1_ref, b1_ref, w2_ref, b2_ref, o_ref):
    # fc1 (bf16 operands, f32 acc, hidden padded 100->128) -> ReLU
    # -> fc2 -> log_softmax (all softmax / elementwise math in f32).
    h = jnp.dot(x_ref[...], w1_ref[...],
                preferred_element_type=jnp.float32) + b1_ref[...]        # (TM,128)
    h = jnp.maximum(h, 0.0)
    logits = jnp.dot(h, w2_ref[...],
                     preferred_element_type=jnp.float32) + b2_ref[...]   # (TM,2)
    m = jnp.max(logits, axis=-1, keepdims=True)
    lse = m + jnp.log(jnp.sum(jnp.exp(logits - m), axis=-1, keepdims=True))
    o_ref[...] = logits - lse


# ------------------------------- row tiling --------------------------------- #

def _round_up(n, m):
    return (n + m - 1) // m * m


def _row_tiling(m, pref=256):
    """Pick (row_tile, padded_rows).

    Prefers >=2 grid steps (v7x has 2 TensorCores, axis marked "parallel") with
    an exact divisor tile; otherwise pads the row count with zero rows (padded
    output rows are sliced off by the wrapper)."""
    m8 = _round_up(m, 8)
    if m8 <= 256:
        return m8, m8                      # single small block
    start = min(pref, m8 // 2) // 8 * 8
    for tm in range(start, 127, -8):
        if m8 % tm == 0:
            return tm, m8                  # exact tile, no padded rows
    tm = pref if m8 >= 2 * pref else 128
    return tm, _round_up(m8, tm)           # zero-row padding fallback


def _pad_rows(x, m_pad):
    m = x.shape[0]
    if m == m_pad:
        return x
    return jnp.pad(x, ((0, m_pad - m),) + ((0, 0),) * (x.ndim - 1))


# ------------------------------ Pallas wrappers ----------------------------- #

def max_pool_2x2(x):
    # x: (B, 1, 40, 40) -> (B, 20, 20, 1) NHWC (C=1).  Strided slices are tiny
    # layout glue; the max runs in a row-tiled lane-dense (TM, 400) kernel.
    B, _, H, W = x.shape
    hw = (H // 2) * (W // 2)
    a = x[:, :, 0::2, 0::2].reshape(B, hw)
    b = x[:, :, 0::2, 1::2].reshape(B, hw)
    c = x[:, :, 1::2, 0::2].reshape(B, hw)
    d = x[:, :, 1::2, 1::2].reshape(B, hw)
    TM, B_pad = _row_tiling(B)
    a, b, c, d = (_pad_rows(t, B_pad) for t in (a, b, c, d))
    pooled = pl.pallas_call(
        maxpool_kernel,
        grid=(B_pad // TM,),
        in_specs=[pl.BlockSpec((TM, hw), lambda i: (i, 0))] * 4,
        out_specs=pl.BlockSpec((TM, hw), lambda i: (i, 0)),
        out_shape=jax.ShapeDtypeStruct((B_pad, hw), x.dtype),
        compiler_params=pltpu.CompilerParams(
            dimension_semantics=("parallel",),
            vmem_limit_bytes=_VMEM_LIMIT),
    )(a, b, c, d)
    return pooled[:B].reshape(B, H // 2, W // 2, 1)


def stage1(patches, mnn1_w, conv1_w, conv1_b):
    # patches: (B*256, 25) f32  ->  (B*256, 128) f32
    M, K = patches.shape
    TM, M_pad = _row_tiling(M)
    patches = _pad_rows(patches, M_pad)
    out = pl.pallas_call(
        stage1_kernel,
        grid=(M_pad // TM,),
        in_specs=[pl.BlockSpec((TM, K), lambda i: (i, 0)),
                  pl.BlockSpec(mnn1_w.shape, lambda i: (0, 0)),
                  pl.BlockSpec(conv1_w.shape, lambda i: (0, 0)),
                  pl.BlockSpec(conv1_b.shape, lambda i: (0, 0))],
        out_specs=pl.BlockSpec((TM, 128), lambda i: (i, 0)),
        out_shape=jax.ShapeDtypeStruct((M_pad, 128), jnp.float32),
        compiler_params=pltpu.CompilerParams(
            dimension_semantics=("parallel",),
            vmem_limit_bytes=_VMEM_LIMIT),
    )(patches, mnn1_w, conv1_w, conv1_b)
    return out[:M]


def stage2(m_patches, mnn2_w, c_patches, conv2_w, conv2_b):
    # m_patches: (B*144, 250) f32, c_patches: (B*144, 500) bf16 -> (B*144, 128)
    M, Km = m_patches.shape
    Kc = c_patches.shape[1]
    TM, M_pad = _row_tiling(M)
    m_patches = _pad_rows(m_patches, M_pad)
    c_patches = _pad_rows(c_patches, M_pad)
    out = pl.pallas_call(
        stage2_kernel,
        grid=(M_pad // TM,),
        in_specs=[pl.BlockSpec((TM, Km), lambda i: (i, 0)),
                  pl.BlockSpec(mnn2_w.shape, lambda i: (0, 0)),
                  pl.BlockSpec((TM, Kc), lambda i: (i, 0)),
                  pl.BlockSpec(conv2_w.shape, lambda i: (0, 0)),
                  pl.BlockSpec(conv2_b.shape, lambda i: (0, 0))],
        out_specs=pl.BlockSpec((TM, 128), lambda i: (i, 0)),
        out_shape=jax.ShapeDtypeStruct((M_pad, 128), jnp.float32),
        compiler_params=pltpu.CompilerParams(
            dimension_semantics=("parallel",),
            vmem_limit_bytes=_VMEM_LIMIT),
    )(m_patches, mnn2_w, c_patches, conv2_w, conv2_b)
    return out[:M]


def mlp_head(feat, w1, b1, w2, b2):
    # feat: (B, 2160) bf16 -> (B, 2) log-probabilities, row-tiled.
    B, K = feat.shape
    TM, B_pad = _row_tiling(B)
    feat = _pad_rows(feat, B_pad)
    out = pl.pallas_call(
        mlp_head_kernel,
        grid=(B_pad // TM,),
        in_specs=[pl.BlockSpec((TM, K), lambda i: (i, 0)),
                  pl.BlockSpec(w1.shape, lambda i: (0, 0)),
                  pl.BlockSpec(b1.shape, lambda i: (0, 0)),
                  pl.BlockSpec(w2.shape, lambda i: (0, 0)),
                  pl.BlockSpec(b2.shape, lambda i: (0, 0))],
        out_specs=pl.BlockSpec((TM, w2.shape[1]), lambda i: (i, 0)),
        out_shape=jax.ShapeDtypeStruct((B_pad, w2.shape[1]), jnp.float32),
        compiler_params=pltpu.CompilerParams(
            dimension_semantics=("parallel",),
            vmem_limit_bytes=_VMEM_LIMIT),
    )(feat, w1, b1, w2, b2)
    return out[:B]


# --------------------------------- glue ------------------------------------- #

def im2col_nhwc(x, k):
    # x: (B, H, W, C) -> (B, Ho*Wo, k*k*C), K order = (kh, kw, c).
    B, H, W, C = x.shape
    Ho, Wo = H - k + 1, W - k + 1
    cols = []
    for kh in range(k):
        for kw in range(k):
            cols.append(x[:, kh:kh + Ho, kw:kw + Wo, :])      # (B,Ho,Wo,C)
    p = jnp.stack(cols, axis=3)                               # (B,Ho,Wo,k*k,C)
    return p.reshape(B, Ho * Wo, k * k * C)


def net_forward(x, w):
    B = x.shape[0]
    pooled = max_pool_2x2(x)                                    # (B,20,20,1)

    # ---- stage 1: shared im2col, fused conv1 + MNN1 ----
    p0 = im2col_nhwc(pooled, 5).reshape(B * 256, 25)            # f32 (feeds max-plus)
    out1 = stage1(p0, w["mnn1_w"], w["conv1_w"], w["conv1_b"])  # (B*256,128)
    m1 = out1[:, 0:10].reshape(B, 16, 16, 10)                   # MNN1  (NHWC rows)
    c1 = out1[:, 10:30].reshape(B, 16, 16, 20)                  # conv1 (NHWC rows)

    # ---- stage 2: fused conv2 + MNN2 ----
    # TODO(synk): im2col is still XLA-side glue (HBM round-trip); fusing patch
    # construction / stage1->stage2 into a per-batch-tile Pallas kernel is the
    # remaining large-batch win.
    mp2 = im2col_nhwc(m1, 5).reshape(B * 144, 250)              # f32 (max-plus path)
    cp2 = im2col_nhwc(c1, 5).reshape(B * 144, 500).astype(jnp.bfloat16)
    out2 = stage2(mp2, w["mnn2_w"], cp2, w["conv2_w"], w["conv2_b"])  # (B*144,128)

    # cat([morph, conv], channel) + NCHW flatten order are folded into the fc1
    # weight permutation at init time -> no activation transposes here.
    feat = out2[:, 0:15].reshape(B, 2160).astype(jnp.bfloat16)
    return mlp_head(feat, w["fc1_w"], w["fc1_b"], w["fc2_w"], w["fc2_b"])


# ------------------------------ parameters ---------------------------------- #

def init_params(key):
    ks = jax.random.split(key, 10)

    def uni(k, shape, fan_in):
        bound = 1.0 / math.sqrt(fan_in)
        return jax.random.uniform(k, shape, jnp.float32, -bound, bound)

    return {
        "conv1_w": uni(ks[0], (20, 1, 5, 5), 25),
        "conv1_b": uni(ks[1], (20,), 25),
        "conv2_w": uni(ks[2], (10, 20, 5, 5), 500),
        "conv2_b": uni(ks[3], (10,), 500),
        "mnn1_w":  uni(ks[4], (10, 1, 5, 5), 25),
        "mnn2_w":  uni(ks[5], (5, 10, 5, 5), 250),
        "fc1_w":   uni(ks[6], (100, 2160), 2160),
        "fc1_b":   uni(ks[7], (100,), 2160),
        "fc2_w":   uni(ks[8], (2, 100), 100),
        "fc2_b":   uni(ks[9], (2,), 100),
    }


def prepare_params(p):
    # One-time, host-side weight repacking: K-order permutation for NHWC
    # im2col, NCHW-flatten permutation folded into fc1, and output-channel
    # padding placed directly at the final lane offsets (conv1 at lanes 10..29,
    # conv2 at lanes 5..14) so the kernels never concatenate/shift lanes.
    f32, bf16 = jnp.float32, jnp.bfloat16

    # stage 1 (C=1, so (c,kh,kw) == (kh,kw,c))
    mnn1_w = p["mnn1_w"].reshape(10, 25).astype(f32)                      # (10,25)
    conv1_w = jnp.pad(p["conv1_w"].reshape(20, 25).T,
                      ((0, 0), (10, 98))).astype(f32)                     # (25,128)
    conv1_b = jnp.pad(p["conv1_b"], (10, 98)).reshape(1, 128).astype(f32)

    # stage 2: patch K order is (kh, kw, c)
    mnn2_w = jnp.transpose(p["mnn2_w"], (0, 2, 3, 1)).reshape(5, 250).astype(f32)
    conv2_w = jnp.transpose(p["conv2_w"], (2, 3, 1, 0)).reshape(500, 10)
    conv2_w = jnp.pad(conv2_w, ((0, 0), (5, 113))).astype(bf16)           # (500,128)
    conv2_b = jnp.pad(p["conv2_b"], (5, 113)).reshape(1, 128).astype(f32)

    # fc head: fold PyTorch NCHW flatten (c*144+s) -> our (s*15+c) into fc1.
    s = jnp.arange(144)
    c = jnp.arange(15)
    perm = (c[None, :] * 144 + s[:, None]).reshape(-1)   # perm[s*15+c] = c*144+s
    fc1_w = p["fc1_w"][:, perm].T                                          # (2160,100)
    fc1_w = jnp.pad(fc1_w, ((0, 0), (0, 28))).astype(bf16)                 # (2160,128)
    fc1_b = jnp.pad(p["fc1_b"], (0, 28)).reshape(1, 128).astype(f32)
    fc2_w = jnp.pad(p["fc2_w"].T, ((0, 28), (0, 0))).astype(f32)           # (128,2)
    fc2_b = p["fc2_b"].reshape(1, 2).astype(f32)

    return {
        "mnn1_w": mnn1_w, "conv1_w": conv1_w, "conv1_b": conv1_b,
        "mnn2_w": mnn2_w, "conv2_w": conv2_w, "conv2_b": conv2_b,
        "fc1_w": fc1_w, "fc1_b": fc1_b, "fc2_w": fc2_w, "fc2_b": fc2_b,
    }


if __name__ == "__main__":
    key = jax.random.PRNGKey(0)
    pkey, xkey = jax.random.split(key)
    params = init_params(pkey)
    prepped = prepare_params(params)

    # input consistent with fc1 = 2160:  (B, 1, 40, 40)
    x = jax.random.normal(xkey, (2, 1, 40, 40), jnp.float32)

    out = jax.jit(net_forward)(x, prepped)
    out = jax.block_until_ready(out)

    assert out.shape == (2, 2)
    assert bool(jnp.all(jnp.isfinite(out)))
    # rows of log_softmax should exponentiate-sum to ~1
    assert bool(jnp.allclose(jnp.sum(jnp.exp(out), axis=1), 1.0, atol=1e-3))
    print("KERNEL_OK")
</pallas_src>

<mosaic_0001>
module attributes {stable_mosaic.version = 11 : i64} {
  func.func @maxpool_kernel(%arg0: i32, %arg1: memref<8x400xf32, #tpu.memory_space<vmem>>, %arg2: memref<8x400xf32, #tpu.memory_space<vmem>>, %arg3: memref<8x400xf32, #tpu.memory_space<vmem>>, %arg4: memref<8x400xf32, #tpu.memory_space<vmem>>, %arg5: memref<8x400xf32, #tpu.memory_space<vmem>>) attributes {dimension_semantics = [#tpu.dimension_semantics<parallel>], iteration_bounds = array<i64: 1>, scalar_prefetch = 0 : i64, scratch_operands = 0 : i64, tpu.core_type = #tpu.core_type<tc>, window_params = [{transform_indices = @transform_0, window_bounds = array<i64: 8, 400>}, {transform_indices = @transform_1, window_bounds = array<i64: 8, 400>}, {transform_indices = @transform_2, window_bounds = array<i64: 8, 400>}, {transform_indices = @transform_3, window_bounds = array<i64: 8, 400>}, {transform_indices = @transform_4, window_bounds = array<i64: 8, 400>}]} {
    %c0 = arith.constant 0 : index
    %c0_0 = arith.constant 0 : index
    %0 = vector.load %arg1[%c0, %c0_0] : memref<8x400xf32, #tpu.memory_space<vmem>>, vector<8x400xf32>
    %c0_1 = arith.constant 0 : index
    %c0_2 = arith.constant 0 : index
    %1 = vector.load %arg2[%c0_1, %c0_2] : memref<8x400xf32, #tpu.memory_space<vmem>>, vector<8x400xf32>
    %2 = arith.maximumf %0, %1 : vector<8x400xf32>
    %c0_3 = arith.constant 0 : index
    %c0_4 = arith.constant 0 : index
    %3 = vector.load %arg3[%c0_3, %c0_4] : memref<8x400xf32, #tpu.memory_space<vmem>>, vector<8x400xf32>
    %c0_5 = arith.constant 0 : index
    %c0_6 = arith.constant 0 : index
    %4 = vector.load %arg4[%c0_5, %c0_6] : memref<8x400xf32, #tpu.memory_space<vmem>>, vector<8x400xf32>
    %5 = arith.maximumf %3, %4 : vector<8x400xf32>
    %6 = arith.maximumf %2, %5 : vector<8x400xf32>
    %c0_7 = arith.constant 0 : index
    %c0_8 = arith.constant 0 : index
    %7 = vector.load %arg5[%c0_7, %c0_8] : memref<8x400xf32, #tpu.memory_space<vmem>>, vector<8x400xf32>
    tpu.vector_store %arg5[%c0_7, %c0_8], %6 {strides = array<i32>} : memref<8x400xf32, #tpu.memory_space<vmem>>, vector<8x400xf32>,
    return
  }
  func.func @transform_0(%arg0: i32) -> (i32, i32) {
    %c0_i32 = arith.constant 0 : i32
    %c0_i32_0 = arith.constant 0 : i32
    return %arg0, %c0_i32 : i32, i32
  }
  func.func @transform_1(%arg0: i32) -> (i32, i32) {
    %c0_i32 = arith.constant 0 : i32
    %c0_i32_0 = arith.constant 0 : i32
    return %arg0, %c0_i32 : i32, i32
  }
  func.func @transform_2(%arg0: i32) -> (i32, i32) {
    %c0_i32 = arith.constant 0 : i32
    %c0_i32_0 = arith.constant 0 : i32
    return %arg0, %c0_i32 : i32, i32
  }
  func.func @transform_3(%arg0: i32) -> (i32, i32) {
    %c0_i32 = arith.constant 0 : i32
    %c0_i32_0 = arith.constant 0 : i32
    return %arg0, %c0_i32 : i32, i32
  }
  func.func @transform_4(%arg0: i32) -> (i32, i32) {
    %c0_i32 = arith.constant 0 : i32
    %c0_i32_0 = arith.constant 0 : i32
    return %arg0, %c0_i32 : i32, i32
  }
}

module attributes {stable_mosaic.version = 11 : i64} {
  func.func @stage1_kernel(%arg0: i32, %arg1: memref<256x25xf32, #tpu.memory_space<vmem>>, %arg2: memref<10x25xf32, #tpu.memory_space<vmem>>, %arg3: memref<25x128xf32, #tpu.memory_space<vmem>>, %arg4: memref<1x128xf32, #tpu.memory_space<vmem>>, %arg5: memref<256x128xf32, #tpu.memory_space<vmem>>) attributes {dimension_semantics = [#tpu.dimension_semantics<parallel>], iteration_bounds = array<i64: 2>, scalar_prefetch = 0 : i64, scratch_operands = 0 : i64, tpu.core_type = #tpu.core_type<tc>, window_params = [{transform_indices = @transform_0, window_bounds = array<i64: 256, 25>}, {pipeline_mode = #tpu.pipeline_mode<synchronous>, transform_indices = @transform_1, window_bounds = array<i64: 10, 25>}, {pipeline_mode = #tpu.pipeline_mode<synchronous>, transform_indices = @transform_2, window_bounds = array<i64: 25, 128>}, {pipeline_mode = #tpu.pipeline_mode<synchronous>, transform_indices = @transform_3, window_bounds = array<i64: 1, 128>}, {transform_indices = @transform_4, window_bounds = array<i64: 256, 128>}]} {
    %c0 = arith.constant 0 : index
    %c0_0 = arith.constant 0 : index
    %0 = vector.load %arg1[%c0, %c0_0] : memref<256x25xf32, #tpu.memory_space<vmem>>, vector<256x25xf32>
    %c0_1 = arith.constant 0 : index
    %c0_2 = arith.constant 0 : index
    %1 = vector.load %arg3[%c0_1, %c0_2] : memref<25x128xf32, #tpu.memory_space<vmem>>, vector<25x128xf32>
    %cst = arith.constant dense<0.000000e+00> : vector<256x128xf32>
    %2 = tpu.matmul %0, %1, %cst {dimension_numbers = #tpu.dot_dimension_numbers<[1], [0], [0], [1], [0, 0, 1, 1], [], []>} : vector<256x25xf32>, vector<25x128xf32>, vector<256x128xf32> -> vector<256x128xf32>
    %c0_3 = arith.constant 0 : index
    %c0_4 = arith.constant 0 : index
    %3 = vector.load %arg4[%c0_3, %c0_4] : memref<1x128xf32, #tpu.memory_space<vmem>>, vector<1x128xf32>
    %4 = vector.broadcast %3 : vector<1x128xf32> to vector<256x128xf32>
    %5 = arith.addf %2, %4 : vector<256x128xf32>
    %6 = tpu.iota {dimensions = array<i32: 1>} : vector<256x128xi32>
    %c0_5 = arith.constant 0 : index
    %c0_6 = arith.constant 0 : index
    %7 = vector.load %arg2[%c0_5, %c0_6] : memref<10x25xf32, #tpu.memory_space<vmem>>, vector<10x25xf32>
    %8 = vector.extract_strided_slice %7 {offsets = [0, 0], sizes = [1, 25], strides = [1, 1]} : vector<10x25xf32> to vector<1x25xf32>
    %9 = vector.broadcast %8 : vector<1x25xf32> to vector<256x25xf32>
    %10 = arith.addf %0, %9 : vector<256x25xf32>
    %cst_7 = arith.constant dense<0xFF800000> : vector<256xf32>
    %11 = vector.multi_reduction <maximumf>, %10, %cst_7 [1] : vector<256x25xf32> to vector<256xf32>
    %12 = vector.shape_cast %11 : vector<256xf32> to vector<256x1xf32>
    %c0_i32 = arith.constant 0 : i32
    %13 = vector.broadcast %c0_i32 : i32 to vector<256x128xi32>
    %14 = arith.cmpi eq, %6, %13 : vector<256x128xi32>
    %15 = vector.shape_cast %12 : vector<256x1xf32> to vector<256x1xf32>
    %16 = vector.broadcast %15 : vector<256x1xf32> to vector<256x128xf32>
    %17 = arith.select %14, %16, %5 : vector<256x128xi1>, vector<256x128xf32>
    %18 = vector.extract_strided_slice %7 {offsets = [1, 0], sizes = [1, 25], strides = [1, 1]} : vector<10x25xf32> to vector<1x25xf32>
    %19 = vector.broadcast %18 : vector<1x25xf32> to vector<256x25xf32>
    %20 = arith.addf %0, %19 : vector<256x25xf32>
    %cst_8 = arith.constant dense<0xFF800000> : vector<256xf32>
    %21 = vector.multi_reduction <maximumf>, %20, %cst_8 [1] : vector<256x25xf32> to vector<256xf32>
    %22 = vector.shape_cast %21 : vector<256xf32> to vector<256x1xf32>
    %c1_i32 = arith.constant 1 : i32
    %23 = vector.broadcast %c1_i32 : i32 to vector<256x128xi32>
    %24 = arith.cmpi eq, %6, %23 : vector<256x128xi32>
    %25 = vector.shape_cast %22 : vector<256x1xf32> to vector<256x1xf32>
    %26 = vector.broadcast %25 : vector<256x1xf32> to vector<256x128xf32>
    %27 = arith.select %24, %26, %17 : vector<256x128xi1>, vector<256x128xf32>
    %28 = vector.extract_strided_slice %7 {offsets = [2, 0], sizes = [1, 25], strides = [1, 1]} : vector<10x25xf32> to vector<1x25xf32>
    %29 = vector.broadcast %28 : vector<1x25xf32> to vector<256x25xf32>
    %30 = arith.addf %0, %29 : vector<256x25xf32>
    %cst_9 = arith.constant dense<0xFF800000> : vector<256xf32>
    %31 = vector.multi_reduction <maximumf>, %30, %cst_9 [1] : vector<256x25xf32> to vector<256xf32>
    %32 = vector.shape_cast %31 : vector<256xf32> to vector<256x1xf32>
    %c2_i32 = arith.constant 2 : i32
    %33 = vector.broadcast %c2_i32 : i32 to vector<256x128xi32>
    %34 = arith.cmpi eq, %6, %33 : vector<256x128xi32>
    %35 = vector.shape_cast %32 : vector<256x1xf32> to vector<256x1xf32>
    %36 = vector.broadcast %35 : vector<256x1xf32> to vector<256x128xf32>
    %37 = arith.select %34, %36, %27 : vector<256x128xi1>, vector<256x128xf32>
    %38 = vector.extract_strided_slice %7 {offsets = [3, 0], sizes = [1, 25], strides = [1, 1]} : vector<10x25xf32> to vector<1x25xf32>
    %39 = vector.broadcast %38 : vector<1x25xf32> to vector<256x25xf32>
    %40 = arith.addf %0, %39 : vector<256x25xf32>
    %cst_10 = arith.constant dense<0xFF800000> : vector<256xf32>
    %41 = vector.multi_reduction <maximumf>, %40, %cst_10 [1] : vector<256x25xf32> to vector<256xf32>
    %42 = vector.shape_cast %41 : vector<256xf32> to vector<256x1xf32>
    %c3_i32 = arith.constant 3 : i32
    %43 = vector.broadcast %c3_i32 : i32 to vector<256x128xi32>
    %44 = arith.cmpi eq, %6, %43 : vector<256x128xi32>
    %45 = vector.shape_cast %42 : vector<256x1xf32> to vector<256x1xf32>
    %46 = vector.broadcast %45 : vector<256x1xf32> to vector<256x128xf32>
    %47 = arith.select %44, %46, %37 : vector<256x128xi1>, vector<256x128xf32>
    %48 = vector.extract_strided_slice %7 {offsets = [4, 0], sizes = [1, 25], strides = [1, 1]} : vector<10x25xf32> to vector<1x25xf32>
    %49 = vector.broadcast %48 : vector<1x25xf32> to vector<256x25xf32>
    %50 = arith.addf %0, %49 : vector<256x25xf32>
    %cst_11 = arith.constant dense<0xFF800000> : vector<256xf32>
    %51 = vector.multi_reduction <maximumf>, %50, %cst_11 [1] : vector<256x25xf32> to vector<256xf32>
    %52 = vector.shape_cast %51 : vector<256xf32> to vector<256x1xf32>
    %c4_i32 = arith.constant 4 : i32
    %53 = vector.broadcast %c4_i32 : i32 to vector<256x128xi32>
    %54 = arith.cmpi eq, %6, %53 : vector<256x128xi32>
    %55 = vector.shape_cast %52 : vector<256x1xf32> to vector<256x1xf32>
    %56 = vector.broadcast %55 : vector<256x1xf32> to vector<256x128xf32>
    %57 = arith.select %54, %56, %47 : vector<256x128xi1>, vector<256x128xf32>
    %58 = vector.extract_strided_slice %7 {offsets = [5, 0], sizes = [1, 25], strides = [1, 1]} : vector<10x25xf32> to vector<1x25xf32>
    %59 = vector.broadcast %58 : vector<1x25xf32> to vector<256x25xf32>
    %60 = arith.addf %0, %59 : vector<256x25xf32>
    %cst_12 = arith.constant dense<0xFF800000> : vector<256xf32>
    %61 = vector.multi_reduction <maximumf>, %60, %cst_12 [1] : vector<256x25xf32> to vector<256xf32>
    %62 = vector.shape_cast %61 : vector<256xf32> to vector<256x1xf32>
    %c5_i32 = arith.constant 5 : i32
    %63 = vector.broadcast %c5_i32 : i32 to vector<256x128xi32>
    %64 = arith.cmpi eq, %6, %63 : vector<256x128xi32>
    %65 = vector.shape_cast %62 : vector<256x1xf32> to vector<256x1xf32>
    %66 = vector.broadcast %65 : vector<256x1xf32> to vector<256x128xf32>
    %67 = arith.select %64, %66, %57 : vector<256x128xi1>, vector<256x128xf32>
    %68 = vector.extract_strided_slice %7 {offsets = [6, 0], sizes = [1, 25], strides = [1, 1]} : vector<10x25xf32> to vector<1x25xf32>
    %69 = vector.broadcast %68 : vector<1x25xf32> to vector<256x25xf32>
    %70 = arith.addf %0, %69 : vector<256x25xf32>
    %cst_13 = arith.constant dense<0xFF800000> : vector<256xf32>
    %71 = vector.multi_reduction <maximumf>, %70, %cst_13 [1] : vector<256x25xf32> to vector<256xf32>
    %72 = vector.shape_cast %71 : vector<256xf32> to vector<256x1xf32>
    %c6_i32 = arith.constant 6 : i32
    %73 = vector.broadcast %c6_i32 : i32 to vector<256x128xi32>
    %74 = arith.cmpi eq, %6, %73 : vector<256x128xi32>
    %75 = vector.shape_cast %72 : vector<256x1xf32> to vector<256x1xf32>
    %76 = vector.broadcast %75 : vector<256x1xf32> to vector<256x128xf32>
    %77 = arith.select %74, %76, %67 : vector<256x128xi1>, vector<256x128xf32>
    %78 = vector.extract_strided_slice %7 {offsets = [7, 0], sizes = [1, 25], strides = [1, 1]} : vector<10x25xf32> to vector<1x25xf32>
    %79 = vector.broadcast %78 : vector<1x25xf32> to vector<256x25xf32>
    %80 = arith.addf %0, %79 : vector<256x25xf32>
    %cst_14 = arith.constant dense<0xFF800000> : vector<256xf32>
    %81 = vector.multi_reduction <maximumf>, %80, %cst_14 [1] : vector<256x25xf32> to vector<256xf32>
    %82 = vector.shape_cast %81 : vector<256xf32> to vector<256x1xf32>
    %c7_i32 = arith.constant 7 : i32
    %83 = vector.broadcast %c7_i32 : i32 to vector<256x128xi32>
    %84 = arith.cmpi eq, %6, %83 : vector<256x128xi32>
    %85 = vector.shape_cast %82 : vector<256x1xf32> to vector<256x1xf32>
    %86 = vector.broadcast %85 : vector<256x1xf32> to vector<256x128xf32>
    %87 = arith.select %84, %86, %77 : vector<256x128xi1>, vector<256x128xf32>
    %88 = vector.extract_strided_slice %7 {offsets = [8, 0], sizes = [1, 25], strides = [1, 1]} : vector<10x25xf32> to vector<1x25xf32>
    %89 = vector.broadcast %88 : vector<1x25xf32> to vector<256x25xf32>
    %90 = arith.addf %0, %89 : vector<256x25xf32>
    %cst_15 = arith.constant dense<0xFF800000> : vector<256xf32>
    %91 = vector.multi_reduction <maximumf>, %90, %cst_15 [1] : vector<256x25xf32> to vector<256xf32>
    %92 = vector.shape_cast %91 : vector<256xf32> to vector<256x1xf32>
    %c8_i32 = arith.constant 8 : i32
    %93 = vector.broadcast %c8_i32 : i32 to vector<256x128xi32>
    %94 = arith.cmpi eq, %6, %93 : vector<256x128xi32>
    %95 = vector.shape_cast %92 : vector<256x1xf32> to vector<256x1xf32>
    %96 = vector.broadcast %95 : vector<256x1xf32> to vector<256x128xf32>
    %97 = arith.select %94, %96, %87 : vector<256x128xi1>, vector<256x128xf32>
    %98 = vector.extract_strided_slice %7 {offsets = [9, 0], sizes = [1, 25], strides = [1, 1]} : vector<10x25xf32> to vector<1x25xf32>
    %99 = vector.broadcast %98 : vector<1x25xf32> to vector<256x25xf32>
    %100 = arith.addf %0, %99 : vector<256x25xf32>
    %cst_16 = arith.constant dense<0xFF800000> : vector<256xf32>
    %101 = vector.multi_reduction <maximumf>, %100, %cst_16 [1] : vector<256x25xf32> to vector<256xf32>
    %102 = vector.shape_cast %101 : vector<256xf32> to vector<256x1xf32>
    %c9_i32 = arith.constant 9 : i32
    %103 = vector.broadcast %c9_i32 : i32 to vector<256x128xi32>
    %104 = arith.cmpi eq, %6, %103 : vector<256x128xi32>
    %105 = vector.shape_cast %102 : vector<256x1xf32> to vector<256x1xf32>
    %106 = vector.broadcast %105 : vector<256x1xf32> to vector<256x128xf32>
    %107 = arith.select %104, %106, %97 : vector<256x128xi1>, vector<256x128xf32>
    %c0_17 = arith.constant 0 : index
    %c0_18 = arith.constant 0 : index
    %108 = vector.load %arg5[%c0_17, %c0_18] : memref<256x128xf32, #tpu.memory_space<vmem>>, vector<256x128xf32>
    tpu.vector_store %arg5[%c0_17, %c0_18], %107 {strides = array<i32>} : memref<256x128xf32, #tpu.memory_space<vmem>>, vector<256x128xf32>,
    return
  }
  func.func @transform_0(%arg0: i32) -> (i32, i32) {
    %c0_i32 = arith.constant 0 : i32
    %c0_i32_0 = arith.constant 0 : i32
    return %arg0, %c0_i32 : i32, i32
  }
  func.func @transform_1(%arg0: i32) -> (i32, i32) {
    %c0_i32 = arith.constant 0 : i32
    %c0_i32_0 = arith.constant 0 : i32
    %c0_i32_1 = arith.constant 0 : i32
    return %c0_i32, %c0_i32_0 : i32, i32
  }
  func.func @transform_2(%arg0: i32) -> (i32, i32) {
    %c0_i32 = arith.constant 0 : i32
    %c0_i32_0 = arith.constant 0 : i32
    %c0_i32_1 = arith.constant 0 : i32
    return %c0_i32, %c0_i32_0 : i32, i32
  }
  func.func @transform_3(%arg0: i32) -> (i32, i32) {
    %c0_i32 = arith.constant 0 : i32
    %c0_i32_0 = arith.constant 0 : i32
    %c0_i32_1 = arith.constant 0 : i32
    return %c0_i32, %c0_i32_0 : i32, i32
  }
  func.func @transform_4(%arg0: i32) -> (i32, i32) {
    %c0_i32 = arith.constant 0 : i32
    %c0_i32_0 = arith.constant 0 : i32
    return %arg0, %c0_i32 : i32, i32
  }
}

module attributes {stable_mosaic.version = 11 : i64} {
  func.func @stage2_kernel(%arg0: i32, %arg1: memref<144x250xf32, #tpu.memory_space<vmem>>, %arg2: memref<5x250xf32, #tpu.memory_space<vmem>>, %arg3: memref<144x500xbf16, #tpu.memory_space<vmem>>, %arg4: memref<500x128xbf16, #tpu.memory_space<vmem>>, %arg5: memref<1x128xf32, #tpu.memory_space<vmem>>, %arg6: memref<144x128xf32, #tpu.memory_space<vmem>>) attributes {dimension_semantics = [#tpu.dimension_semantics<parallel>], iteration_bounds = array<i64: 2>, scalar_prefetch = 0 : i64, scratch_operands = 0 : i64, tpu.core_type = #tpu.core_type<tc>, window_params = [{transform_indices = @transform_0, window_bounds = array<i64: 144, 250>}, {pipeline_mode = #tpu.pipeline_mode<synchronous>, transform_indices = @transform_1, window_bounds = array<i64: 5, 250>}, {transform_indices = @transform_2, window_bounds = array<i64: 144, 500>}, {pipeline_mode = #tpu.pipeline_mode<synchronous>, transform_indices = @transform_3, window_bounds = array<i64: 500, 128>}, {pipeline_mode = #tpu.pipeline_mode<synchronous>, transform_indices = @transform_4, window_bounds = array<i64: 1, 128>}, {transform_indices = @transform_5, window_bounds = array<i64: 144, 128>}]} {
    %c0 = arith.constant 0 : index
    %c0_0 = arith.constant 0 : index
    %0 = vector.load %arg3[%c0, %c0_0] : memref<144x500xbf16, #tpu.memory_space<vmem>>, vector<144x500xbf16>
    %c0_1 = arith.constant 0 : index
    %c0_2 = arith.constant 0 : index
    %1 = vector.load %arg4[%c0_1, %c0_2] : memref<500x128xbf16, #tpu.memory_space<vmem>>, vector<500x128xbf16>
    %cst = arith.constant dense<0.000000e+00> : vector<144x128xf32>
    %2 = tpu.matmul %0, %1, %cst {dimension_numbers = #tpu.dot_dimension_numbers<[1], [0], [0], [1], [0, 0, 1, 1], [], []>} : vector<144x500xbf16>, vector<500x128xbf16>, vector<144x128xf32> -> vector<144x128xf32>
    %c0_3 = arith.constant 0 : index
    %c0_4 = arith.constant 0 : index
    %3 = vector.load %arg5[%c0_3, %c0_4] : memref<1x128xf32, #tpu.memory_space<vmem>>, vector<1x128xf32>
    %4 = vector.broadcast %3 : vector<1x128xf32> to vector<144x128xf32>
    %5 = arith.addf %2, %4 : vector<144x128xf32>
    %6 = tpu.iota {dimensions = array<i32: 1>} : vector<144x128xi32>
    %c0_5 = arith.constant 0 : index
    %c0_6 = arith.constant 0 : index
    %7 = vector.load %arg1[%c0_5, %c0_6] : memref<144x250xf32, #tpu.memory_space<vmem>>, vector<144x250xf32>
    %c0_7 = arith.constant 0 : index
    %c0_8 = arith.constant 0 : index
    %8 = vector.load %arg2[%c0_7, %c0_8] : memref<5x250xf32, #tpu.memory_space<vmem>>, vector<5x250xf32>
    %9 = vector.extract_strided_slice %8 {offsets = [0, 0], sizes = [1, 250], strides = [1, 1]} : vector<5x250xf32> to vector<1x250xf32>
    %10 = vector.broadcast %9 : vector<1x250xf32> to vector<144x250xf32>
    %11 = arith.addf %7, %10 : vector<144x250xf32>
    %cst_9 = arith.constant dense<0xFF800000> : vector<144xf32>
    %12 = vector.multi_reduction <maximumf>, %11, %cst_9 [1] : vector<144x250xf32> to vector<144xf32>
    %13 = vector.shape_cast %12 : vector<144xf32> to vector<144x1xf32>
    %c0_i32 = arith.constant 0 : i32
    %14 = vector.broadcast %c0_i32 : i32 to vector<144x128xi32>
    %15 = arith.cmpi eq, %6, %14 : vector<144x128xi32>
    %16 = vector.shape_cast %13 : vector<144x1xf32> to vector<144x1xf32>
    %17 = vector.broadcast %16 : vector<144x1xf32> to vector<144x128xf32>
    %18 = arith.select %15, %17, %5 : vector<144x128xi1>, vector<144x128xf32>
    %19 = vector.extract_strided_slice %8 {offsets = [1, 0], sizes = [1, 250], strides = [1, 1]} : vector<5x250xf32> to vector<1x250xf32>
    %20 = vector.broadcast %19 : vector<1x250xf32> to vector<144x250xf32>
    %21 = arith.addf %7, %20 : vector<144x250xf32>
    %cst_10 = arith.constant dense<0xFF800000> : vector<144xf32>
    %22 = vector.multi_reduction <maximumf>, %21, %cst_10 [1] : vector<144x250xf32> to vector<144xf32>
    %23 = vector.shape_cast %22 : vector<144xf32> to vector<144x1xf32>
    %c1_i32 = arith.constant 1 : i32
    %24 = vector.broadcast %c1_i32 : i32 to vector<144x128xi32>
    %25 = arith.cmpi eq, %6, %24 : vector<144x128xi32>
    %26 = vector.shape_cast %23 : vector<144x1xf32> to vector<144x1xf32>
    %27 = vector.broadcast %26 : vector<144x1xf32> to vector<144x128xf32>
    %28 = arith.select %25, %27, %18 : vector<144x128xi1>, vector<144x128xf32>
    %29 = vector.extract_strided_slice %8 {offsets = [2, 0], sizes = [1, 250], strides = [1, 1]} : vector<5x250xf32> to vector<1x250xf32>
    %30 = vector.broadcast %29 : vector<1x250xf32> to vector<144x250xf32>
    %31 = arith.addf %7, %30 : vector<144x250xf32>
    %cst_11 = arith.constant dense<0xFF800000> : vector<144xf32>
    %32 = vector.multi_reduction <maximumf>, %31, %cst_11 [1] : vector<144x250xf32> to vector<144xf32>
    %33 = vector.shape_cast %32 : vector<144xf32> to vector<144x1xf32>
    %c2_i32 = arith.constant 2 : i32
    %34 = vector.broadcast %c2_i32 : i32 to vector<144x128xi32>
    %35 = arith.cmpi eq, %6, %34 : vector<144x128xi32>
    %36 = vector.shape_cast %33 : vector<144x1xf32> to vector<144x1xf32>
    %37 = vector.broadcast %36 : vector<144x1xf32> to vector<144x128xf32>
    %38 = arith.select %35, %37, %28 : vector<144x128xi1>, vector<144x128xf32>
    %39 = vector.extract_strided_slice %8 {offsets = [3, 0], sizes = [1, 250], strides = [1, 1]} : vector<5x250xf32> to vector<1x250xf32>
    %40 = vector.broadcast %39 : vector<1x250xf32> to vector<144x250xf32>
    %41 = arith.addf %7, %40 : vector<144x250xf32>
    %cst_12 = arith.constant dense<0xFF800000> : vector<144xf32>
    %42 = vector.multi_reduction <maximumf>, %41, %cst_12 [1] : vector<144x250xf32> to vector<144xf32>
    %43 = vector.shape_cast %42 : vector<144xf32> to vector<144x1xf32>
    %c3_i32 = arith.constant 3 : i32
    %44 = vector.broadcast %c3_i32 : i32 to vector<144x128xi32>
    %45 = arith.cmpi eq, %6, %44 : vector<144x128xi32>
    %46 = vector.shape_cast %43 : vector<144x1xf32> to vector<144x1xf32>
    %47 = vector.broadcast %46 : vector<144x1xf32> to vector<144x128xf32>
    %48 = arith.select %45, %47, %38 : vector<144x128xi1>, vector<144x128xf32>
    %49 = vector.extract_strided_slice %8 {offsets = [4, 0], sizes = [1, 250], strides = [1, 1]} : vector<5x250xf32> to vector<1x250xf32>
    %50 = vector.broadcast %49 : vector<1x250xf32> to vector<144x250xf32>
    %51 = arith.addf %7, %50 : vector<144x250xf32>
    %cst_13 = arith.constant dense<0xFF800000> : vector<144xf32>
    %52 = vector.multi_reduction <maximumf>, %51, %cst_13 [1] : vector<144x250xf32> to vector<144xf32>
    %53 = vector.shape_cast %52 : vector<144xf32> to vector<144x1xf32>
    %c4_i32 = arith.constant 4 : i32
    %54 = vector.broadcast %c4_i32 : i32 to vector<144x128xi32>
    %55 = arith.cmpi eq, %6, %54 : vector<144x128xi32>
    %56 = vector.shape_cast %53 : vector<144x1xf32> to vector<144x1xf32>
    %57 = vector.broadcast %56 : vector<144x1xf32> to vector<144x128xf32>
    %58 = arith.select %55, %57, %48 : vector<144x128xi1>, vector<144x128xf32>
    %c0_14 = arith.constant 0 : index
    %c0_15 = arith.constant 0 : index
    %59 = vector.load %arg6[%c0_14, %c0_15] : memref<144x128xf32, #tpu.memory_space<vmem>>, vector<144x128xf32>
    tpu.vector_store %arg6[%c0_14, %c0_15], %58 {strides = array<i32>} : memref<144x128xf32, #tpu.memory_space<vmem>>, vector<144x128xf32>,
    return
  }
  func.func @transform_0(%arg0: i32) -> (i32, i32) {
    %c0_i32 = arith.constant 0 : i32
    %c0_i32_0 = arith.constant 0 : i32
    return %arg0, %c0_i32 : i32, i32
  }
  func.func @transform_1(%arg0: i32) -> (i32, i32) {
    %c0_i32 = arith.constant 0 : i32
    %c0_i32_0 = arith.constant 0 : i32
    %c0_i32_1 = arith.constant 0 : i32
    return %c0_i32, %c0_i32_0 : i32, i32
  }
  func.func @transform_2(%arg0: i32) -> (i32, i32) {
    %c0_i32 = arith.constant 0 : i32
    %c0_i32_0 = arith.constant 0 : i32
    return %arg0, %c0_i32 : i32, i32
  }
  func.func @transform_3(%arg0: i32) -> (i32, i32) {
    %c0_i32 = arith.constant 0 : i32
    %c0_i32_0 = arith.constant 0 : i32
    %c0_i32_1 = arith.constant 0 : i32
    return %c0_i32, %c0_i32_0 : i32, i32
  }
  func.func @transform_4(%arg0: i32) -> (i32, i32) {
    %c0_i32 = arith.constant 0 : i32
    %c0_i32_0 = arith.constant 0 : i32
    %c0_i32_1 = arith.constant 0 : i32
    return %c0_i32, %c0_i32_0 : i32, i32
  }
  func.func @transform_5(%arg0: i32) -> (i32, i32) {
    %c0_i32 = arith.constant 0 : i32
    %c0_i32_0 = arith.constant 0 : i32
    return %arg0, %c0_i32 : i32, i32
  }
}

module attributes {stable_mosaic.version = 11 : i64} {
  func.func @mlp_head_kernel(%arg0: i32, %arg1: memref<8x2160xbf16, #tpu.memory_space<vmem>>, %arg2: memref<2160x128xbf16, #tpu.memory_space<vmem>>, %arg3: memref<1x128xf32, #tpu.memory_space<vmem>>, %arg4: memref<128x2xf32, #tpu.memory_space<vmem>>, %arg5: memref<1x2xf32, #tpu.memory_space<vmem>>, %arg6: memref<8x2xf32, #tpu.memory_space<vmem>>) attributes {dimension_semantics = [#tpu.dimension_semantics<parallel>], iteration_bounds = array<i64: 1>, scalar_prefetch = 0 : i64, scratch_operands = 0 : i64, tpu.core_type = #tpu.core_type<tc>, window_params = [{transform_indices = @transform_0, window_bounds = array<i64: 8, 2160>}, {pipeline_mode = #tpu.pipeline_mode<synchronous>, transform_indices = @transform_1, window_bounds = array<i64: 2160, 128>}, {pipeline_mode = #tpu.pipeline_mode<synchronous>, transform_indices = @transform_2, window_bounds = array<i64: 1, 128>}, {pipeline_mode = #tpu.pipeline_mode<synchronous>, transform_indices = @transform_3, window_bounds = array<i64: 128, 2>}, {pipeline_mode = #tpu.pipeline_mode<synchronous>, transform_indices = @transform_4, window_bounds = array<i64: 1, 2>}, {transform_indices = @transform_5, window_bounds = array<i64: 8, 2>}]} {
    %c0 = arith.constant 0 : index
    %c0_0 = arith.constant 0 : index
    %0 = vector.load %arg1[%c0, %c0_0] : memref<8x2160xbf16, #tpu.memory_space<vmem>>, vector<8x2160xbf16>
    %c0_1 = arith.constant 0 : index
    %c0_2 = arith.constant 0 : index
    %1 = vector.load %arg2[%c0_1, %c0_2] : memref<2160x128xbf16, #tpu.memory_space<vmem>>, vector<2160x128xbf16>
    %cst = arith.constant dense<0.000000e+00> : vector<8x128xf32>
    %2 = tpu.matmul %0, %1, %cst {dimension_numbers = #tpu.dot_dimension_numbers<[1], [0], [0], [1], [0, 0, 1, 1], [], []>} : vector<8x2160xbf16>, vector<2160x128xbf16>, vector<8x128xf32> -> vector<8x128xf32>
    %c0_3 = arith.constant 0 : index
    %c0_4 = arith.constant 0 : index
    %3 = vector.load %arg3[%c0_3, %c0_4] : memref<1x128xf32, #tpu.memory_space<vmem>>, vector<1x128xf32>
    %4 = vector.broadcast %3 : vector<1x128xf32> to vector<8x128xf32>
    %5 = arith.addf %2, %4 : vector<8x128xf32>
    %cst_5 = arith.constant 0.000000e+00 : f32
    %6 = vector.broadcast %cst_5 : f32 to vector<8x128xf32>
    %7 = arith.maximumf %5, %6 : vector<8x128xf32>
    %c0_6 = arith.constant 0 : index
    %c0_7 = arith.constant 0 : index
    %8 = vector.load %arg4[%c0_6, %c0_7] : memref<128x2xf32, #tpu.memory_space<vmem>>, vector<128x2xf32>
    %cst_8 = arith.constant dense<0.000000e+00> : vector<8x2xf32>
    %9 = tpu.matmul %7, %8, %cst_8 {dimension_numbers = #tpu.dot_dimension_numbers<[1], [0], [0], [1], [0, 0, 1, 1], [], []>} : vector<8x128xf32>, vector<128x2xf32>, vector<8x2xf32> -> vector<8x2xf32>
    %c0_9 = arith.constant 0 : index
    %c0_10 = arith.constant 0 : index
    %10 = vector.load %arg5[%c0_9, %c0_10] : memref<1x2xf32, #tpu.memory_space<vmem>>, vector<1x2xf32>
    %11 = vector.broadcast %10 : vector<1x2xf32> to vector<8x2xf32>
    %12 = arith.addf %9, %11 : vector<8x2xf32>
    %cst_11 = arith.constant dense<0xFF800000> : vector<8xf32>
    %13 = vector.multi_reduction <maximumf>, %12, %cst_11 [1] : vector<8x2xf32> to vector<8xf32>
    %14 = vector.shape_cast %13 : vector<8xf32> to vector<8x1xf32>
    %15 = vector.broadcast %14 : vector<8x1xf32> to vector<8x2xf32>
    %16 = arith.subf %12, %15 : vector<8x2xf32>
    %17 = math.exp %16 : vector<8x2xf32>
    %cst_12 = arith.constant dense<0.000000e+00> : vector<8xf32>
    %18 = vector.multi_reduction <add>, %17, %cst_12 [1] : vector<8x2xf32> to vector<8xf32>
    %19 = vector.shape_cast %18 : vector<8xf32> to vector<8x1xf32>
    %20 = math.log %19 : vector<8x1xf32>
    %21 = arith.addf %14, %20 : vector<8x1xf32>
    %22 = vector.broadcast %21 : vector<8x1xf32> to vector<8x2xf32>
    %23 = arith.subf %12, %22 : vector<8x2xf32>
    %c0_13 = arith.constant 0 : index
    %c0_14 = arith.constant 0 : index
    %24 = vector.load %arg6[%c0_13, %c0_14] : memref<8x2xf32, #tpu.memory_space<vmem>>, vector<8x2xf32>
    tpu.vector_store %arg6[%c0_13, %c0_14], %23 {strides = array<i32>} : memref<8x2xf32, #tpu.memory_space<vmem>>, vector<8x2xf32>,
    return
  }
  func.func @transform_0(%arg0: i32) -> (i32, i32) {
    %c0_i32 = arith.constant 0 : i32
    %c0_i32_0 = arith.constant 0 : i32
    return %arg0, %c0_i32 : i32, i32
  }
  func.func @transform_1(%arg0: i32) -> (i32, i32) {
    %c0_i32 = arith.constant 0 : i32
    %c0_i32_0 = arith.constant 0 : i32
    %c0_i32_1 = arith.constant 0 : i32
    return %c0_i32, %c0_i32_0 : i32, i32
  }
  func.func @transform_2(%arg0: i32) -> (i32, i32) {
    %c0_i32 = arith.constant 0 : i32
    %c0_i32_0 = arith.constant 0 : i32
    %c0_i32_1 = arith.constant 0 : i32
    return %c0_i32, %c0_i32_0 : i32, i32
  }
  func.func @transform_3(%arg0: i32) -> (i32, i32) {
    %c0_i32 = arith.constant 0 : i32
    %c0_i32_0 = arith.constant 0 : i32
    %c0_i32_1 = arith.constant 0 : i32
    return %c0_i32, %c0_i32_0 : i32, i32
  }
  func.func @transform_4(%arg0: i32) -> (i32, i32) {
    %c0_i32 = arith.constant 0 : i32
    %c0_i32_0 = arith.constant 0 : i32
    %c0_i32_1 = arith.constant 0 : i32
    return %c0_i32, %c0_i32_0 : i32, i32
  }
  func.func @transform_5(%arg0: i32) -> (i32, i32) {
    %c0_i32 = arith.constant 0 : i32
    %c0_i32_0 = arith.constant 0 : i32
    return %arg0, %c0_i32 : i32, i32
  }
}

</mosaic_0001>

<llo_original>
// kernel: net_forward.4
$region0: #{net_forward.4}
  #allocation0 [shape = 'u32[]', space=smem, size = 0x4, offset = 0x4, fixed_abs, tag = 'smem constant byte address 0x4 - core index']
  #allocation1 [shape = 'u32[144,128]{1,0:T(1,128)}', space=vmem, size = 0x12000, scoped, tag = 'internal scratch']
  %s0 = inlined_call_operand.vmem [shape: f32[8,400], index: 0, kind: input, shape index: {}]
  %s1 = inlined_call_operand.vmem [shape: f32[8,400], index: 1, kind: input, shape index: {}]
  %s2 = inlined_call_operand.vmem [shape: f32[8,400], index: 2, kind: input, shape index: {}]
  %s3 = inlined_call_operand.vmem [shape: f32[8,400], index: 3, kind: input, shape index: {}]
  %s4 = inlined_call_operand.vmem [shape: f32[8,400], index: 4, kind: output, shape index: {}]
  %s5 = sld [smem:[#allocation0]]
  $region26: #{net_forward.4} parent=0
    _
  %s7 = ssub.s32 1, %s5
  %s8 = scalar_select 0, %s7, %s5
  // Predicated region
  $region2: #{net_forward.4} parent=0 // pred_check
    _
  $region3: #{net_forward.4} parent=0 // pred_check_branch
    %10 = sbr.rel (0) target = $region5
  $region4: #{net_forward.4} parent=0 // pred_region
    _
  $region5: #{net_forward.4} parent=0 // pred_fallthru
    _
  // Predicated region
  $region6: #{net_forward.4} parent=0 // pred_check
    _
  $region7: #{net_forward.4} parent=0 // pred_check_branch
    %12 = sbr.rel (0) target = $region9
  $region8: #{net_forward.4} parent=0 // pred_region
    _
  $region9: #{net_forward.4} parent=0 // pred_fallthru
    _
  // Predicated region
  $region10: #{net_forward.4} parent=0 // pred_check
    _
  $region11: #{net_forward.4} parent=0 // pred_check_branch
    %14 = sbr.rel (0) target = $region13
  $region12: #{net_forward.4} parent=0 // pred_region
    _
  $region13: #{net_forward.4} parent=0 // pred_fallthru
    _
  // Predicated region
  $region14: #{net_forward.4} parent=0 // pred_check
    _
  $region15: #{net_forward.4} parent=0 // pred_check_branch
    %16 = sbr.rel (0) target = $region17
  $region16: #{net_forward.4} parent=0 // pred_region
    _
  $region17: #{net_forward.4} parent=0 // pred_fallthru
    _
  %v17 = vld [vmem:[%s0] sm:$0xff]
  %v18 = vld [vmem:[%s0 + $0x8] sm:$0xff]
  %v19 = vld [vmem:[%s0 + $0x10] sm:$0xff]
  %v20 = vld [vmem:[%s0 + $0x18] sm:$0xff]
  %v21 = vld [vmem:[%s1] sm:$0xff]
  %v22 = vld [vmem:[%s1 + $0x8] sm:$0xff]
  %v23 = vld [vmem:[%s1 + $0x10] sm:$0xff]
  %v24 = vld [vmem:[%s1 + $0x18] sm:$0xff]
  %v25 = vmax.f32 %v17, %v21
  %v26 = vmax.f32 %v18, %v22
  %v27 = vmax.f32 %v19, %v23
  %v28 = vmax.f32 %v20, %v24
  %v29 = vld [vmem:[%s2] sm:$0xff]
  %v30 = vld [vmem:[%s2 + $0x8] sm:$0xff]
  %v31 = vld [vmem:[%s2 + $0x10] sm:$0xff]
  %v32 = vld [vmem:[%s2 + $0x18] sm:$0xff]
  %v33 = vld [vmem:[%s3] sm:$0xff]
  %v34 = vld [vmem:[%s3 + $0x8] sm:$0xff]
  %v35 = vld [vmem:[%s3 + $0x10] sm:$0xff]
  %v36 = vld [vmem:[%s3 + $0x18] sm:$0xff]
  %v37 = vmax.f32 %v29, %v33
  %v38 = vmax.f32 %v30, %v34
  %v39 = vmax.f32 %v31, %v35
  %v40 = vmax.f32 %v32, %v36
  %v41 = vmax.f32 %v25, %v37
  %v42 = vmax.f32 %v26, %v38
  %v43 = vmax.f32 %v27, %v39
  %v44 = vmax.f32 %v28, %v40
  %45 = vst [vmem:[%s4] sm:$0xff] %v41
  %46 = vst [vmem:[%s4 + $0x8] sm:$0xff] %v42
  %47 = vst [vmem:[%s4 + $0x10] sm:$0xff] %v43
  %vm48 = vcmask 130048
  %49 = vst.msk [vmem:[%s4 + $0x18] sm:$0xff] %vm48, %v44
  // Predicated region
  $region18: #{net_forward.4} parent=0 // pred_check
    _
  $region19: #{net_forward.4} parent=0 // pred_check_branch
    %51 = sbr.rel (0) target = $region21
  $region20: #{net_forward.4} parent=0 // pred_region
    _
  $region21: #{net_forward.4} parent=0 // pred_fallthru
    _
  // Predicated region
  $region22: #{net_forward.4} parent=0 // pred_check
    _
  $region23: #{net_forward.4} parent=0 // pred_check_branch
    %53 = sbr.rel (0) target = $region25
  $region24: #{net_forward.4} parent=0 // pred_region
    _
  $region25: #{net_forward.4} parent=0 // pred_fallthru
    _

// kernel: net_forward.5
$region0: #{net_forward.5}
  #allocation0 [shape = 'u32[]', space=smem, size = 0x4, offset = 0x4, fixed_abs, tag = 'smem constant byte address 0x4 - core index']
  #allocation1 [shape = 'u32[144,128]{1,0:T(1,128)}', space=vmem, size = 0x12000, scoped, tag = 'internal scratch']
  %s0 = inlined_call_operand.vmem [shape: f32[512,25], index: 0, kind: input, shape index: {}]
  %s1 = inlined_call_operand.hbm [shape: f32[10,25], index: 1, kind: input, shape index: {}]
  %s2 = inlined_call_operand.hbm [shape: f32[25,128], index: 2, kind: input, shape index: {}]
  %s3 = inlined_call_operand.hbm [shape: f32[1,128], index: 3, kind: input, shape index: {}]
  %s4 = inlined_call_operand.vmem [shape: f32[512,128], index: 4, kind: output, shape index: {}]
  %s5 = sld [smem:[#allocation0]]
  $region61: #{net_forward.5} parent=0
    _
  %s7 = ssub.s32 1, %s5
  %s8 = scalar_select 0, %s7, %s5
  $region1: #{net_forward.5} parent=0
    #allocation2 [shape = 'u8[8192]{0}', space=vmem, size = 0x2000, scoped, tag = 'input window, operand 1, single buffered']
    #allocation3 [shape = 's32[2]{0}', space=sflag, size = 0x8, scoped, tag = 'scoped memory for net_forward.5']
    #allocation4 [shape = 'u8[16384]{0}', space=vmem, size = 0x4000, scoped, tag = 'input window, operand 2, single buffered']
    #allocation5 [shape = 's32[1]{0}', space=sflag, size = 0x4, scoped, tag = 'scoped memory for net_forward.5']
    #allocation6 [shape = 'u8[512]{0}', space=vmem, size = 0x400, scoped, tag = 'input window, operand 3, single buffered']
    %9 = vsyncpa [#allocation3], 0
    %10 = vsyncpa [#allocation5], 0
    loop: start=0, step=1, limit=4
    $region2: #{net_forward.5} parent=1 // loop_pre_header
      _
    $region3: #{net_forward.5} parent=1 // loop_header
      %s12 = sphi 0, %s16
      %p13 = scmp.ge.s32.totalorder %s12, 4
      %s22 = sphi 0, %s24
      %s25 = sphi 0, %s22
      %s26 = sphi 0, %s25
      %s42 = sphi 0, %s26
      %s46 = sphi 0, %s46
      %s48 = sphi 0, %s46
      %s49 = sphi 0, %s48
      %s63 = sphi 0, %s49
      %s67 = sphi 0, %s67
      %s69 = sphi 0, %s67
      %s70 = sphi 0, %s69
      %s84 = sphi 0, %s70
      %s88 = sphi 0, %s88
      %s90 = sphi 0, %s88
      %s91 = sphi 0, %s90
      %s105 = sphi 0, %s91
      %s111 = sphi 0, %s113
      %s114 = sphi 0, %s111
      %s115 = sphi 0, %s114
      %s131 = sphi 0, %s115
    $region4: #{net_forward.5} parent=1 // loop_header_branch
      %15 = sbr.rel (%p13) target = $region8
    $region5: #{net_forward.5} parent=1 // loop_body
      %s17 = ssub.s32 %s12, 1
      %s18 = ssub.s32 %s12, 2
      %s19 = sadd.s32 %s12, 1
      %s20 = ssub.s32 %s12, %s19
      %p21 = scmp.eq.s32.totalorder %s20, 0
      %s23 = sadd.s32 %s22, 1
      %s24 = scalar_select %p21, %s22, %s23
      %p27 = pneg %p21
      %p28 = scmp.eq.s32.totalorder %s12, 1
      %p29 = por %p27, %p28
      %p30 = scmp.ne.s32.totalorder %s22, %s25
      %p31 = scmp.eq.s32.totalorder %s12, 0
      %p32 = por %p30, %p31
      %p33 = scmp.ne.s32.totalorder %s22, %s25
      %p34 = scmp.eq.s32.totalorder %s17, 1
      %p35 = por %p33, %p34
      %p36 = scmp.ne.s32.totalorder %s25, %s26
      %p37 = scmp.eq.s32.totalorder %s17, 0
      %p38 = por %p36, %p37
      %p39 = scmp.ne.s32.totalorder %s25, %s26
      %p40 = scmp.eq.s32.totalorder %s18, 1
      %p41 = por %p39, %p40
      %p43 = scmp.ne.s32.totalorder %s26, %s42
      %p44 = scmp.eq.s32.totalorder %s18, 0
      %p45 = por %p43, %p44
      %s47 = sadd.s32 %s46, 1
      %p50 = scmp.eq.s32.totalorder %s12, 1
      %p51 = scmp.ne.s32.totalorder %s46, %s48
      %p52 = scmp.eq.s32.totalorder %s12, 0
      %p53 = por %p51, %p52
      %p54 = scmp.ne.s32.totalorder %s46, %s48
      %p55 = scmp.eq.s32.totalorder %s17, 1
      %p56 = por %p54, %p55
      %p57 = scmp.ne.s32.totalorder %s48, %s49
      %p58 = scmp.eq.s32.totalorder %s17, 0
      %p59 = por %p57, %p58
      %p60 = scmp.ne.s32.totalorder %s48, %s49
      %p61 = scmp.eq.s32.totalorder %s18, 1
      %p62 = por %p60, %p61
      %p64 = scmp.ne.s32.totalorder %s49, %s63
      %p65 = scmp.eq.s32.totalorder %s18, 0
      %p66 = por %p64, %p65
      %s68 = sadd.s32 %s67, 1
      %p71 = scmp.eq.s32.totalorder %s12, 1
      %p72 = scmp.ne.s32.totalorder %s67, %s69
      %p73 = scmp.eq.s32.totalorder %s12, 0
      %p74 = por %p72, %p73
      %p75 = scmp.ne.s32.totalorder %s67, %s69
      %p76 = scmp.eq.s32.totalorder %s17, 1
      %p77 = por %p75, %p76
      %p78 = scmp.ne.s32.totalorder %s69, %s70
      %p79 = scmp.eq.s32.totalorder %s17, 0
      %p80 = por %p78, %p79
      %p81 = scmp.ne.s32.totalorder %s69, %s70
      %p82 = scmp.eq.s32.totalorder %s18, 1
      %p83 = por %p81, %p82
      %p85 = scmp.ne.s32.totalorder %s70, %s84
      %p86 = scmp.eq.s32.totalorder %s18, 0
      %p87 = por %p85, %p86
      %s89 = sadd.s32 %s88, 1
      %p92 = scmp.eq.s32.totalorder %s12, 1
      %p93 = scmp.ne.s32.totalorder %s88, %s90
      %p94 = scmp.eq.s32.totalorder %s12, 0
      %p95 = por %p93, %p94
      %p96 = scmp.ne.s32.totalorder %s88, %s90
      %p97 = scmp.eq.s32.totalorder %s17, 1
      %p98 = por %p96, %p97
      %p99 = scmp.ne.s32.totalorder %s90, %s91
      %p100 = scmp.eq.s32.totalorder %s17, 0
      %p101 = por %p99, %p100
      %p102 = scmp.ne.s32.totalorder %s90, %s91
      %p103 = scmp.eq.s32.totalorder %s18, 1
      %p104 = por %p102, %p103
      %p106 = scmp.ne.s32.totalorder %s91, %s105
      %p107 = scmp.eq.s32.totalorder %s18, 0
      %p108 = por %p106, %p107
      %s109 = ssub.s32 %s12, %s19
      %p110 = scmp.eq.s32.totalorder %s109, 0
      %s112 = sadd.s32 %s111, 1
      %s113 = scalar_select %p110, %s111, %s112
      %p116 = pneg %p110
      %p117 = scmp.eq.s32.totalorder %s12, 1
      %p118 = por %p116, %p117
      %p119 = scmp.ne.s32.totalorder %s111, %s114
      %p120 = scmp.eq.s32.totalorder %s12, 0
      %p121 = por %p119, %p120
      %p122 = scmp.ne.s32.totalorder %s111, %s114
      %p123 = scmp.eq.s32.totalorder %s17, 1
      %p124 = por %p122, %p123
      %p125 = scmp.ne.s32.totalorder %s114, %s115
      %p126 = scmp.eq.s32.totalorder %s17, 0
      %p127 = por %p125, %p126
      %p128 = scmp.ne.s32.totalorder %s114, %s115
      %p129 = scmp.eq.s32.totalorder %s18, 1
      %p130 = por %p128, %p129
      %p132 = scmp.ne.s32.totalorder %s115, %s131
      %p133 = scmp.eq.s32.totalorder %s18, 0
      %p134 = por %p132, %p133
      %p135 = scmp.le.s32.totalorder 1, %s12
      %p136 = scmp.lt.s32.totalorder %s12, 3
      %p137 = pnand %p135, %p136
      %p138 = pneg %p137
      // Predicated region
      $region9: #{net_forward.5} parent=5 // pred_check
        _
      $region10: #{net_forward.5} parent=5 // pred_check_branch
        %140 = sbr.rel (%p137) target = $region12
      $region11: #{net_forward.5} parent=5 // pred_region
        %s141 = ssub.s32 %s12, 1
        // Predicated region
        $region13: #{net_forward.5} parent=11 // pred_check
          %p142 = pneg %p59
        $region14: #{net_forward.5} parent=11 // pred_check_branch
          %144 = sbr.rel (%p142) target = $region16
        $region15: #{net_forward.5} parent=11 // pred_region
          %s146 = ssub.s32 256, 256
          %147 = vsyncadd [#allocation3], %s146
          %s148 = sshll.u32 [#allocation2], 4
          %s149 = int_to_ptr.vmem [resolvable:$true] %s148
          %154 = dma.hbm_to_vmem [thread:$0]  %s1, 256, %s149, [#allocation3], 128, 128, 8
        $region16: #{net_forward.5} parent=11 // pred_fallthru
          _
        // Predicated region
        $region17: #{net_forward.5} parent=11 // pred_check
          %p155 = pneg %p80
        $region18: #{net_forward.5} parent=11 // pred_check_branch
          %157 = sbr.rel (%p155) target = $region20
        $region19: #{net_forward.5} parent=11 // pred_region
          %s159 = ssub.s32 512, 512
          %160 = vsyncadd [#allocation5], %s159
          %s161 = sshll.u32 [#allocation4], 4
          %s162 = int_to_ptr.vmem [resolvable:$true] %s161
          %167 = dma.hbm_to_vmem [thread:$0]  %s2, 512, %s162, [#allocation5], 128, 128, 8
        $region20: #{net_forward.5} parent=11 // pred_fallthru
          _
        // Predicated region
        $region21: #{net_forward.5} parent=11 // pred_check
          %p168 = pneg %p101
        $region22: #{net_forward.5} parent=11 // pred_check_branch
          %170 = sbr.rel (%p168) target = $region24
        $region23: #{net_forward.5} parent=11 // pred_region
          %s172 = ssub.s32 16, 16
          %173 = vsyncadd [#allocation5], %s172
          %s175 = sshll.u32 [#allocation6], 4
          %s176 = int_to_ptr.vmem [resolvable:$true] %s175
          %178 = dma.hbm_to_vmem [thread:$0]  %s3, 16, %s176, [#allocation5]
        $region24: #{net_forward.5} parent=11 // pred_fallthru
          _
      $region12: #{net_forward.5} parent=5 // pred_fallthru
        _
      %p179 = scmp.lt.s32.totalorder %s12, 2
      // Predicated region
      $region25: #{net_forward.5} parent=5 // pred_check
        %p180 = pneg %p179
      $region26: #{net_forward.5} parent=5 // pred_check_branch
        %182 = sbr.rel (%p180) target = $region28
      $region27: #{net_forward.5} parent=5 // pred_region
        // Predicated region
        $region29: #{net_forward.5} parent=27 // pred_check
          %p183 = pneg %p32
        $region30: #{net_forward.5} parent=27 // pred_check_branch
          %185 = sbr.rel (%p183) target = $region32
        $region31: #{net_forward.5} parent=27 // pred_region
          %s186 = smul.u32 32, %s12
          %p187 = scmp.lt.s32.totalorder %s186, 63
          %s188 = scalar_select %p187, %s186, 63
          %s189 = smul.addr %s188, 8
          %s190 = scalar_lea.vmem %s0, %s189
          %s191 = smul.u32 32, %s12
        $region32: #{net_forward.5} parent=27 // pred_fallthru
          _
      $region28: #{net_forward.5} parent=5 // pred_fallthru
        _
      %p192 = scmp.le.s32.totalorder 1, %s12
      %p193 = scmp.lt.s32.totalorder %s12, 3
      %p194 = pnand %p192, %p193
      %p195 = pneg %p194
      // Predicated region
      $region33: #{net_forward.5} parent=5 // pred_check
        _
      $region34: #{net_forward.5} parent=5 // pred_check_branch
        %197 = sbr.rel (%p194) target = $region36
      $region35: #{net_forward.5} parent=5 // pred_region
        %s198 = ssub.s32 %s12, 1
        // Predicated region
        $region37: #{net_forward.5} parent=35 // pred_check
          %p199 = pneg %p59
        $region38: #{net_forward.5} parent=35 // pred_check_branch
          %201 = sbr.rel (%p199) target = $region40
        $region39: #{net_forward.5} parent=35 // pred_region
          %202 = dma.done [#allocation3], 256
        $region40: #{net_forward.5} parent=35 // pred_fallthru
          _
        // Predicated region
        $region41: #{net_forward.5} parent=35 // pred_check
          %p203 = pneg %p80
        $region42: #{net_forward.5} parent=35 // pred_check_branch
          %205 = sbr.rel (%p203) target = $region44
        $region43: #{net_forward.5} parent=35 // pred_region
          %206 = dma.done [#allocation5], 512
        $region44: #{net_forward.5} parent=35 // pred_fallthru
          _
        // Predicated region
        $region45: #{net_forward.5} parent=35 // pred_check
          %p207 = pneg %p101
        $region46: #{net_forward.5} parent=35 // pred_check_branch
          %209 = sbr.rel (%p207) target = $region48
        $region47: #{net_forward.5} parent=35 // pred_region
          %210 = dma.done [#allocation5], 16
        $region48: #{net_forward.5} parent=35 // pred_fallthru
          _
        %s211 = smul.u32 32, %s17
        %p212 = scmp.lt.s32.totalorder %s211, 63
        %s213 = scalar_select %p212, %s211, 63
        %s214 = smul.addr %s213, 8
        %s215 = scalar_lea.vmem %s0, %s214
        %p216 = pneg %p38
        %p217 = pneg %p35
        %p218 = pneg %p59
        %p219 = pneg %p56
        %p220 = pneg %p80
        %p221 = pneg %p77
        %p222 = pneg %p101
        %p223 = pneg %p98
        %p224 = pneg %p127
        %p225 = pneg %p124
        %s226 = smul.u32 32, %s17
        %p227 = scmp.lt.s32.totalorder %s226, 63
        %s228 = scalar_select %p227, %s226, 63
        %s229 = smul.addr %s228, 8
        %s230 = scalar_lea.vmem %s4, %s229
        %s231 = smul.u32 32, %s17
        %p232 = scmp.lt.s32.totalorder %s231, 63
        %s233 = scalar_select %p232, %s231, 63
        %s234 = smul.addr %s233, 8
        %s235 = scalar_lea.vmem %s0, %s234
        %s236 = smul.u32 32, %s17
        %s237 = smul.u32 32, %s17
        %p238 = scmp.lt.s32.totalorder %s237, 63
        %s239 = scalar_select %p238, %s237, 63
        %s240 = smul.addr %s239, 8
        %s241 = scalar_lea.vmem %s4, %s240
        %s242 = smul.u32 32, %s17
        %v243 = vld [vmem:[%s235] sm:$0xff]
        %v244 = vld [vmem:[%s235 + $0x8] sm:$0xff]
        %v245 = vld [vmem:[%s235 + $0x10] sm:$0xff]
        %v246 = vld [vmem:[%s235 + $0x18] sm:$0xff]
        %v247 = vld [vmem:[%s235 + $0x20] sm:$0xff]
        %v248 = vld [vmem:[%s235 + $0x28] sm:$0xff]
        %v249 = vld [vmem:[%s235 + $0x30] sm:$0xff]
        %v250 = vld [vmem:[%s235 + $0x38] sm:$0xff]
        %v251 = vld [vmem:[%s235 + $0x40] sm:$0xff]
        %v252 = vld [vmem:[%s235 + $0x48] sm:$0xff]
        %v253 = vld [vmem:[%s235 + $0x50] sm:$0xff]
        %v254 = vld [vmem:[%s235 + $0x58] sm:$0xff]
        %v255 = vld [vmem:[%s235 + $0x60] sm:$0xff]
        %v256 = vld [vmem:[%s235 + $0x68] sm:$0xff]
        %v257 = vld [vmem:[%s235 + $0x70] sm:$0xff]
        %v258 = vld [vmem:[%s235 + $0x78] sm:$0xff]
        %v259 = vld [vmem:[%s235 + $0x80] sm:$0xff]
        %v260 = vld [vmem:[%s235 + $0x88] sm:$0xff]
        %v261 = vld [vmem:[%s235 + $0x90] sm:$0xff]
        %v262 = vld [vmem:[%s235 + $0x98] sm:$0xff]
        %v263 = vld [vmem:[%s235 + $0xa0] sm:$0xff]
        %v264 = vld [vmem:[%s235 + $0xa8] sm:$0xff]
        %v265 = vld [vmem:[%s235 + $0xb0] sm:$0xff]
        %v266 = vld [vmem:[%s235 + $0xb8] sm:$0xff]
        %v267 = vld [vmem:[%s235 + $0xc0] sm:$0xff]
        %v268 = vld [vmem:[%s235 + $0xc8] sm:$0xff]
        %v269 = vld [vmem:[%s235 + $0xd0] sm:$0xff]
        %v270 = vld [vmem:[%s235 + $0xd8] sm:$0xff]
        %v271 = vld [vmem:[%s235 + $0xe0] sm:$0xff]
        %v272 = vld [vmem:[%s235 + $0xe8] sm:$0xff]
        %v273 = vld [vmem:[%s235 + $0xf0] sm:$0xff]
        %v274 = vld [vmem:[%s235 + $0xf8] sm:$0xff]
        %v275 = vld [vmem:[#allocation4] sm:$0xff]
        %v276 = vld [vmem:[#allocation4 + $0x8] sm:$0xff]
        %v277 = vld [vmem:[#allocation4 + $0x10] sm:$0xff]
        %v278 = vld [vmem:[#allocation4 + $0x18] sm:$0x1]
        %v279 = vld [vmem:[#allocation6] sm:$0x1]
        %v281 = vlaneseq
        %v282 = vshrl.u32 %v281, 7
        %v283 = vsub.s32 0, %v282
        %v284 = vrot.slane %v279, %v283
        %vm286 = vcmask 203776
        %v288 = vsel %vm286, %v243, 0
        %v291 = vsel %vm286, %v244, 0
        %v294 = vsel %vm286, %v245, 0
        %v297 = vsel %vm286, %v246, 0
        %v300 = vsel %vm286, %v247, 0
        %v303 = vsel %vm286, %v248, 0
        %v306 = vsel %vm286, %v249, 0
        %v309 = vsel %vm286, %v250, 0
        %v312 = vsel %vm286, %v251, 0
        %v315 = vsel %vm286, %v252, 0
        %v318 = vsel %vm286, %v253, 0
        %v321 = vsel %vm286, %v254, 0
        %v324 = vsel %vm286, %v255, 0
        %v327 = vsel %vm286, %v256, 0
        %v330 = vsel %vm286, %v257, 0
        %v333 = vsel %vm286, %v258, 0
        %v336 = vsel %vm286, %v259, 0
        %v339 = vsel %vm286, %v260, 0
        %v342 = vsel %vm286, %v261, 0
        %v345 = vsel %vm286, %v262, 0
        %v348 = vsel %vm286, %v263, 0
        %v351 = vsel %vm286, %v264, 0
        %v354 = vsel %vm286, %v265, 0
        %v357 = vsel %vm286, %v266, 0
        %v360 = vsel %vm286, %v267, 0
        %v363 = vsel %vm286, %v268, 0
        %v366 = vsel %vm286, %v269, 0
        %v369 = vsel %vm286, %v270, 0
        %v372 = vsel %vm286, %v271, 0
        %v375 = vsel %vm286, %v272, 0
        %v378 = vsel %vm286, %v273, 0
        %v381 = vsel %vm286, %v274, 0
        %vm383 = vcmask 1040384
        %v385 = vsel %vm383, %v278, 0
        %387 = vmatprep.subr.mxu0 0.0
        %388 = vmatpush1.msra.mxu0 %v275
        %389 = vmatprep.subr.mxu0 0.0
        %390 = vmatpush1.msra.mxu0 %v276
        %391 = vmatprep.subr.mxu0 0.0
        %392 = vmatpush1.msra.mxu0 %v277
        %393 = vmatprep.subr.mxu0 0.0
        %394 = vmatpush1.msra.mxu0 %v385
        %395 = vmatprep.subr.mxu0 0.0
        %396 = vmatpush1.msra.mxu0 0.0
        %397 = vmatprep.subr.mxu0 0.0
        %398 = vmatpush1.msra.mxu0 0.0
        %399 = vmatprep.subr.mxu0 0.0
        %400 = vmatpush1.msra.mxu0 0.0
        %401 = vmatprep.subr.mxu0 0.0
        %402 = vmatpush1.msra.mxu0 0.0
        %403 = vmatprep.subr.mxu0 0.0
        %404 = vmatpush1.msra.mxu0 0.0
        %405 = vmatprep.subr.mxu0 0.0
        %406 = vmatpush1.msra.mxu0 0.0
        %407 = vmatprep.subr.mxu0 0.0
        %408 = vmatpush1.msra.mxu0 0.0
        %409 = vmatprep.subr.mxu0 0.0
        %410 = vmatpush1.msra.mxu0 0.0
        %411 = vmatprep.subr.mxu0 0.0
        %412 = vmatpush1.msra.mxu0 0.0
        %413 = vmatprep.subr.mxu0 0.0
        %414 = vmatpush1.msra.mxu0 0.0
        %415 = vmatprep.subr.mxu0 0.0
        %416 = vmatpush1.msra.mxu0 0.0
        %417 = vmatprep.subr.mxu0 0.0
        %418 = vmatpush1.msra.mxu0 0.0
        %419 = vmatprep.subr.mxu0 0.0
        %420 = vmatpush1.msra.mxu0 0.0
        %421 = vmatprep.subr.mxu0 0.0
        %422 = vmatpush1.msra.mxu0 0.0
        %423 = vmatprep.subr.mxu0 0.0
        %424 = vmatpush1.msra.mxu0 0.0
        %425 = vmatprep.subr.mxu0 0.0
        %426 = vmatpush1.msra.mxu0 0.0
        %427 = vmatprep.subr.mxu0 0.0
        %428 = vmatpush1.msra.mxu0 0.0
        %429 = vmatprep.subr.mxu0 0.0
        %430 = vmatpush1.msra.mxu0 0.0
        %431 = vmatprep.subr.mxu0 0.0
        %432 = vmatpush1.msra.mxu0 0.0
        %433 = vmatprep.subr.mxu0 0.0
        %434 = vmatpush1.msra.mxu0 0.0
        %435 = vmatprep.subr.mxu0 0.0
        %436 = vmatpush1.msra.mxu0 0.0
        %437 = vmatprep.subr.mxu0 0.0
        %438 = vmatpush1.msra.mxu0 0.0
        %439 = vmatprep.subr.mxu0 0.0
        %440 = vmatpush1.msra.mxu0 0.0
        %441 = vmatprep.subr.mxu0 0.0
        %442 = vmatpush1.msra.mxu0 0.0
        %443 = vmatprep.subr.mxu0 0.0
        %444 = vmatpush1.msra.mxu0 0.0
        %445 = vmatprep.subr.mxu0 0.0
        %446 = vmatpush1.msra.mxu0 0.0
        %447 = vmatprep.subr.mxu0 0.0
        %448 = vmatpush1.msra.mxu0 0.0
        %449 = vmatprep.subr.mxu0 0.0
        %450 = vmatpush1.msra.mxu0 0.0
        %451 = vmatprep.mubr.f32.mxu0 0.0
        %452 = vmatmul.mubr.f32.gmra.mrb[0].mxu0 %v288
        %v453 = vpop.f32.mrb[0].mxu0
        %v454 = vadd.f32 %v284, %v453
        %v455 = vpop.f32.mrb[0].mxu0
        %456 = vmatprep.mubr.f32.mxu0 0.0
        %457 = vmatmul.mubr.f32.gmra.mrb[0].mxu0 %v291
        %v458 = vpop.f32.mrb[0].mxu0
        %v459 = vadd.f32 %v284, %v458
        %v460 = vpop.f32.mrb[0].mxu0
        %461 = vmatprep.mubr.f32.mxu0 0.0
        %462 = vmatmul.mubr.f32.gmra.mrb[0].mxu0 %v294
        %v463 = vpop.f32.mrb[0].mxu0
        %v464 = vadd.f32 %v284, %v463
        %v465 = vpop.f32.mrb[0].mxu0
        %466 = vmatprep.mubr.f32.mxu0 0.0
        %467 = vmatmul.mubr.f32.gmra.mrb[0].mxu0 %v297
        %v468 = vpop.f32.mrb[0].mxu0
        %v469 = vadd.f32 %v284, %v468
        %v470 = vpop.f32.mrb[0].mxu0
        %471 = vmatprep.mubr.f32.mxu0 0.0
        %472 = vmatmul.mubr.f32.gmra.mrb[0].mxu0 %v300
        %v473 = vpop.f32.mrb[0].mxu0
        %v474 = vadd.f32 %v284, %v473
        %v475 = vpop.f32.mrb[0].mxu0
        %476 = vmatprep.mubr.f32.mxu0 0.0
        %477 = vmatmul.mubr.f32.gmra.mrb[0].mxu0 %v303
        %v478 = vpop.f32.mrb[0].mxu0
        %v479 = vadd.f32 %v284, %v478
        %v480 = vpop.f32.mrb[0].mxu0
        %481 = vmatprep.mubr.f32.mxu0 0.0
        %482 = vmatmul.mubr.f32.gmra.mrb[0].mxu0 %v306
        %v483 = vpop.f32.mrb[0].mxu0
        %v484 = vadd.f32 %v284, %v483
        %v485 = vpop.f32.mrb[0].mxu0
        %486 = vmatprep.mubr.f32.mxu0 0.0
        %487 = vmatmul.mubr.f32.gmra.mrb[0].mxu0 %v309
        %v488 = vpop.f32.mrb[0].mxu0
        %v489 = vadd.f32 %v284, %v488
        %v490 = vpop.f32.mrb[0].mxu0
        %491 = vmatprep.mubr.f32.mxu0 0.0
        %492 = vmatmul.mubr.f32.gmra.mrb[0].mxu0 %v312
        %v493 = vpop.f32.mrb[0].mxu0
        %v494 = vadd.f32 %v284, %v493
        %v495 = vpop.f32.mrb[0].mxu0
        %496 = vmatprep.mubr.f32.mxu0 0.0
        %497 = vmatmul.mubr.f32.gmra.mrb[0].mxu0 %v315
        %v498 = vpop.f32.mrb[0].mxu0
        %v499 = vadd.f32 %v284, %v498
        %v500 = vpop.f32.mrb[0].mxu0
        %501 = vmatprep.mubr.f32.mxu0 0.0
        %502 = vmatmul.mubr.f32.gmra.mrb[0].mxu0 %v318
        %v503 = vpop.f32.mrb[0].mxu0
        %v504 = vadd.f32 %v284, %v503
        %v505 = vpop.f32.mrb[0].mxu0
        %506 = vmatprep.mubr.f32.mxu0 0.0
        %507 = vmatmul.mubr.f32.gmra.mrb[0].mxu0 %v321
        %v508 = vpop.f32.mrb[0].mxu0
        %v509 = vadd.f32 %v284, %v508
        %v510 = vpop.f32.mrb[0].mxu0
        %511 = vmatprep.mubr.f32.mxu0 0.0
        %512 = vmatmul.mubr.f32.gmra.mrb[0].mxu0 %v324
        %v513 = vpop.f32.mrb[0].mxu0
        %v514 = vadd.f32 %v284, %v513
        %v515 = vpop.f32.mrb[0].mxu0
        %516 = vmatprep.mubr.f32.mxu0 0.0
        %517 = vmatmul.mubr.f32.gmra.mrb[0].mxu0 %v327
        %v518 = vpop.f32.mrb[0].mxu0
        %v519 = vadd.f32 %v284, %v518
        %v520 = vpop.f32.mrb[0].mxu0
        %521 = vmatprep.mubr.f32.mxu0 0.0
        %522 = vmatmul.mubr.f32.gmra.mrb[0].mxu0 %v330
        %v523 = vpop.f32.mrb[0].mxu0
        %v524 = vadd.f32 %v284, %v523
        %v525 = vpop.f32.mrb[0].mxu0
        %526 = vmatprep.mubr.f32.mxu0 0.0
        %527 = vmatmul.mubr.f32.gmra.mrb[0].mxu0 %v333
        %v528 = vpop.f32.mrb[0].mxu0
        %v529 = vadd.f32 %v284, %v528
        %v530 = vpop.f32.mrb[0].mxu0
        %531 = vmatprep.mubr.f32.mxu0 0.0
        %532 = vmatmul.mubr.f32.gmra.mrb[0].mxu0 %v336
        %v533 = vpop.f32.mrb[0].mxu0
        %v534 = vadd.f32 %v284, %v533
        %v535 = vpop.f32.mrb[0].mxu0
        %536 = vmatprep.mubr.f32.mxu0 0.0
        %537 = vmatmul.mubr.f32.gmra.mrb[0].mxu0 %v339
        %v538 = vpop.f32.mrb[0].mxu0
        %v539 = vadd.f32 %v284, %v538
        %v540 = vpop.f32.mrb[0].mxu0
        %541 = vmatprep.mubr.f32.mxu0 0.0
        %542 = vmatmul.mubr.f32.gmra.mrb[0].mxu0 %v342
        %v543 = vpop.f32.mrb[0].mxu0
        %v544 = vadd.f32 %v284, %v543
        %v545 = vpop.f32.mrb[0].mxu0
        %546 = vmatprep.mubr.f32.mxu0 0.0
        %547 = vmatmul.mubr.f32.gmra.mrb[0].mxu0 %v345
        %v548 = vpop.f32.mrb[0].mxu0
        %v549 = vadd.f32 %v284, %v548
        %v550 = vpop.f32.mrb[0].mxu0
        %551 = vmatprep.mubr.f32.mxu0 0.0
        %552 = vmatmul.mubr.f32.gmra.mrb[0].mxu0 %v348
        %v553 = vpop.f32.mrb[0].mxu0
        %v554 = vadd.f32 %v284, %v553
        %v555 = vpop.f32.mrb[0].mxu0
        %556 = vmatprep.mubr.f32.mxu0 0.0
        %557 = vmatmul.mubr.f32.gmra.mrb[0].mxu0 %v351
        %v558 = vpop.f32.mrb[0].mxu0
        %v559 = vadd.f32 %v284, %v558
        %v560 = vpop.f32.mrb[0].mxu0
        %561 = vmatprep.mubr.f32.mxu0 0.0
        %562 = vmatmul.mubr.f32.gmra.mrb[0].mxu0 %v354
        %v563 = vpop.f32.mrb[0].mxu0
        %v564 = vadd.f32 %v284, %v563
        %v565 = vpop.f32.mrb[0].mxu0
        %566 = vmatprep.mubr.f32.mxu0 0.0
        %567 = vmatmul.mubr.f32.gmra.mrb[0].mxu0 %v357
        %v568 = vpop.f32.mrb[0].mxu0
        %v569 = vadd.f32 %v284, %v568
        %v570 = vpop.f32.mrb[0].mxu0
        %571 = vmatprep.mubr.f32.mxu0 0.0
        %572 = vmatmul.mubr.f32.gmra.mrb[0].mxu0 %v360
        %v573 = vpop.f32.mrb[0].mxu0
        %v574 = vadd.f32 %v284, %v573
        %v575 = vpop.f32.mrb[0].mxu0
        %576 = vmatprep.mubr.f32.mxu0 0.0
        %577 = vmatmul.mubr.f32.gmra.mrb[0].mxu0 %v363
        %v578 = vpop.f32.mrb[0].mxu0
        %v579 = vadd.f32 %v284, %v578
        %v580 = vpop.f32.mrb[0].mxu0
        %581 = vmatprep.mubr.f32.mxu0 0.0
        %582 = vmatmul.mubr.f32.gmra.mrb[0].mxu0 %v366
        %v583 = vpop.f32.mrb[0].mxu0
        %v584 = vadd.f32 %v284, %v583
        %v585 = vpop.f32.mrb[0].mxu0
        %586 = vmatprep.mubr.f32.mxu0 0.0
        %587 = vmatmul.mubr.f32.gmra.mrb[0].mxu0 %v369
        %v588 = vpop.f32.mrb[0].mxu0
        %v589 = vadd.f32 %v284, %v588
        %v590 = vpop.f32.mrb[0].mxu0
        %591 = vmatprep.mubr.f32.mxu0 0.0
        %592 = vmatmul.mubr.f32.gmra.mrb[0].mxu0 %v372
        %v593 = vpop.f32.mrb[0].mxu0
        %v594 = vadd.f32 %v284, %v593
        %v595 = vpop.f32.mrb[0].mxu0
        %596 = vmatprep.mubr.f32.mxu0 0.0
        %597 = vmatmul.mubr.f32.gmra.mrb[0].mxu0 %v375
        %v598 = vpop.f32.mrb[0].mxu0
        %v599 = vadd.f32 %v284, %v598
        %v600 = vpop.f32.mrb[0].mxu0
        %601 = vmatprep.mubr.f32.mxu0 0.0
        %602 = vmatmul.mubr.f32.gmra.mrb[0].mxu0 %v378
        %v603 = vpop.f32.mrb[0].mxu0
        %v604 = vadd.f32 %v284, %v603
        %v605 = vpop.f32.mrb[0].mxu0
        %606 = vmatprep.mubr.f32.mxu0 0.0
        %607 = vmatmul.mubr.f32.gmra.mrb[0].mxu0 %v381
        %v608 = vpop.f32.mrb[0].mxu0
        %v609 = vadd.f32 %v284, %v608
        %v610 = vpop.f32.mrb[0].mxu0
        %611 = vdwg.mxu0
        %v612 = vlaneseq
        %v613 = vand.u32 %v612, 127
        %v614 = vld [vmem:[#allocation2] sm:$0xff]
        %v615 = vld [vmem:[#allocation2 + $0x8] sm:$0x3]
        %v616 = vlaneseq
        %v617 = vshrl.u32 %v616, 7
        %v618 = vsub.s32 0, %v617
        %v619 = vrot.slane %v614, %v618
        %v620 = vadd.f32 %v243, %v619
        %v621 = vadd.f32 %v244, %v619
        %v622 = vadd.f32 %v245, %v619
        %v623 = vadd.f32 %v246, %v619
        %v624 = vadd.f32 %v247, %v619
        %v625 = vadd.f32 %v248, %v619
        %v626 = vadd.f32 %v249, %v619
        %v627 = vadd.f32 %v250, %v619
        %v628 = vadd.f32 %v251, %v619
        %v629 = vadd.f32 %v252, %v619
        %v630 = vadd.f32 %v253, %v619
        %v631 = vadd.f32 %v254, %v619
        %v632 = vadd.f32 %v255, %v619
        %v633 = vadd.f32 %v256, %v619
        %v634 = vadd.f32 %v257, %v619
        %v635 = vadd.f32 %v258, %v619
        %v636 = vadd.f32 %v259, %v619
        %v637 = vadd.f32 %v260, %v619
        %v638 = vadd.f32 %v261, %v619
        %v639 = vadd.f32 %v262, %v619
        %v640 = vadd.f32 %v263, %v619
        %v641 = vadd.f32 %v264, %v619
        %v642 = vadd.f32 %v265, %v619
        %v643 = vadd.f32 %v266, %v619
        %v644 = vadd.f32 %v267, %v619
        %v645 = vadd.f32 %v268, %v619
        %v646 = vadd.f32 %v269, %v619
        %v647 = vadd.f32 %v270, %v619
        %v648 = vadd.f32 %v271, %v619
        %v649 = vadd.f32 %v272, %v619
        %v650 = vadd.f32 %v273, %v619
        %v651 = vadd.f32 %v274, %v619
        %v652 = vsel %vm286, %v620, -inf
        %653 = vmax.xlane.f32.xlu0 %v652
        %v654 = vpop.xlane.xlu0 %653
        %v655 = vsel %vm286, %v621, -inf
        %656 = vmax.xlane.f32.xlu0 %v655
        %v657 = vpop.xlane.xlu0 %656
        %v658 = vsel %vm286, %v622, -inf
        %659 = vmax.xlane.f32.xlu0 %v658
        %v660 = vpop.xlane.xlu0 %659
        %v661 = vsel %vm286, %v623, -inf
        %662 = vmax.xlane.f32.xlu0 %v661
        %v663 = vpop.xlane.xlu0 %662
        %v664 = vsel %vm286, %v624, -inf
        %665 = vmax.xlane.f32.xlu0 %v664
        %v666 = vpop.xlane.xlu0 %665
        %v667 = vsel %vm286, %v625, -inf
        %668 = vmax.xlane.f32.xlu0 %v667
        %v669 = vpop.xlane.xlu0 %668
        %v670 = vsel %vm286, %v626, -inf
        %671 = vmax.xlane.f32.xlu0 %v670
        %v672 = vpop.xlane.xlu0 %671
        %v673 = vsel %vm286, %v627, -inf
        %674 = vmax.xlane.f32.xlu0 %v673
        %v675 = vpop.xlane.xlu0 %674
        %v676 = vsel %vm286, %v628, -inf
        %677 = vmax.xlane.f32.xlu0 %v676
        %v678 = vpop.xlane.xlu0 %677
        %v679 = vsel %vm286, %v629, -inf
        %680 = vmax.xlane.f32.xlu0 %v679
        %v681 = vpop.xlane.xlu0 %680
        %v682 = vsel %vm286, %v630, -inf
        %683 = vmax.xlane.f32.xlu0 %v682
        %v684 = vpop.xlane.xlu0 %683
        %v685 = vsel %vm286, %v631, -inf
        %686 = vmax.xlane.f32.xlu0 %v685
        %v687 = vpop.xlane.xlu0 %686
        %v688 = vsel %vm286, %v632, -inf
        %689 = vmax.xlane.f32.xlu0 %v688
        %v690 = vpop.xlane.xlu0 %689
        %v691 = vsel %vm286, %v633, -inf
        %692 = vmax.xlane.f32.xlu0 %v691
        %v693 = vpop.xlane.xlu0 %692
        %v694 = vsel %vm286, %v634, -inf
        %695 = vmax.xlane.f32.xlu0 %v694
        %v696 = vpop.xlane.xlu0 %695
        %v697 = vsel %vm286, %v635, -inf
        %698 = vmax.xlane.f32.xlu0 %v697
        %v699 = vpop.xlane.xlu0 %698
        %v700 = vsel %vm286, %v636, -inf
        %701 = vmax.xlane.f32.xlu0 %v700
        %v702 = vpop.xlane.xlu0 %701
        %v703 = vsel %vm286, %v637, -inf
        %704 = vmax.xlane.f32.xlu0 %v703
        %v705 = vpop.xlane.xlu0 %704
        %v706 = vsel %vm286, %v638, -inf
        %707 = vmax.xlane.f32.xlu0 %v706
        %v708 = vpop.xlane.xlu0 %707
        %v709 = vsel %vm286, %v639, -inf
        %710 = vmax.xlane.f32.xlu0 %v709
        %v711 = vpop.xlane.xlu0 %710
        %v712 = vsel %vm286, %v640, -inf
        %713 = vmax.xlane.f32.xlu0 %v712
        %v714 = vpop.xlane.xlu0 %713
        %v715 = vsel %vm286, %v641, -inf
        %716 = vmax.xlane.f32.xlu0 %v715
        %v717 = vpop.xlane.xlu0 %716
        %v718 = vsel %vm286, %v642, -inf
        %719 = vmax.xlane.f32.xlu0 %v718
        %v720 = vpop.xlane.xlu0 %719
        %v721 = vsel %vm286, %v643, -inf
        %722 = vmax.xlane.f32.xlu0 %v721
        %v723 = vpop.xlane.xlu0 %722
        %v724 = vsel %vm286, %v644, -inf
        %725 = vmax.xlane.f32.xlu0 %v724
        %v726 = vpop.xlane.xlu0 %725
        %v727 = vsel %vm286, %v645, -inf
        %728 = vmax.xlane.f32.xlu0 %v727
        %v729 = vpop.xlane.xlu0 %728
        %v730 = vsel %vm286, %v646, -inf
        %731 = vmax.xlane.f32.xlu0 %v730
        %v732 = vpop.xlane.xlu0 %731
        %v733 = vsel %vm286, %v647, -inf
        %734 = vmax.xlane.f32.xlu0 %v733
        %v735 = vpop.xlane.xlu0 %734
        %v736 = vsel %vm286, %v648, -inf
        %737 = vmax.xlane.f32.xlu0 %v736
        %v738 = vpop.xlane.xlu0 %737
        %v739 = vsel %vm286, %v649, -inf
        %740 = vmax.xlane.f32.xlu0 %v739
        %v741 = vpop.xlane.xlu0 %740
        %v742 = vsel %vm286, %v650, -inf
        %743 = vmax.xlane.f32.xlu0 %v742
        %v744 = vpop.xlane.xlu0 %743
        %v745 = vsel %vm286, %v651, -inf
        %746 = vmax.xlane.f32.xlu0 %v745
        %v747 = vpop.xlane.xlu0 %746
        %vm748 = vcmp.eq.s32.totalorder %v613, 0
        %v749 = vsel %vm748, %v654, %v454
        %v750 = vsel %vm748, %v657, %v459
        %v751 = vsel %vm748, %v660, %v464
        %v752 = vsel %vm748, %v663, %v469
        %v753 = vsel %vm748, %v666, %v474
        %v754 = vsel %vm748, %v669, %v479
        %v755 = vsel %vm748, %v672, %v484
        %v756 = vsel %vm748, %v675, %v489
        %v757 = vsel %vm748, %v678, %v494
        %v758 = vsel %vm748, %v681, %v499
        %v759 = vsel %vm748, %v684, %v504
        %v760 = vsel %vm748, %v687, %v509
        %v761 = vsel %vm748, %v690, %v514
        %v762 = vsel %vm748, %v693, %v519
        %v763 = vsel %vm748, %v696, %v524
        %v764 = vsel %vm748, %v699, %v529
        %v765 = vsel %vm748, %v702, %v534
        %v766 = vsel %vm748, %v705, %v539
        %v767 = vsel %vm748, %v708, %v544
        %v768 = vsel %vm748, %v711, %v549
        %v769 = vsel %vm748, %v714, %v554
        %v770 = vsel %vm748, %v717, %v559
        %v771 = vsel %vm748, %v720, %v564
        %v772 = vsel %vm748, %v723, %v569
        %v773 = vsel %vm748, %v726, %v574
        %v774 = vsel %vm748, %v729, %v579
        %v775 = vsel %vm748, %v732, %v584
        %v776 = vsel %vm748, %v735, %v589
        %v777 = vsel %vm748, %v738, %v594
        %v778 = vsel %vm748, %v741, %v599
        %v779 = vsel %vm748, %v744, %v604
        %v780 = vsel %vm748, %v747, %v609
        %v781 = vlaneseq
        %v782 = vshrl.u32 %v781, 7
        %v783 = vsub.s32 1, %v782
        %v784 = vrot.slane %v614, %v783
        %v785 = vadd.f32 %v243, %v784
        %v786 = vadd.f32 %v244, %v784
        %v787 = vadd.f32 %v245, %v784
        %v788 = vadd.f32 %v246, %v784
        %v789 = vadd.f32 %v247, %v784
        %v790 = vadd.f32 %v248, %v784
        %v791 = vadd.f32 %v249, %v784
        %v792 = vadd.f32 %v250, %v784
        %v793 = vadd.f32 %v251, %v784
        %v794 = vadd.f32 %v252, %v784
        %v795 = vadd.f32 %v253, %v784
        %v796 = vadd.f32 %v254, %v784
        %v797 = vadd.f32 %v255, %v784
        %v798 = vadd.f32 %v256, %v784
        %v799 = vadd.f32 %v257, %v784
        %v800 = vadd.f32 %v258, %v784
        %v801 = vadd.f32 %v259, %v784
        %v802 = vadd.f32 %v260, %v784
        %v803 = vadd.f32 %v261, %v784
        %v804 = vadd.f32 %v262, %v784
        %v805 = vadd.f32 %v263, %v784
        %v806 = vadd.f32 %v264, %v784
        %v807 = vadd.f32 %v265, %v784
        %v808 = vadd.f32 %v266, %v784
        %v809 = vadd.f32 %v267, %v784
        %v810 = vadd.f32 %v268, %v784
        %v811 = vadd.f32 %v269, %v784
        %v812 = vadd.f32 %v270, %v784
        %v813 = vadd.f32 %v271, %v784
        %v814 = vadd.f32 %v272, %v784
        %v815 = vadd.f32 %v273, %v784
        %v816 = vadd.f32 %v274, %v784
        %v817 = vsel %vm286, %v785, -inf
        %818 = vmax.xlane.f32.xlu0 %v817
        %v819 = vpop.xlane.xlu0 %818
        %v820 = vsel %vm286, %v786, -inf
        %821 = vmax.xlane.f32.xlu0 %v820
        %v822 = vpop.xlane.xlu0 %821
        %v823 = vsel %vm286, %v787, -inf
        %824 = vmax.xlane.f32.xlu0 %v823
        %v825 = vpop.xlane.xlu0 %824
        %v826 = vsel %vm286, %v788, -inf
        %827 = vmax.xlane.f32.xlu0 %v826
        %v828 = vpop.xlane.xlu0 %827
        %v829 = vsel %vm286, %v789, -inf
        %830 = vmax.xlane.f32.xlu0 %v829
        %v831 = vpop.xlane.xlu0 %830
        %v832 = vsel %vm286, %v790, -inf
        %833 = vmax.xlane.f32.xlu0 %v832
        %v834 = vpop.xlane.xlu0 %833
        %v835 = vsel %vm286, %v791, -inf
        %836 = vmax.xlane.f32.xlu0 %v835
        %v837 = vpop.xlane.xlu0 %836
        %v838 = vsel %vm286, %v792, -inf
        %839 = vmax.xlane.f32.xlu0 %v838
        %v840 = vpop.xlane.xlu0 %839
        %v841 = vsel %vm286, %v793, -inf
        %842 = vmax.xlane.f32.xlu0 %v841
        %v843 = vpop.xlane.xlu0 %842
        %v844 = vsel %vm286, %v794, -inf
        %845 = vmax.xlane.f32.xlu0 %v844
        %v846 = vpop.xlane.xlu0 %845
        %v847 = vsel %vm286, %v795, -inf
        %848 = vmax.xlane.f32.xlu0 %v847
        %v849 = vpop.xlane.xlu0 %848
        %v850 = vsel %vm286, %v796, -inf
        %851 = vmax.xlane.f32.xlu0 %v850
        %v852 = vpop.xlane.xlu0 %851
        %v853 = vsel %vm286, %v797, -inf
        %854 = vmax.xlane.f32.xlu0 %v853
        %v855 = vpop.xlane.xlu0 %854
        %v856 = vsel %vm286, %v798, -inf
        %857 = vmax.xlane.f32.xlu0 %v856
        %v858 = vpop.xlane.xlu0 %857
        %v859 = vsel %vm286, %v799, -inf
        %860 = vmax.xlane.f32.xlu0 %v859
        %v861 = vpop.xlane.xlu0 %860
        %v862 = vsel %vm286, %v800, -inf
        %863 = vmax.xlane.f32.xlu0 %v862
        %v864 = vpop.xlane.xlu0 %863
        %v865 = vsel %vm286, %v801, -inf
        %866 = vmax.xlane.f32.xlu0 %v865
        %v867 = vpop.xlane.xlu0 %866
        %v868 = vsel %vm286, %v802, -inf
        %869 = vmax.xlane.f32.xlu0 %v868
        %v870 = vpop.xlane.xlu0 %869
        %v871 = vsel %vm286, %v803, -inf
        %872 = vmax.xlane.f32.xlu0 %v871
        %v873 = vpop.xlane.xlu0 %872
        %v874 = vsel %vm286, %v804, -inf
        %875 = vmax.xlane.f32.xlu0 %v874
        %v876 = vpop.xlane.xlu0 %875
        %v877 = vsel %vm286, %v805, -inf
        %878 = vmax.xlane.f32.xlu0 %v877
        %v879 = vpop.xlane.xlu0 %878
        %v880 = vsel %vm286, %v806, -inf
        %881 = vmax.xlane.f32.xlu0 %v880
        %v882 = vpop.xlane.xlu0 %881
        %v883 = vsel %vm286, %v807, -inf
        %884 = vmax.xlane.f32.xlu0 %v883
        %v885 = vpop.xlane.xlu0 %884
        %v886 = vsel %vm286, %v808, -inf
        %887 = vmax.xlane.f32.xlu0 %v886
        %v888 = vpop.xlane.xlu0 %887
        %v889 = vsel %vm286, %v809, -inf
        %890 = vmax.xlane.f32.xlu0 %v889
        %v891 = vpop.xlane.xlu0 %890
        %v892 = vsel %vm286, %v810, -inf
        %893 = vmax.xlane.f32.xlu0 %v892
        %v894 = vpop.xlane.xlu0 %893
        %v895 = vsel %vm286, %v811, -inf
        %896 = vmax.xlane.f32.xlu0 %v895
        %v897 = vpop.xlane.xlu0 %896
        %v898 = vsel %vm286, %v812, -inf
        %899 = vmax.xlane.f32.xlu0 %v898
        %v900 = vpop.xlane.xlu0 %899
        %v901 = vsel %vm286, %v813, -inf
        %902 = vmax.xlane.f32.xlu0 %v901
        %v903 = vpop.xlane.xlu0 %902
        %v904 = vsel %vm286, %v814, -inf
        %905 = vmax.xlane.f32.xlu0 %v904
        %v906 = vpop.xlane.xlu0 %905
        %v907 = vsel %vm286, %v815, -inf
        %908 = vmax.xlane.f32.xlu0 %v907
        %v909 = vpop.xlane.xlu0 %908
        %v910 = vsel %vm286, %v816, -inf
        %911 = vmax.xlane.f32.xlu0 %v910
        %v912 = vpop.xlane.xlu0 %911
        %vm913 = vcmp.eq.s32.totalorder %v613, 1
        %v914 = vsel %vm913, %v819, %v749
        %v915 = vsel %vm913, %v822, %v750
        %v916 = vsel %vm913, %v825, %v751
        %v917 = vsel %vm913, %v828, %v752
        %v918 = vsel %vm913, %v831, %v753
        %v919 = vsel %vm913, %v834, %v754
        %v920 = vsel %vm913, %v837, %v755
        %v921 = vsel %vm913, %v840, %v756
        %v922 = vsel %vm913, %v843, %v757
        %v923 = vsel %vm913, %v846, %v758
        %v924 = vsel %vm913, %v849, %v759
        %v925 = vsel %vm913, %v852, %v760
        %v926 = vsel %vm913, %v855, %v761
        %v927 = vsel %vm913, %v858, %v762
        %v928 = vsel %vm913, %v861, %v763
        %v929 = vsel %vm913, %v864, %v764
        %v930 = vsel %vm913, %v867, %v765
        %v931 = vsel %vm913, %v870, %v766
        %v932 = vsel %vm913, %v873, %v767
        %v933 = vsel %vm913, %v876, %v768
        %v934 = vsel %vm913, %v879, %v769
        %v935 = vsel %vm913, %v882, %v770
        %v936 = vsel %vm913, %v885, %v771
        %v937 = vsel %vm913, %v888, %v772
        %v938 = vsel %vm913, %v891, %v773
        %v939 = vsel %vm913, %v894, %v774
        %v940 = vsel %vm913, %v897, %v775
        %v941 = vsel %vm913, %v900, %v776
        %v942 = vsel %vm913, %v903, %v777
        %v943 = vsel %vm913, %v906, %v778
        %v944 = vsel %vm913, %v909, %v779
        %v945 = vsel %vm913, %v912, %v780
        %v946 = vlaneseq
        %v947 = vshrl.u32 %v946, 7
        %v948 = vsub.s32 2, %v947
        %v949 = vrot.slane %v614, %v948
        %v950 = vadd.f32 %v243, %v949
        %v951 = vadd.f32 %v244, %v949
        %v952 = vadd.f32 %v245, %v949
        %v953 = vadd.f32 %v246, %v949
        %v954 = vadd.f32 %v247, %v949
        %v955 = vadd.f32 %v248, %v949
        %v956 = vadd.f32 %v249, %v949
        %v957 = vadd.f32 %v250, %v949
        %v958 = vadd.f32 %v251, %v949
        %v959 = vadd.f32 %v252, %v949
        %v960 = vadd.f32 %v253, %v949
        %v961 = vadd.f32 %v254, %v949
        %v962 = vadd.f32 %v255, %v949
        %v963 = vadd.f32 %v256, %v949
        %v964 = vadd.f32 %v257, %v949
        %v965 = vadd.f32 %v258, %v949
        %v966 = vadd.f32 %v259, %v949
        %v967 = vadd.f32 %v260, %v949
        %v968 = vadd.f32 %v261, %v949
        %v969 = vadd.f32 %v262, %v949
        %v970 = vadd.f32 %v263, %v949
        %v971 = vadd.f32 %v264, %v949
        %v972 = vadd.f32 %v265, %v949
        %v973 = vadd.f32 %v266, %v949
        %v974 = vadd.f32 %v267, %v949
        %v975 = vadd.f32 %v268, %v949
        %v976 = vadd.f32 %v269, %v949
        %v977 = vadd.f32 %v270, %v949
        %v978 = vadd.f32 %v271, %v949
        %v979 = vadd.f32 %v272, %v949
        %v980 = vadd.f32 %v273, %v949
        %v981 = vadd.f32 %v274, %v949
        %v982 = vsel %vm286, %v950, -inf
        %983 = vmax.xlane.f32.xlu0 %v982
        %v984 = vpop.xlane.xlu0 %983
        %v985 = vsel %vm286, %v951, -inf
        %986 = vmax.xlane.f32.xlu0 %v985
        %v987 = vpop.xlane.xlu0 %986
        %v988 = vsel %vm286, %v952, -inf
        %989 = vmax.xlane.f32.xlu0 %v988
        %v990 = vpop.xlane.xlu0 %989
        %v991 = vsel %vm286, %v953, -inf
        %992 = vmax.xlane.f32.xlu0 %v991
        %v993 = vpop.xlane.xlu0 %992
        %v994 = vsel %vm286, %v954, -inf
        %995 = vmax.xlane.f32.xlu0 %v994
        %v996 = vpop.xlane.xlu0 %995
        %v997 = vsel %vm286, %v955, -inf
        %998 = vmax.xlane.f32.xlu0 %v997
        %v999 = vpop.xlane.xlu0 %998
        %v1000 = vsel %vm286, %v956, -inf
        %1001 = vmax.xlane.f32.xlu0 %v1000
        %v1002 = vpop.xlane.xlu0 %1001
        %v1003 = vsel %vm286, %v957, -inf
        %1004 = vmax.xlane.f32.xlu0 %v1003
        %v1005 = vpop.xlane.xlu0 %1004
        %v1006 = vsel %vm286, %v958, -inf
        %1007 = vmax.xlane.f32.xlu0 %v1006
        %v1008 = vpop.xlane.xlu0 %1007
        %v1009 = vsel %vm286, %v959, -inf
        %1010 = vmax.xlane.f32.xlu0 %v1009
        %v1011 = vpop.xlane.xlu0 %1010
        %v1012 = vsel %vm286, %v960, -inf
        %1013 = vmax.xlane.f32.xlu0 %v1012
        %v1014 = vpop.xlane.xlu0 %1013
        %v1015 = vsel %vm286, %v961, -inf
        %1016 = vmax.xlane.f32.xlu0 %v1015
        %v1017 = vpop.xlane.xlu0 %1016
        %v1018 = vsel %vm286, %v962, -inf
        %1019 = vmax.xlane.f32.xlu0 %v1018
        %v1020 = vpop.xlane.xlu0 %1019
        %v1021 = vsel %vm286, %v963, -inf
        %1022 = vmax.xlane.f32.xlu0 %v1021
        %v1023 = vpop.xlane.xlu0 %1022
        %v1024 = vsel %vm286, %v964, -inf
        %1025 = vmax.xlane.f32.xlu0 %v1024
        %v1026 = vpop.xlane.xlu0 %1025
        %v1027 = vsel %vm286, %v965, -inf
        %1028 = vmax.xlane.f32.xlu0 %v1027
        %v1029 = vpop.xlane.xlu0 %1028
        %v1030 = vsel %vm286, %v966, -inf
        %1031 = vmax.xlane.f32.xlu0 %v1030
        %v1032 = vpop.xlane.xlu0 %1031
        %v1033 = vsel %vm286, %v967, -inf
        %1034 = vmax.xlane.f32.xlu0 %v1033
        %v1035 = vpop.xlane.xlu0 %1034
        %v1036 = vsel %vm286, %v968, -inf
        %1037 = vmax.xlane.f32.xlu0 %v1036
        %v1038 = vpop.xlane.xlu0 %1037
        %v1039 = vsel %vm286, %v969, -inf
        %1040 = vmax.xlane.f32.xlu0 %v1039
        %v1041 = vpop.xlane.xlu0 %1040
        %v1042 = vsel %vm286, %v970, -inf
        %1043 = vmax.xlane.f32.xlu0 %v1042
        %v1044 = vpop.xlane.xlu0 %1043
        %v1045 = vsel %vm286, %v971, -inf
        %1046 = vmax.xlane.f32.xlu0 %v1045
        %v1047 = vpop.xlane.xlu0 %1046
        %v1048 = vsel %vm286, %v972, -inf
        %1049 = vmax.xlane.f32.xlu0 %v1048
        %v1050 = vpop.xlane.xlu0 %1049
        %v1051 = vsel %vm286, %v973, -inf
        %1052 = vmax.xlane.f32.xlu0 %v1051
        %v1053 = vpop.xlane.xlu0 %1052
        %v1054 = vsel %vm286, %v974, -inf
        %1055 = vmax.xlane.f32.xlu0 %v1054
        %v1056 = vpop.xlane.xlu0 %1055
        %v1057 = vsel %vm286, %v975, -inf
        %1058 = vmax.xlane.f32.xlu0 %v1057
        %v1059 = vpop.xlane.xlu0 %1058
        %v1060 = vsel %vm286, %v976, -inf
        %1061 = vmax.xlane.f32.xlu0 %v1060
        %v1062 = vpop.xlane.xlu0 %1061
        %v1063 = vsel %vm286, %v977, -inf
        %1064 = vmax.xlane.f32.xlu0 %v1063
        %v1065 = vpop.xlane.xlu0 %1064
        %v1066 = vsel %vm286, %v978, -inf
        %1067 = vmax.xlane.f32.xlu0 %v1066
        %v1068 = vpop.xlane.xlu0 %1067
        %v1069 = vsel %vm286, %v979, -inf
        %1070 = vmax.xlane.f32.xlu0 %v1069
        %v1071 = vpop.xlane.xlu0 %1070
        %v1072 = vsel %vm286, %v980, -inf
        %1073 = vmax.xlane.f32.xlu0 %v1072
        %v1074 = vpop.xlane.xlu0 %1073
        %v1075 = vsel %vm286, %v981, -inf
        %1076 = vmax.xlane.f32.xlu0 %v1075
        %v1077 = vpop.xlane.xlu0 %1076
        %vm1078 = vcmp.eq.s32.totalorder %v613, 2
        %v1079 = vsel %vm1078, %v984, %v914
        %v1080 = vsel %vm1078, %v987, %v915
        %v1081 = vsel %vm1078, %v990, %v916
        %v1082 = vsel %vm1078, %v993, %v917
        %v1083 = vsel %vm1078, %v996, %v918
        %v1084 = vsel %vm1078, %v999, %v919
        %v1085 = vsel %vm1078, %v1002, %v920
        %v1086 = vsel %vm1078, %v1005, %v921
        %v1087 = vsel %vm1078, %v1008, %v922
        %v1088 = vsel %vm1078, %v1011, %v923
        %v1089 = vsel %vm1078, %v1014, %v924
        %v1090 = vsel %vm1078, %v1017, %v925
        %v1091 = vsel %vm1078, %v1020, %v926
        %v1092 = vsel %vm1078, %v1023, %v927
        %v1093 = vsel %vm1078, %v1026, %v928
        %v1094 = vsel %vm1078, %v1029, %v929
        %v1095 = vsel %vm1078, %v1032, %v930
        %v1096 = vsel %vm1078, %v1035, %v931
        %v1097 = vsel %vm1078, %v1038, %v932
        %v1098 = vsel %vm1078, %v1041, %v933
        %v1099 = vsel %vm1078, %v1044, %v934
        %v1100 = vsel %vm1078, %v1047, %v935
        %v1101 = vsel %vm1078, %v1050, %v936
        %v1102 = vsel %vm1078, %v1053, %v937
        %v1103 = vsel %vm1078, %v1056, %v938
        %v1104 = vsel %vm1078, %v1059, %v939
        %v1105 = vsel %vm1078, %v1062, %v940
        %v1106 = vsel %vm1078, %v1065, %v941
        %v1107 = vsel %vm1078, %v1068, %v942
        %v1108 = vsel %vm1078, %v1071, %v943
        %v1109 = vsel %vm1078, %v1074, %v944
        %v1110 = vsel %vm1078, %v1077, %v945
        %v1111 = vlaneseq
        %v1112 = vshrl.u32 %v1111, 7
        %v1113 = vsub.s32 3, %v1112
        %v1114 = vrot.slane %v614, %v1113
        %v1115 = vadd.f32 %v243, %v1114
        %v1116 = vadd.f32 %v244, %v1114
        %v1117 = vadd.f32 %v245, %v1114
        %v1118 = vadd.f32 %v246, %v1114
        %v1119 = vadd.f32 %v247, %v1114
        %v1120 = vadd.f32 %v248, %v1114
        %v1121 = vadd.f32 %v249, %v1114
        %v1122 = vadd.f32 %v250, %v1114
        %v1123 = vadd.f32 %v251, %v1114
        %v1124 = vadd.f32 %v252, %v1114
        %v1125 = vadd.f32 %v253, %v1114
        %v1126 = vadd.f32 %v254, %v1114
        %v1127 = vadd.f32 %v255, %v1114
        %v1128 = vadd.f32 %v256, %v1114
        %v1129 = vadd.f32 %v257, %v1114
        %v1130 = vadd.f32 %v258, %v1114
        %v1131 = vadd.f32 %v259, %v1114
        %v1132 = vadd.f32 %v260, %v1114
        %v1133 = vadd.f32 %v261, %v1114
        %v1134 = vadd.f32 %v262, %v1114
        %v1135 = vadd.f32 %v263, %v1114
        %v1136 = vadd.f32 %v264, %v1114
        %v1137 = vadd.f32 %v265, %v1114
        %v1138 = vadd.f32 %v266, %v1114
        %v1139 = vadd.f32 %v267, %v1114
        %v1140 = vadd.f32 %v268, %v1114
        %v1141 = vadd.f32 %v269, %v1114
        %v1142 = vadd.f32 %v270, %v1114
        %v1143 = vadd.f32 %v271, %v1114
        %v1144 = vadd.f32 %v272, %v1114
        %v1145 = vadd.f32 %v273, %v1114
        %v1146 = vadd.f32 %v274, %v1114
        %v1147 = vsel %vm286, %v1115, -inf
        %1148 = vmax.xlane.f32.xlu0 %v1147
        %v1149 = vpop.xlane.xlu0 %1148
        %v1150 = vsel %vm286, %v1116, -inf
        %1151 = vmax.xlane.f32.xlu0 %v1150
        %v1152 = vpop.xlane.xlu0 %1151
        %v1153 = vsel %vm286, %v1117, -inf
        %1154 = vmax.xlane.f32.xlu0 %v1153
        %v1155 = vpop.xlane.xlu0 %1154
        %v1156 = vsel %vm286, %v1118, -inf
        %1157 = vmax.xlane.f32.xlu0 %v1156
        %v1158 = vpop.xlane.xlu0 %1157
        %v1159 = vsel %vm286, %v1119, -inf
        %1160 = vmax.xlane.f32.xlu0 %v1159
        %v1161 = vpop.xlane.xlu0 %1160
        %v1162 = vsel %vm286, %v1120, -inf
        %1163 = vmax.xlane.f32.xlu0 %v1162
        %v1164 = vpop.xlane.xlu0 %1163
        %v1165 = vsel %vm286, %v1121, -inf
        %1166 = vmax.xlane.f32.xlu0 %v1165
        %v1167 = vpop.xlane.xlu0 %1166
        %v1168 = vsel %vm286, %v1122, -inf
        %1169 = vmax.xlane.f32.xlu0 %v1168
        %v1170 = vpop.xlane.xlu0 %1169
        %v1171 = vsel %vm286, %v1123, -inf
        %1172 = vmax.xlane.f32.xlu0 %v1171
        %v1173 = vpop.xlane.xlu0 %1172
        %v1174 = vsel %vm286, %v1124, -inf
        %1175 = vmax.xlane.f32.xlu0 %v1174
        %v1176 = vpop.xlane.xlu0 %1175
        %v1177 = vsel %vm286, %v1125, -inf
        %1178 = vmax.xlane.f32.xlu0 %v1177
        %v1179 = vpop.xlane.xlu0 %1178
        %v1180 = vsel %vm286, %v1126, -inf
        %1181 = vmax.xlane.f32.xlu0 %v1180
        %v1182 = vpop.xlane.xlu0 %1181
        %v1183 = vsel %vm286, %v1127, -inf
        %1184 = vmax.xlane.f32.xlu0 %v1183
        %v1185 = vpop.xlane.xlu0 %1184
        %v1186 = vsel %vm286, %v1128, -inf
        %1187 = vmax.xlane.f32.xlu0 %v1186
        %v1188 = vpop.xlane.xlu0 %1187
        %v1189 = vsel %vm286, %v1129, -inf
        %1190 = vmax.xlane.f32.xlu0 %v1189
        %v1191 = vpop.xlane.xlu0 %1190
        %v1192 = vsel %vm286, %v1130, -inf
        %1193 = vmax.xlane.f32.xlu0 %v1192
        %v1194 = vpop.xlane.xlu0 %1193
        %v1195 = vsel %vm286, %v1131, -inf
        %1196 = vmax.xlane.f32.xlu0 %v1195
        %v1197 = vpop.xlane.xlu0 %1196
        %v1198 = vsel %vm286, %v1132, -inf
        %1199 = vmax.xlane.f32.xlu0 %v1198
        %v1200 = vpop.xlane.xlu0 %1199
        %v1201 = vsel %vm286, %v1133, -inf
        %1202 = vmax.xlane.f32.xlu0 %v1201
        %v1203 = vpop.xlane.xlu0 %1202
        %v1204 = vsel %vm286, %v1134, -inf
        %1205 = vmax.xlane.f32.xlu0 %v1204
        %v1206 = vpop.xlane.xlu0 %1205
        %v1207 = vsel %vm286, %v1135, -inf
        %1208 = vmax.xlane.f32.xlu0 %v1207
        %v1209 = vpop.xlane.xlu0 %1208
        %v1210 = vsel %vm286, %v1136, -inf
        %1211 = vmax.xlane.f32.xlu0 %v1210
        %v1212 = vpop.xlane.xlu0 %1211
        %v1213 = vsel %vm286, %v1137, -inf
        %1214 = vmax.xlane.f32.xlu0 %v1213
        %v1215 = vpop.xlane.xlu0 %1214
        %v1216 = vsel %vm286, %v1138, -inf
        %1217 = vmax.xlane.f32.xlu0 %v1216
        %v1218 = vpop.xlane.xlu0 %1217
        %v1219 = vsel %vm286, %v1139, -inf
        %1220 = vmax.xlane.f32.xlu0 %v1219
        %v1221 = vpop.xlane.xlu0 %1220
        %v1222 = vsel %vm286, %v1140, -inf
        %1223 = vmax.xlane.f32.xlu0 %v1222
        %v1224 = vpop.xlane.xlu0 %1223
        %v1225 = vsel %vm286, %v1141, -inf
        %1226 = vmax.xlane.f32.xlu0 %v1225
        %v1227 = vpop.xlane.xlu0 %1226
        %v1228 = vsel %vm286, %v1142, -inf
        %1229 = vmax.xlane.f32.xlu0 %v1228
        %v1230 = vpop.xlane.xlu0 %1229
        %v1231 = vsel %vm286, %v1143, -inf
        %1232 = vmax.xlane.f32.xlu0 %v1231
        %v1233 = vpop.xlane.xlu0 %1232
        %v1234 = vsel %vm286, %v1144, -inf
        %1235 = vmax.xlane.f32.xlu0 %v1234
        %v1236 = vpop.xlane.xlu0 %1235
        %v1237 = vsel %vm286, %v1145, -inf
        %1238 = vmax.xlane.f32.xlu0 %v1237
        %v1239 = vpop.xlane.xlu0 %1238
        %v1240 = vsel %vm286, %v1146, -inf
        %1241 = vmax.xlane.f32.xlu0 %v1240
        %v1242 = vpop.xlane.xlu0 %1241
        %vm1243 = vcmp.eq.s32.totalorder %v613, 3
        %v1244 = vsel %vm1243, %v1149, %v1079
        %v1245 = vsel %vm1243, %v1152, %v1080
        %v1246 = vsel %vm1243, %v1155, %v1081
        %v1247 = vsel %vm1243, %v1158, %v1082
        %v1248 = vsel %vm1243, %v1161, %v1083
        %v1249 = vsel %vm1243, %v1164, %v1084
        %v1250 = vsel %vm1243, %v1167, %v1085
        %v1251 = vsel %vm1243, %v1170, %v1086
        %v1252 = vsel %vm1243, %v1173, %v1087
        %v1253 = vsel %vm1243, %v1176, %v1088
        %v1254 = vsel %vm1243, %v1179, %v1089
        %v1255 = vsel %vm1243, %v1182, %v1090
        %v1256 = vsel %vm1243, %v1185, %v1091
        %v1257 = vsel %vm1243, %v1188, %v1092
        %v1258 = vsel %vm1243, %v1191, %v1093
        %v1259 = vsel %vm1243, %v1194, %v1094
        %v1260 = vsel %vm1243, %v1197, %v1095
        %v1261 = vsel %vm1243, %v1200, %v1096
        %v1262 = vsel %vm1243, %v1203, %v1097
        %v1263 = vsel %vm1243, %v1206, %v1098
        %v1264 = vsel %vm1243, %v1209, %v1099
        %v1265 = vsel %vm1243, %v1212, %v1100
        %v1266 = vsel %vm1243, %v1215, %v1101
        %v1267 = vsel %vm1243, %v1218, %v1102
        %v1268 = vsel %vm1243, %v1221, %v1103
        %v1269 = vsel %vm1243, %v1224, %v1104
        %v1270 = vsel %vm1243, %v1227, %v1105
        %v1271 = vsel %vm1243, %v1230, %v1106
        %v1272 = vsel %vm1243, %v1233, %v1107
        %v1273 = vsel %vm1243, %v1236, %v1108
        %v1274 = vsel %vm1243, %v1239, %v1109
        %v1275 = vsel %vm1243, %v1242, %v1110
        %v1276 = vlaneseq
        %v1277 = vshrl.u32 %v1276, 7
        %v1278 = vsub.s32 4, %v1277
        %v1279 = vrot.slane %v614, %v1278
        %v1280 = vadd.f32 %v243, %v1279
        %v1281 = vadd.f32 %v244, %v1279
        %v1282 = vadd.f32 %v245, %v1279
        %v1283 = vadd.f32 %v246, %v1279
        %v1284 = vadd.f32 %v247, %v1279
        %v1285 = vadd.f32 %v248, %v1279
        %v1286 = vadd.f32 %v249, %v1279
        %v1287 = vadd.f32 %v250, %v1279
        %v1288 = vadd.f32 %v251, %v1279
        %v1289 = vadd.f32 %v252, %v1279
        %v1290 = vadd.f32 %v253, %v1279
        %v1291 = vadd.f32 %v254, %v1279
        %v1292 = vadd.f32 %v255, %v1279
        %v1293 = vadd.f32 %v256, %v1279
        %v1294 = vadd.f32 %v257, %v1279
        %v1295 = vadd.f32 %v258, %v1279
        %v1296 = vadd.f32 %v259, %v1279
        %v1297 = vadd.f32 %v260, %v1279
        %v1298 = vadd.f32 %v261, %v1279
        %v1299 = vadd.f32 %v262, %v1279
        %v1300 = vadd.f32 %v263, %v1279
        %v1301 = vadd.f32 %v264, %v1279
        %v1302 = vadd.f32 %v265, %v1279
        %v1303 = vadd.f32 %v266, %v1279
        %v1304 = vadd.f32 %v267, %v1279
        %v1305 = vadd.f32 %v268, %v1279
        %v1306 = vadd.f32 %v269, %v1279
        %v1307 = vadd.f32 %v270, %v1279
        %v1308 = vadd.f32 %v271, %v1279
        %v1309 = vadd.f32 %v272, %v1279
        %v1310 = vadd.f32 %v273, %v1279
        %v1311 = vadd.f32 %v274, %v1279
        %v1312 = vsel %vm286, %v1280, -inf
        %1313 = vmax.xlane.f32.xlu0 %v1312
        %v1314 = vpop.xlane.xlu0 %1313
        %v1315 = vsel %vm286, %v1281, -inf
        %1316 = vmax.xlane.f32.xlu0 %v1315
        %v1317 = vpop.xlane.xlu0 %1316
        %v1318 = vsel %vm286, %v1282, -inf
        %1319 = vmax.xlane.f32.xlu0 %v1318
        %v1320 = vpop.xlane.xlu0 %1319
        %v1321 = vsel %vm286, %v1283, -inf
        %1322 = vmax.xlane.f32.xlu0 %v1321
        %v1323 = vpop.xlane.xlu0 %1322
        %v1324 = vsel %vm286, %v1284, -inf
        %1325 = vmax.xlane.f32.xlu0 %v1324
        %v1326 = vpop.xlane.xlu0 %1325
        %v1327 = vsel %vm286, %v1285, -inf
        %1328 = vmax.xlane.f32.xlu0 %v1327
        %v1329 = vpop.xlane.xlu0 %1328
        %v1330 = vsel %vm286, %v1286, -inf
        %1331 = vmax.xlane.f32.xlu0 %v1330
        %v1332 = vpop.xlane.xlu0 %1331
        %v1333 = vsel %vm286, %v1287, -inf
        %1334 = vmax.xlane.f32.xlu0 %v1333
        %v1335 = vpop.xlane.xlu0 %1334
        %v1336 = vsel %vm286, %v1288, -inf
        %1337 = vmax.xlane.f32.xlu0 %v1336
        %v1338 = vpop.xlane.xlu0 %1337
        %v1339 = vsel %vm286, %v1289, -inf
        %1340 = vmax.xlane.f32.xlu0 %v1339
        %v1341 = vpop.xlane.xlu0 %1340
        %v1342 = vsel %vm286, %v1290, -inf
        %1343 = vmax.xlane.f32.xlu0 %v1342
        %v1344 = vpop.xlane.xlu0 %1343
        %v1345 = vsel %vm286, %v1291, -inf
        %1346 = vmax.xlane.f32.xlu0 %v1345
        %v1347 = vpop.xlane.xlu0 %1346
        %v1348 = vsel %vm286, %v1292, -inf
        %1349 = vmax.xlane.f32.xlu0 %v1348
        %v1350 = vpop.xlane.xlu0 %1349
        %v1351 = vsel %vm286, %v1293, -inf
        %1352 = vmax.xlane.f32.xlu0 %v1351
        %v1353 = vpop.xlane.xlu0 %1352
        %v1354 = vsel %vm286, %v1294, -inf
        %1355 = vmax.xlane.f32.xlu0 %v1354
        %v1356 = vpop.xlane.xlu0 %1355
        %v1357 = vsel %vm286, %v1295, -inf
        %1358 = vmax.xlane.f32.xlu0 %v1357
        %v1359 = vpop.xlane.xlu0 %1358
        %v1360 = vsel %vm286, %v1296, -inf
        %1361 = vmax.xlane.f32.xlu0 %v1360
        %v1362 = vpop.xlane.xlu0 %1361
        %v1363 = vsel %vm286, %v1297, -inf
        %1364 = vmax.xlane.f32.xlu0 %v1363
        %v1365 = vpop.xlane.xlu0 %1364
        %v1366 = vsel %vm286, %v1298, -inf
        %1367 = vmax.xlane.f32.xlu0 %v1366
        %v1368 = vpop.xlane.xlu0 %1367
        %v1369 = vsel %vm286, %v1299, -inf
        %1370 = vmax.xlane.f32.xlu0 %v1369
        %v1371 = vpop.xlane.xlu0 %1370
        %v1372 = vsel %vm286, %v1300, -inf
        %1373 = vmax.xlane.f32.xlu0 %v1372
        %v1374 = vpop.xlane.xlu0 %1373
        %v1375 = vsel %vm286, %v1301, -inf
        %1376 = vmax.xlane.f32.xlu0 %v1375
        %v1377 = vpop.xlane.xlu0 %1376
        %v1378 = vsel %vm286, %v1302, -inf
        %1379 = vmax.xlane.f32.xlu0 %v1378
        %v1380 = vpop.xlane.xlu0 %1379
        %v1381 = vsel %vm286, %v1303, -inf
        %1382 = vmax.xlane.f32.xlu0 %v1381
        %v1383 = vpop.xlane.xlu0 %1382
        %v1384 = vsel %vm286, %v1304, -inf
        %1385 = vmax.xlane.f32.xlu0 %v1384
        %v1386 = vpop.xlane.xlu0 %1385
        %v1387 = vsel %vm286, %v1305, -inf
        %1388 = vmax.xlane.f32.xlu0 %v1387
        %v1389 = vpop.xlane.xlu0 %1388
        %v1390 = vsel %vm286, %v1306, -inf
        %1391 = vmax.xlane.f32.xlu0 %v1390
        %v1392 = vpop.xlane.xlu0 %1391
        %v1393 = vsel %vm286, %v1307, -inf
        %1394 = vmax.xlane.f32.xlu0 %v1393
        %v1395 = vpop.xlane.xlu0 %1394
        %v1396 = vsel %vm286, %v1308, -inf
        %1397 = vmax.xlane.f32.xlu0 %v1396
        %v1398 = vpop.xlane.xlu0 %1397
        %v1399 = vsel %vm286, %v1309, -inf
        %1400 = vmax.xlane.f32.xlu0 %v1399
        %v1401 = vpop.xlane.xlu0 %1400
        %v1402 = vsel %vm286, %v1310, -inf
        %1403 = vmax.xlane.f32.xlu0 %v1402
        %v1404 = vpop.xlane.xlu0 %1403
        %v1405 = vsel %vm286, %v1311, -inf
        %1406 = vmax.xlane.f32.xlu0 %v1405
        %v1407 = vpop.xlane.xlu0 %1406
        %vm1408 = vcmp.eq.s32.totalorder %v613, 4
        %v1409 = vsel %vm1408, %v1314, %v1244
        %v1410 = vsel %vm1408, %v1317, %v1245
        %v1411 = vsel %vm1408, %v1320, %v1246
        %v1412 = vsel %vm1408, %v1323, %v1247
        %v1413 = vsel %vm1408, %v1326, %v1248
        %v1414 = vsel %vm1408, %v1329, %v1249
        %v1415 = vsel %vm1408, %v1332, %v1250
        %v1416 = vsel %vm1408, %v1335, %v1251
        %v1417 = vsel %vm1408, %v1338, %v1252
        %v1418 = vsel %vm1408, %v1341, %v1253
        %v1419 = vsel %vm1408, %v1344, %v1254
        %v1420 = vsel %vm1408, %v1347, %v1255
        %v1421 = vsel %vm1408, %v1350, %v1256
        %v1422 = vsel %vm1408, %v1353, %v1257
        %v1423 = vsel %vm1408, %v1356, %v1258
        %v1424 = vsel %vm1408, %v1359, %v1259
        %v1425 = vsel %vm1408, %v1362, %v1260
        %v1426 = vsel %vm1408, %v1365, %v1261
        %v1427 = vsel %vm1408, %v1368, %v1262
        %v1428 = vsel %vm1408, %v1371, %v1263
        %v1429 = vsel %vm1408, %v1374, %v1264
        %v1430 = vsel %vm1408, %v1377, %v1265
        %v1431 = vsel %vm1408, %v1380, %v1266
        %v1432 = vsel %vm1408, %v1383, %v1267
        %v1433 = vsel %vm1408, %v1386, %v1268
        %v1434 = vsel %vm1408, %v1389, %v1269
        %v1435 = vsel %vm1408, %v1392, %v1270
        %v1436 = vsel %vm1408, %v1395, %v1271
        %v1437 = vsel %vm1408, %v1398, %v1272
        %v1438 = vsel %vm1408, %v1401, %v1273
        %v1439 = vsel %vm1408, %v1404, %v1274
        %v1440 = vsel %vm1408, %v1407, %v1275
        %v1441 = vlaneseq
        %v1442 = vshrl.u32 %v1441, 7
        %v1443 = vsub.s32 5, %v1442
        %v1444 = vrot.slane %v614, %v1443
        %v1445 = vadd.f32 %v243, %v1444
        %v1446 = vadd.f32 %v244, %v1444
        %v1447 = vadd.f32 %v245, %v1444
        %v1448 = vadd.f32 %v246, %v1444
        %v1449 = vadd.f32 %v247, %v1444
        %v1450 = vadd.f32 %v248, %v1444
        %v1451 = vadd.f32 %v249, %v1444
        %v1452 = vadd.f32 %v250, %v1444
        %v1453 = vadd.f32 %v251, %v1444
        %v1454 = vadd.f32 %v252, %v1444
        %v1455 = vadd.f32 %v253, %v1444
        %v1456 = vadd.f32 %v254, %v1444
        %v1457 = vadd.f32 %v255, %v1444
        %v1458 = vadd.f32 %v256, %v1444
        %v1459 = vadd.f32 %v257, %v1444
        %v1460 = vadd.f32 %v258, %v1444
        %v1461 = vadd.f32 %v259, %v1444
        %v1462 = vadd.f32 %v260, %v1444
        %v1463 = vadd.f32 %v261, %v1444
        %v1464 = vadd.f32 %v262, %v1444
        %v1465 = vadd.f32 %v263, %v1444
        %v1466 = vadd.f32 %v264, %v1444
        %v1467 = vadd.f32 %v265, %v1444
        %v1468 = vadd.f32 %v266, %v1444
        %v1469 = vadd.f32 %v267, %v1444
        %v1470 = vadd.f32 %v268, %v1444
        %v1471 = vadd.f32 %v269, %v1444
        %v1472 = vadd.f32 %v270, %v1444
        %v1473 = vadd.f32 %v271, %v1444
        %v1474 = vadd.f32 %v272, %v1444
        %v1475 = vadd.f32 %v273, %v1444
        %v1476 = vadd.f32 %v274, %v1444
        %v1477 = vsel %vm286, %v1445, -inf
        %1478 = vmax.xlane.f32.xlu0 %v1477
        %v1479 = vpop.xlane.xlu0 %1478
        %v1480 = vsel %vm286, %v1446, -inf
        %1481 = vmax.xlane.f32.xlu0 %v1480
        %v1482 = vpop.xlane.xlu0 %1481
        %v1483 = vsel %vm286, %v1447, -inf
        %1484 = vmax.xlane.f32.xlu0 %v1483
        %v1485 = vpop.xlane.xlu0 %1484
        %v1486 = vsel %vm286, %v1448, -inf
        %1487 = vmax.xlane.f32.xlu0 %v1486
        %v1488 = vpop.xlane.xlu0 %1487
        %v1489 = vsel %vm286, %v1449, -inf
        %1490 = vmax.xlane.f32.xlu0 %v1489
        %v1491 = vpop.xlane.xlu0 %1490
        %v1492 = vsel %vm286, %v1450, -inf
        %1493 = vmax.xlane.f32.xlu0 %v1492
        %v1494 = vpop.xlane.xlu0 %1493
        %v1495 = vsel %vm286, %v1451, -inf
        %1496 = vmax.xlane.f32.xlu0 %v1495
        %v1497 = vpop.xlane.xlu0 %1496
        %v1498 = vsel %vm286, %v1452, -inf
        %1499 = vmax.xlane.f32.xlu0 %v1498
        %v1500 = vpop.xlane.xlu0 %1499
        %v1501 = vsel %vm286, %v1453, -inf
        %1502 = vmax.xlane.f32.xlu0 %v1501
        %v1503 = vpop.xlane.xlu0 %1502
        %v1504 = vsel %vm286, %v1454, -inf
        %1505 = vmax.xlane.f32.xlu0 %v1504
        %v1506 = vpop.xlane.xlu0 %1505
        %v1507 = vsel %vm286, %v1455, -inf
        %1508 = vmax.xlane.f32.xlu0 %v1507
        %v1509 = vpop.xlane.xlu0 %1508
        %v1510 = vsel %vm286, %v1456, -inf
        %1511 = vmax.xlane.f32.xlu0 %v1510
        %v1512 = vpop.xlane.xlu0 %1511
        %v1513 = vsel %vm286, %v1457, -inf
        %1514 = vmax.xlane.f32.xlu0 %v1513
        %v1515 = vpop.xlane.xlu0 %1514
        %v1516 = vsel %vm286, %v1458, -inf
        %1517 = vmax.xlane.f32.xlu0 %v1516
        %v1518 = vpop.xlane.xlu0 %1517
        %v1519 = vsel %vm286, %v1459, -inf
        %1520 = vmax.xlane.f32.xlu0 %v1519
        %v1521 = vpop.xlane.xlu0 %1520
        %v1522 = vsel %vm286, %v1460, -inf
        %1523 = vmax.xlane.f32.xlu0 %v1522
        %v1524 = vpop.xlane.xlu0 %1523
        %v1525 = vsel %vm286, %v1461, -inf
        %1526 = vmax.xlane.f32.xlu0 %v1525
        %v1527 = vpop.xlane.xlu0 %1526
        %v1528 = vsel %vm286, %v1462, -inf
        %1529 = vmax.xlane.f32.xlu0 %v1528
        %v1530 = vpop.xlane.xlu0 %1529
        %v1531 = vsel %vm286, %v1463, -inf
        %1532 = vmax.xlane.f32.xlu0 %v1531
        %v1533 = vpop.xlane.xlu0 %1532
        %v1534 = vsel %vm286, %v1464, -inf
        %1535 = vmax.xlane.f32.xlu0 %v1534
        %v1536 = vpop.xlane.xlu0 %1535
        %v1537 = vsel %vm286, %v1465, -inf
        %1538 = vmax.xlane.f32.xlu0 %v1537
        %v1539 = vpop.xlane.xlu0 %1538
        %v1540 = vsel %vm286, %v1466, -inf
        %1541 = vmax.xlane.f32.xlu0 %v1540
        %v1542 = vpop.xlane.xlu0 %1541
        %v1543 = vsel %vm286, %v1467, -inf
        %1544 = vmax.xlane.f32.xlu0 %v1543
        %v1545 = vpop.xlane.xlu0 %1544
        %v1546 = vsel %vm286, %v1468, -inf
        %1547 = vmax.xlane.f32.xlu0 %v1546
        %v1548 = vpop.xlane.xlu0 %1547
        %v1549 = vsel %vm286, %v1469, -inf
        %1550 = vmax.xlane.f32.xlu0 %v1549
        %v1551 = vpop.xlane.xlu0 %1550
        %v1552 = vsel %vm286, %v1470, -inf
        %1553 = vmax.xlane.f32.xlu0 %v1552
        %v1554 = vpop.xlane.xlu0 %1553
        %v1555 = vsel %vm286, %v1471, -inf
        %1556 = vmax.xlane.f32.xlu0 %v1555
        %v1557 = vpop.xlane.xlu0 %1556
        %v1558 = vsel %vm286, %v1472, -inf
        %1559 = vmax.xlane.f32.xlu0 %v1558
        %v1560 = vpop.xlane.xlu0 %1559
        %v1561 = vsel %vm286, %v1473, -inf
        %1562 = vmax.xlane.f32.xlu0 %v1561
        %v1563 = vpop.xlane.xlu0 %1562
        %v1564 = vsel %vm286, %v1474, -inf
        %1565 = vmax.xlane.f32.xlu0 %v1564
        %v1566 = vpop.xlane.xlu0 %1565
        %v1567 = vsel %vm286, %v1475, -inf
        %1568 = vmax.xlane.f32.xlu0 %v1567
        %v1569 = vpop.xlane.xlu0 %1568
        %v1570 = vsel %vm286, %v1476, -inf
        %1571 = vmax.xlane.f32.xlu0 %v1570
        %v1572 = vpop.xlane.xlu0 %1571
        %vm1573 = vcmp.eq.s32.totalorder %v613, 5
        %v1574 = vsel %vm1573, %v1479, %v1409
        %v1575 = vsel %vm1573, %v1482, %v1410
        %v1576 = vsel %vm1573, %v1485, %v1411
        %v1577 = vsel %vm1573, %v1488, %v1412
        %v1578 = vsel %vm1573, %v1491, %v1413
        %v1579 = vsel %vm1573, %v1494, %v1414
        %v1580 = vsel %vm1573, %v1497, %v1415
        %v1581 = vsel %vm1573, %v1500, %v1416
        %v1582 = vsel %vm1573, %v1503, %v1417
        %v1583 = vsel %vm1573, %v1506, %v1418
        %v1584 = vsel %vm1573, %v1509, %v1419
        %v1585 = vsel %vm1573, %v1512, %v1420
        %v1586 = vsel %vm1573, %v1515, %v1421
        %v1587 = vsel %vm1573, %v1518, %v1422
        %v1588 = vsel %vm1573, %v1521, %v1423
        %v1589 = vsel %vm1573, %v1524, %v1424
        %v1590 = vsel %vm1573, %v1527, %v1425
        %v1591 = vsel %vm1573, %v1530, %v1426
        %v1592 = vsel %vm1573, %v1533, %v1427
        %v1593 = vsel %vm1573, %v1536, %v1428
        %v1594 = vsel %vm1573, %v1539, %v1429
        %v1595 = vsel %vm1573, %v1542, %v1430
        %v1596 = vsel %vm1573, %v1545, %v1431
        %v1597 = vsel %vm1573, %v1548, %v1432
        %v1598 = vsel %vm1573, %v1551, %v1433
        %v1599 = vsel %vm1573, %v1554, %v1434
        %v1600 = vsel %vm1573, %v1557, %v1435
        %v1601 = vsel %vm1573, %v1560, %v1436
        %v1602 = vsel %vm1573, %v1563, %v1437
        %v1603 = vsel %vm1573, %v1566, %v1438
        %v1604 = vsel %vm1573, %v1569, %v1439
        %v1605 = vsel %vm1573, %v1572, %v1440
        %v1606 = vlaneseq
        %v1607 = vshrl.u32 %v1606, 7
        %v1608 = vsub.s32 6, %v1607
        %v1609 = vrot.slane %v614, %v1608
        %v1610 = vadd.f32 %v243, %v1609
        %v1611 = vadd.f32 %v244, %v1609
        %v1612 = vadd.f32 %v245, %v1609
        %v1613 = vadd.f32 %v246, %v1609
        %v1614 = vadd.f32 %v247, %v1609
        %v1615 = vadd.f32 %v248, %v1609
        %v1616 = vadd.f32 %v249, %v1609
        %v1617 = vadd.f32 %v250, %v1609
        %v1618 = vadd.f32 %v251, %v1609
        %v1619 = vadd.f32 %v252, %v1609
        %v1620 = vadd.f32 %v253, %v1609
        %v1621 = vadd.f32 %v254, %v1609
        %v1622 = vadd.f32 %v255, %v1609
        %v1623 = vadd.f32 %v256, %v1609
        %v1624 = vadd.f32 %v257, %v1609
        %v1625 = vadd.f32 %v258, %v1609
        %v1626 = vadd.f32 %v259, %v1609
        %v1627 = vadd.f32 %v260, %v1609
        %v1628 = vadd.f32 %v261, %v1609
        %v1629 = vadd.f32 %v262, %v1609
        %v1630 = vadd.f32 %v263, %v1609
        %v1631 = vadd.f32 %v264, %v1609
        %v1632 = vadd.f32 %v265, %v1609
        %v1633 = vadd.f32 %v266, %v1609
        %v1634 = vadd.f32 %v267, %v1609
        %v1635 = vadd.f32 %v268, %v1609
        %v1636 = vadd.f32 %v269, %v1609
        %v1637 = vadd.f32 %v270, %v1609
        %v1638 = vadd.f32 %v271, %v1609
        %v1639 = vadd.f32 %v272, %v1609
        %v1640 = vadd.f32 %v273, %v1609
        %v1641 = vadd.f32 %v274, %v1609
        %v1642 = vsel %vm286, %v1610, -inf
        %1643 = vmax.xlane.f32.xlu0 %v1642
        %v1644 = vpop.xlane.xlu0 %1643
        %v1645 = vsel %vm286, %v1611, -inf
        %1646 = vmax.xlane.f32.xlu0 %v1645
        %v1647 = vpop.xlane.xlu0 %1646
        %v1648 = vsel %vm286, %v1612, -inf
        %1649 = vmax.xlane.f32.xlu0 %v1648
        %v1650 = vpop.xlane.xlu0 %1649
        %v1651 = vsel %vm286, %v1613, -inf
        %1652 = vmax.xlane.f32.xlu0 %v1651
        %v1653 = vpop.xlane.xlu0 %1652
        %v1654 = vsel %vm286, %v1614, -inf
        %1655 = vmax.xlane.f32.xlu0 %v1654
        %v1656 = vpop.xlane.xlu0 %1655
        %v1657 = vsel %vm286, %v1615, -inf
        %1658 = vmax.xlane.f32.xlu0 %v1657
        %v1659 = vpop.xlane.xlu0 %1658
        %v1660 = vsel %vm286, %v1616, -inf
        %1661 = vmax.xlane.f32.xlu0 %v1660
        %v1662 = vpop.xlane.xlu0 %1661
        %v1663 = vsel %vm286, %v1617, -inf
        %1664 = vmax.xlane.f32.xlu0 %v1663
        %v1665 = vpop.xlane.xlu0 %1664
        %v1666 = vsel %vm286, %v1618, -inf
        %1667 = vmax.xlane.f32.xlu0 %v1666
        %v1668 = vpop.xlane.xlu0 %1667
        %v1669 = vsel %vm286, %v1619, -inf
        %1670 = vmax.xlane.f32.xlu0 %v1669
        %v1671 = vpop.xlane.xlu0 %1670
        %v1672 = vsel %vm286, %v1620, -inf
        %1673 = vmax.xlane.f32.xlu0 %v1672
        %v1674 = vpop.xlane.xlu0 %1673
        %v1675 = vsel %vm286, %v1621, -inf
        %1676 = vmax.xlane.f32.xlu0 %v1675
        %v1677 = vpop.xlane.xlu0 %1676
        %v1678 = vsel %vm286, %v1622, -inf
        %1679 = vmax.xlane.f32.xlu0 %v1678
        %v1680 = vpop.xlane.xlu0 %1679
        %v1681 = vsel %vm286, %v1623, -inf
        %1682 = vmax.xlane.f32.xlu0 %v1681
        %v1683 = vpop.xlane.xlu0 %1682
        %v1684 = vsel %vm286, %v1624, -inf
        %1685 = vmax.xlane.f32.xlu0 %v1684
        %v1686 = vpop.xlane.xlu0 %1685
        %v1687 = vsel %vm286, %v1625, -inf
        %1688 = vmax.xlane.f32.xlu0 %v1687
        %v1689 = vpop.xlane.xlu0 %1688
        %v1690 = vsel %vm286, %v1626, -inf
        %1691 = vmax.xlane.f32.xlu0 %v1690
        %v1692 = vpop.xlane.xlu0 %1691
        %v1693 = vsel %vm286, %v1627, -inf
        %1694 = vmax.xlane.f32.xlu0 %v1693
        %v1695 = vpop.xlane.xlu0 %1694
        %v1696 = vsel %vm286, %v1628, -inf
        %1697 = vmax.xlane.f32.xlu0 %v1696
        %v1698 = vpop.xlane.xlu0 %1697
        %v1699 = vsel %vm286, %v1629, -inf
        %1700 = vmax.xlane.f32.xlu0 %v1699
        %v1701 = vpop.xlane.xlu0 %1700
        %v1702 = vsel %vm286, %v1630, -inf
        %1703 = vmax.xlane.f32.xlu0 %v1702
        %v1704 = vpop.xlane.xlu0 %1703
        %v1705 = vsel %vm286, %v1631, -inf
        %1706 = vmax.xlane.f32.xlu0 %v1705
        %v1707 = vpop.xlane.xlu0 %1706
        %v1708 = vsel %vm286, %v1632, -inf
        %1709 = vmax.xlane.f32.xlu0 %v1708
        %v1710 = vpop.xlane.xlu0 %1709
        %v1711 = vsel %vm286, %v1633, -inf
        %1712 = vmax.xlane.f32.xlu0 %v1711
        %v1713 = vpop.xlane.xlu0 %1712
        %v1714 = vsel %vm286, %v1634, -inf
        %1715 = vmax.xlane.f32.xlu0 %v1714
        %v1716 = vpop.xlane.xlu0 %1715
        %v1717 = vsel %vm286, %v1635, -inf
        %1718 = vmax.xlane.f32.xlu0 %v1717
        %v1719 = vpop.xlane.xlu0 %1718
        %v1720 = vsel %vm286, %v1636, -inf
        %1721 = vmax.xlane.f32.xlu0 %v1720
        %v1722 = vpop.xlane.xlu0 %1721
        %v1723 = vsel %vm286, %v1637, -inf
        %1724 = vmax.xlane.f32.xlu0 %v1723
        %v1725 = vpop.xlane.xlu0 %1724
        %v1726 = vsel %vm286, %v1638, -inf
        %1727 = vmax.xlane.f32.xlu0 %v1726
        %v1728 = vpop.xlane.xlu0 %1727
        %v1729 = vsel %vm286, %v1639, -inf
        %1730 = vmax.xlane.f32.xlu0 %v1729
        %v1731 = vpop.xlane.xlu0 %1730
        %v1732 = vsel %vm286, %v1640, -inf
        %1733 = vmax.xlane.f32.xlu0 %v1732
        %v1734 = vpop.xlane.xlu0 %1733
        %v1735 = vsel %vm286, %v1641, -inf
        %1736 = vmax.xlane.f32.xlu0 %v1735
        %v1737 = vpop.xlane.xlu0 %1736
        %vm1738 = vcmp.eq.s32.totalorder %v613, 6
        %v1739 = vsel %vm1738, %v1644, %v1574
        %v1740 = vsel %vm1738, %v1647, %v1575
        %v1741 = vsel %vm1738, %v1650, %v1576
        %v1742 = vsel %vm1738, %v1653, %v1577
        %v1743 = vsel %vm1738, %v1656, %v1578
        %v1744 = vsel %vm1738, %v1659, %v1579
        %v1745 = vsel %vm1738, %v1662, %v1580
        %v1746 = vsel %vm1738, %v1665, %v1581
        %v1747 = vsel %vm1738, %v1668, %v1582
        %v1748 = vsel %vm1738, %v1671, %v1583
        %v1749 = vsel %vm1738, %v1674, %v1584
        %v1750 = vsel %vm1738, %v1677, %v1585
        %v1751 = vsel %vm1738, %v1680, %v1586
        %v1752 = vsel %vm1738, %v1683, %v1587
        %v1753 = vsel %vm1738, %v1686, %v1588
        %v1754 = vsel %vm1738, %v1689, %v1589
        %v1755 = vsel %vm1738, %v1692, %v1590
        %v1756 = vsel %vm1738, %v1695, %v1591
        %v1757 = vsel %vm1738, %v1698, %v1592
        %v1758 = vsel %vm1738, %v1701, %v1593
        %v1759 = vsel %vm1738, %v1704, %v1594
        %v1760 = vsel %vm1738, %v1707, %v1595
        %v1761 = vsel %vm1738, %v1710, %v1596
        %v1762 = vsel %vm1738, %v1713, %v1597
        %v1763 = vsel %vm1738, %v1716, %v1598
        %v1764 = vsel %vm1738, %v1719, %v1599
        %v1765 = vsel %vm1738, %v1722, %v1600
        %v1766 = vsel %vm1738, %v1725, %v1601
        %v1767 = vsel %vm1738, %v1728, %v1602
        %v1768 = vsel %vm1738, %v1731, %v1603
        %v1769 = vsel %vm1738, %v1734, %v1604
        %v1770 = vsel %vm1738, %v1737, %v1605
        %v1771 = vlaneseq
        %v1772 = vshrl.u32 %v1771, 7
        %v1773 = vsub.s32 7, %v1772
        %v1774 = vrot.slane %v614, %v1773
        %v1775 = vadd.f32 %v243, %v1774
        %v1776 = vadd.f32 %v244, %v1774
        %v1777 = vadd.f32 %v245, %v1774
        %v1778 = vadd.f32 %v246, %v1774
        %v1779 = vadd.f32 %v247, %v1774
        %v1780 = vadd.f32 %v248, %v1774
        %v1781 = vadd.f32 %v249, %v1774
        %v1782 = vadd.f32 %v250, %v1774
        %v1783 = vadd.f32 %v251, %v1774
        %v1784 = vadd.f32 %v252, %v1774
        %v1785 = vadd.f32 %v253, %v1774
        %v1786 = vadd.f32 %v254, %v1774
        %v1787 = vadd.f32 %v255, %v1774
        %v1788 = vadd.f32 %v256, %v1774
        %v1789 = vadd.f32 %v257, %v1774
        %v1790 = vadd.f32 %v258, %v1774
        %v1791 = vadd.f32 %v259, %v1774
        %v1792 = vadd.f32 %v260, %v1774
        %v1793 = vadd.f32 %v261, %v1774
        %v1794 = vadd.f32 %v262, %v1774
        %v1795 = vadd.f32 %v263, %v1774
        %v1796 = vadd.f32 %v264, %v1774
        %v1797 = vadd.f32 %v265, %v1774
        %v1798 = vadd.f32 %v266, %v1774
        %v1799 = vadd.f32 %v267, %v1774
        %v1800 = vadd.f32 %v268, %v1774
        %v1801 = vadd.f32 %v269, %v1774
        %v1802 = vadd.f32 %v270, %v1774
        %v1803 = vadd.f32 %v271, %v1774
        %v1804 = vadd.f32 %v272, %v1774
        %v1805 = vadd.f32 %v273, %v1774
        %v1806 = vadd.f32 %v274, %v1774
        %v1807 = vsel %vm286, %v1775, -inf
        %1808 = vmax.xlane.f32.xlu0 %v1807
        %v1809 = vpop.xlane.xlu0 %1808
        %v1810 = vsel %vm286, %v1776, -inf
        %1811 = vmax.xlane.f32.xlu0 %v1810
        %v1812 = vpop.xlane.xlu0 %1811
        %v1813 = vsel %vm286, %v1777, -inf
        %1814 = vmax.xlane.f32.xlu0 %v1813
        %v1815 = vpop.xlane.xlu0 %1814
        %v1816 = vsel %vm286, %v1778, -inf
        %1817 = vmax.xlane.f32.xlu0 %v1816
        %v1818 = vpop.xlane.xlu0 %1817
        %v1819 = vsel %vm286, %v1779, -inf
        %1820 = vmax.xlane.f32.xlu0 %v1819
        %v1821 = vpop.xlane.xlu0 %1820
        %v1822 = vsel %vm286, %v1780, -inf
        %1823 = vmax.xlane.f32.xlu0 %v1822
        %v1824 = vpop.xlane.xlu0 %1823
        %v1825 = vsel %vm286, %v1781, -inf
        %1826 = vmax.xlane.f32.xlu0 %v1825
        %v1827 = vpop.xlane.xlu0 %1826
        %v1828 = vsel %vm286, %v1782, -inf
        %1829 = vmax.xlane.f32.xlu0 %v1828
        %v1830 = vpop.xlane.xlu0 %1829
        %v1831 = vsel %vm286, %v1783, -inf
        %1832 = vmax.xlane.f32.xlu0 %v1831
        %v1833 = vpop.xlane.xlu0 %1832
        %v1834 = vsel %vm286, %v1784, -inf
        %1835 = vmax.xlane.f32.xlu0 %v1834
        %v1836 = vpop.xlane.xlu0 %1835
        %v1837 = vsel %vm286, %v1785, -inf
        %1838 = vmax.xlane.f32.xlu0 %v1837
        %v1839 = vpop.xlane.xlu0 %1838
        %v1840 = vsel %vm286, %v1786, -inf
        %1841 = vmax.xlane.f32.xlu0 %v1840
        %v1842 = vpop.xlane.xlu0 %1841
        %v1843 = vsel %vm286, %v1787, -inf
        %1844 = vmax.xlane.f32.xlu0 %v1843
        %v1845 = vpop.xlane.xlu0 %1844
        %v1846 = vsel %vm286, %v1788, -inf
        %1847 = vmax.xlane.f32.xlu0 %v1846
        %v1848 = vpop.xlane.xlu0 %1847
        %v1849 = vsel %vm286, %v1789, -inf
        %1850 = vmax.xlane.f32.xlu0 %v1849
        %v1851 = vpop.xlane.xlu0 %1850
        %v1852 = vsel %vm286, %v1790, -inf
        %1853 = vmax.xlane.f32.xlu0 %v1852
        %v1854 = vpop.xlane.xlu0 %1853
        %v1855 = vsel %vm286, %v1791, -inf
        %1856 = vmax.xlane.f32.xlu0 %v1855
        %v1857 = vpop.xlane.xlu0 %1856
        %v1858 = vsel %vm286, %v1792, -inf
        %1859 = vmax.xlane.f32.xlu0 %v1858
        %v1860 = vpop.xlane.xlu0 %1859
        %v1861 = vsel %vm286, %v1793, -inf
        %1862 = vmax.xlane.f32.xlu0 %v1861
        %v1863 = vpop.xlane.xlu0 %1862
        %v1864 = vsel %vm286, %v1794, -inf
        %1865 = vmax.xlane.f32.xlu0 %v1864
        %v1866 = vpop.xlane.xlu0 %1865
        %v1867 = vsel %vm286, %v1795, -inf
        %1868 = vmax.xlane.f32.xlu0 %v1867
        %v1869 = vpop.xlane.xlu0 %1868
        %v1870 = vsel %vm286, %v1796, -inf
        %1871 = vmax.xlane.f32.xlu0 %v1870
        %v1872 = vpop.xlane.xlu0 %1871
        %v1873 = vsel %vm286, %v1797, -inf
        %1874 = vmax.xlane.f32.xlu0 %v1873
        %v1875 = vpop.xlane.xlu0 %1874
        %v1876 = vsel %vm286, %v1798, -inf
        %1877 = vmax.xlane.f32.xlu0 %v1876
        %v1878 = vpop.xlane.xlu0 %1877
        %v1879 = vsel %vm286, %v1799, -inf
        %1880 = vmax.xlane.f32.xlu0 %v1879
        %v1881 = vpop.xlane.xlu0 %1880
        %v1882 = vsel %vm286, %v1800, -inf
        %1883 = vmax.xlane.f32.xlu0 %v1882
        %v1884 = vpop.xlane.xlu0 %1883
        %v1885 = vsel %vm286, %v1801, -inf
        %1886 = vmax.xlane.f32.xlu0 %v1885
        %v1887 = vpop.xlane.xlu0 %1886
        %v1888 = vsel %vm286, %v1802, -inf
        %1889 = vmax.xlane.f32.xlu0 %v1888
        %v1890 = vpop.xlane.xlu0 %1889
        %v1891 = vsel %vm286, %v1803, -inf
        %1892 = vmax.xlane.f32.xlu0 %v1891
        %v1893 = vpop.xlane.xlu0 %1892
        %v1894 = vsel %vm286, %v1804, -inf
        %1895 = vmax.xlane.f32.xlu0 %v1894
        %v1896 = vpop.xlane.xlu0 %1895
        %v1897 = vsel %vm286, %v1805, -inf
        %1898 = vmax.xlane.f32.xlu0 %v1897
        %v1899 = vpop.xlane.xlu0 %1898
        %v1900 = vsel %vm286, %v1806, -inf
        %1901 = vmax.xlane.f32.xlu0 %v1900
        %v1902 = vpop.xlane.xlu0 %1901
        %vm1903 = vcmp.eq.s32.totalorder %v613, 7
        %v1904 = vsel %vm1903, %v1809, %v1739
        %v1905 = vsel %vm1903, %v1812, %v1740
        %v1906 = vsel %vm1903, %v1815, %v1741
        %v1907 = vsel %vm1903, %v1818, %v1742
        %v1908 = vsel %vm1903, %v1821, %v1743
        %v1909 = vsel %vm1903, %v1824, %v1744
        %v1910 = vsel %vm1903, %v1827, %v1745
        %v1911 = vsel %vm1903, %v1830, %v1746
        %v1912 = vsel %vm1903, %v1833, %v1747
        %v1913 = vsel %vm1903, %v1836, %v1748
        %v1914 = vsel %vm1903, %v1839, %v1749
        %v1915 = vsel %vm1903, %v1842, %v1750
        %v1916 = vsel %vm1903, %v1845, %v1751
        %v1917 = vsel %vm1903, %v1848, %v1752
        %v1918 = vsel %vm1903, %v1851, %v1753
        %v1919 = vsel %vm1903, %v1854, %v1754
        %v1920 = vsel %vm1903, %v1857, %v1755
        %v1921 = vsel %vm1903, %v1860, %v1756
        %v1922 = vsel %vm1903, %v1863, %v1757
        %v1923 = vsel %vm1903, %v1866, %v1758
        %v1924 = vsel %vm1903, %v1869, %v1759
        %v1925 = vsel %vm1903, %v1872, %v1760
        %v1926 = vsel %vm1903, %v1875, %v1761
        %v1927 = vsel %vm1903, %v1878, %v1762
        %v1928 = vsel %vm1903, %v1881, %v1763
        %v1929 = vsel %vm1903, %v1884, %v1764
        %v1930 = vsel %vm1903, %v1887, %v1765
        %v1931 = vsel %vm1903, %v1890, %v1766
        %v1932 = vsel %vm1903, %v1893, %v1767
        %v1933 = vsel %vm1903, %v1896, %v1768
        %v1934 = vsel %vm1903, %v1899, %v1769
        %v1935 = vsel %vm1903, %v1902, %v1770
        %v1936 = vlaneseq
        %v1937 = vshrl.u32 %v1936, 7
        %v1938 = vsub.s32 0, %v1937
        %v1939 = vrot.slane %v615, %v1938
        %v1940 = vadd.f32 %v243, %v1939
        %v1941 = vadd.f32 %v244, %v1939
        %v1942 = vadd.f32 %v245, %v1939
        %v1943 = vadd.f32 %v246, %v1939
        %v1944 = vadd.f32 %v247, %v1939
        %v1945 = vadd.f32 %v248, %v1939
        %v1946 = vadd.f32 %v249, %v1939
        %v1947 = vadd.f32 %v250, %v1939
        %v1948 = vadd.f32 %v251, %v1939
        %v1949 = vadd.f32 %v252, %v1939
        %v1950 = vadd.f32 %v253, %v1939
        %v1951 = vadd.f32 %v254, %v1939
        %v1952 = vadd.f32 %v255, %v1939
        %v1953 = vadd.f32 %v256, %v1939
        %v1954 = vadd.f32 %v257, %v1939
        %v1955 = vadd.f32 %v258, %v1939
        %v1956 = vadd.f32 %v259, %v1939
        %v1957 = vadd.f32 %v260, %v1939
        %v1958 = vadd.f32 %v261, %v1939
        %v1959 = vadd.f32 %v262, %v1939
        %v1960 = vadd.f32 %v263, %v1939
        %v1961 = vadd.f32 %v264, %v1939
        %v1962 = vadd.f32 %v265, %v1939
        %v1963 = vadd.f32 %v266, %v1939
        %v1964 = vadd.f32 %v267, %v1939
        %v1965 = vadd.f32 %v268, %v1939
        %v1966 = vadd.f32 %v269, %v1939
        %v1967 = vadd.f32 %v270, %v1939
        %v1968 = vadd.f32 %v271, %v1939
        %v1969 = vadd.f32 %v272, %v1939
        %v1970 = vadd.f32 %v273, %v1939
        %v1971 = vadd.f32 %v274, %v1939
        %v1972 = vsel %vm286, %v1940, -inf
        %1973 = vmax.xlane.f32.xlu0 %v1972
        %v1974 = vpop.xlane.xlu0 %1973
        %v1975 = vsel %vm286, %v1941, -inf
        %1976 = vmax.xlane.f32.xlu0 %v1975
        %v1977 = vpop.xlane.xlu0 %1976
        %v1978 = vsel %vm286, %v1942, -inf
        %1979 = vmax.xlane.f32.xlu0 %v1978
        %v1980 = vpop.xlane.xlu0 %1979
        %v1981 = vsel %vm286, %v1943, -inf
        %1982 = vmax.xlane.f32.xlu0 %v1981
        %v1983 = vpop.xlane.xlu0 %1982
        %v1984 = vsel %vm286, %v1944, -inf
        %1985 = vmax.xlane.f32.xlu0 %v1984
        %v1986 = vpop.xlane.xlu0 %1985
        %v1987 = vsel %vm286, %v1945, -inf
        %1988 = vmax.xlane.f32.xlu0 %v1987
        %v1989 = vpop.xlane.xlu0 %1988
        %v1990 = vsel %vm286, %v1946, -inf
        %1991 = vmax.xlane.f32.xlu0 %v1990
        %v1992 = vpop.xlane.xlu0 %1991
        %v1993 = vsel %vm286, %v1947, -inf
        %1994 = vmax.xlane.f32.xlu0 %v1993
        %v1995 = vpop.xlane.xlu0 %1994
        %v1996 = vsel %vm286, %v1948, -inf
        %1997 = vmax.xlane.f32.xlu0 %v1996
        %v1998 = vpop.xlane.xlu0 %1997
        %v1999 = vsel %vm286, %v1949, -inf
        %2000 = vmax.xlane.f32.xlu0 %v1999
        %v2001 = vpop.xlane.xlu0 %2000
        %v2002 = vsel %vm286, %v1950, -inf
        %2003 = vmax.xlane.f32.xlu0 %v2002
        %v2004 = vpop.xlane.xlu0 %2003
        %v2005 = vsel %vm286, %v1951, -inf
        %2006 = vmax.xlane.f32.xlu0 %v2005
        %v2007 = vpop.xlane.xlu0 %2006
        %v2008 = vsel %vm286, %v1952, -inf
        %2009 = vmax.xlane.f32.xlu0 %v2008
        %v2010 = vpop.xlane.xlu0 %2009
        %v2011 = vsel %vm286, %v1953, -inf
        %2012 = vmax.xlane.f32.xlu0 %v2011
        %v2013 = vpop.xlane.xlu0 %2012
        %v2014 = vsel %vm286, %v1954, -inf
        %2015 = vmax.xlane.f32.xlu0 %v2014
        %v2016 = vpop.xlane.xlu0 %2015
        %v2017 = vsel %vm286, %v1955, -inf
        %2018 = vmax.xlane.f32.xlu0 %v2017
        %v2019 = vpop.xlane.xlu0 %2018
        %v2020 = vsel %vm286, %v1956, -inf
        %2021 = vmax.xlane.f32.xlu0 %v2020
        %v2022 = vpop.xlane.xlu0 %2021
        %v2023 = vsel %vm286, %v1957, -inf
        %2024 = vmax.xlane.f32.xlu0 %v2023
        %v2025 = vpop.xlane.xlu0 %2024
        %v2026 = vsel %vm286, %v1958, -inf
        %2027 = vmax.xlane.f32.xlu0 %v2026
        %v2028 = vpop.xlane.xlu0 %2027
        %v2029 = vsel %vm286, %v1959, -inf
        %2030 = vmax.xlane.f32.xlu0 %v2029
        %v2031 = vpop.xlane.xlu0 %2030
        %v2032 = vsel %vm286, %v1960, -inf
        %2033 = vmax.xlane.f32.xlu0 %v2032
        %v2034 = vpop.xlane.xlu0 %2033
        %v2035 = vsel %vm286, %v1961, -inf
        %2036 = vmax.xlane.f32.xlu0 %v2035
        %v2037 = vpop.xlane.xlu0 %2036
        %v2038 = vsel %vm286, %v1962, -inf
        %2039 = vmax.xlane.f32.xlu0 %v2038
        %v2040 = vpop.xlane.xlu0 %2039
        %v2041 = vsel %vm286, %v1963, -inf
        %2042 = vmax.xlane.f32.xlu0 %v2041
        %v2043 = vpop.xlane.xlu0 %2042
        %v2044 = vsel %vm286, %v1964, -inf
        %2045 = vmax.xlane.f32.xlu0 %v2044
        %v2046 = vpop.xlane.xlu0 %2045
        %v2047 = vsel %vm286, %v1965, -inf
        %2048 = vmax.xlane.f32.xlu0 %v2047
        %v2049 = vpop.xlane.xlu0 %2048
        %v2050 = vsel %vm286, %v1966, -inf
        %2051 = vmax.xlane.f32.xlu0 %v2050
        %v2052 = vpop.xlane.xlu0 %2051
        %v2053 = vsel %vm286, %v1967, -inf
        %2054 = vmax.xlane.f32.xlu0 %v2053
        %v2055 = vpop.xlane.xlu0 %2054
        %v2056 = vsel %vm286, %v1968, -inf
        %2057 = vmax.xlane.f32.xlu0 %v2056
        %v2058 = vpop.xlane.xlu0 %2057
        %v2059 = vsel %vm286, %v1969, -inf
        %2060 = vmax.xlane.f32.xlu0 %v2059
        %v2061 = vpop.xlane.xlu0 %2060
        %v2062 = vsel %vm286, %v1970, -inf
        %2063 = vmax.xlane.f32.xlu0 %v2062
        %v2064 = vpop.xlane.xlu0 %2063
        %v2065 = vsel %vm286, %v1971, -inf
        %2066 = vmax.xlane.f32.xlu0 %v2065
        %v2067 = vpop.xlane.xlu0 %2066
        %vm2068 = vcmp.eq.s32.totalorder %v613, 8
        %v2069 = vsel %vm2068, %v1974, %v1904
        %v2070 = vsel %vm2068, %v1977, %v1905
        %v2071 = vsel %vm2068, %v1980, %v1906
        %v2072 = vsel %vm2068, %v1983, %v1907
        %v2073 = vsel %vm2068, %v1986, %v1908
        %v2074 = vsel %vm2068, %v1989, %v1909
        %v2075 = vsel %vm2068, %v1992, %v1910
        %v2076 = vsel %vm2068, %v1995, %v1911
        %v2077 = vsel %vm2068, %v1998, %v1912
        %v2078 = vsel %vm2068, %v2001, %v1913
        %v2079 = vsel %vm2068, %v2004, %v1914
        %v2080 = vsel %vm2068, %v2007, %v1915
        %v2081 = vsel %vm2068, %v2010, %v1916
        %v2082 = vsel %vm2068, %v2013, %v1917
        %v2083 = vsel %vm2068, %v2016, %v1918
        %v2084 = vsel %vm2068, %v2019, %v1919
        %v2085 = vsel %vm2068, %v2022, %v1920
        %v2086 = vsel %vm2068, %v2025, %v1921
        %v2087 = vsel %vm2068, %v2028, %v1922
        %v2088 = vsel %vm2068, %v2031, %v1923
        %v2089 = vsel %vm2068, %v2034, %v1924
        %v2090 = vsel %vm2068, %v2037, %v1925
        %v2091 = vsel %vm2068, %v2040, %v1926
        %v2092 = vsel %vm2068, %v2043, %v1927
        %v2093 = vsel %vm2068, %v2046, %v1928
        %v2094 = vsel %vm2068, %v2049, %v1929
        %v2095 = vsel %vm2068, %v2052, %v1930
        %v2096 = vsel %vm2068, %v2055, %v1931
        %v2097 = vsel %vm2068, %v2058, %v1932
        %v2098 = vsel %vm2068, %v2061, %v1933
        %v2099 = vsel %vm2068, %v2064, %v1934
        %v2100 = vsel %vm2068, %v2067, %v1935
        %v2101 = vlaneseq
        %v2102 = vshrl.u32 %v2101, 7
        %v2103 = vsub.s32 1, %v2102
        %v2104 = vrot.slane %v615, %v2103
        %v2105 = vadd.f32 %v243, %v2104
        %v2106 = vadd.f32 %v244, %v2104
        %v2107 = vadd.f32 %v245, %v2104
        %v2108 = vadd.f32 %v246, %v2104
        %v2109 = vadd.f32 %v247, %v2104
        %v2110 = vadd.f32 %v248, %v2104
        %v2111 = vadd.f32 %v249, %v2104
        %v2112 = vadd.f32 %v250, %v2104
        %v2113 = vadd.f32 %v251, %v2104
        %v2114 = vadd.f32 %v252, %v2104
        %v2115 = vadd.f32 %v253, %v2104
        %v2116 = vadd.f32 %v254, %v2104
        %v2117 = vadd.f32 %v255, %v2104
        %v2118 = vadd.f32 %v256, %v2104
        %v2119 = vadd.f32 %v257, %v2104
        %v2120 = vadd.f32 %v258, %v2104
        %v2121 = vadd.f32 %v259, %v2104
        %v2122 = vadd.f32 %v260, %v2104
        %v2123 = vadd.f32 %v261, %v2104
        %v2124 = vadd.f32 %v262, %v2104
        %v2125 = vadd.f32 %v263, %v2104
        %v2126 = vadd.f32 %v264, %v2104
        %v2127 = vadd.f32 %v265, %v2104
        %v2128 = vadd.f32 %v266, %v2104
        %v2129 = vadd.f32 %v267, %v2104
        %v2130 = vadd.f32 %v268, %v2104
        %v2131 = vadd.f32 %v269, %v2104
        %v2132 = vadd.f32 %v270, %v2104
        %v2133 = vadd.f32 %v271, %v2104
        %v2134 = vadd.f32 %v272, %v2104
        %v2135 = vadd.f32 %v273, %v2104
        %v2136 = vadd.f32 %v274, %v2104
        %v2137 = vsel %vm286, %v2105, -inf
        %2138 = vmax.xlane.f32.xlu0 %v2137
        %v2139 = vpop.xlane.xlu0 %2138
        %v2140 = vsel %vm286, %v2106, -inf
        %2141 = vmax.xlane.f32.xlu0 %v2140
        %v2142 = vpop.xlane.xlu0 %2141
        %v2143 = vsel %vm286, %v2107, -inf
        %2144 = vmax.xlane.f32.xlu0 %v2143
        %v2145 = vpop.xlane.xlu0 %2144
        %v2146 = vsel %vm286, %v2108, -inf
        %2147 = vmax.xlane.f32.xlu0 %v2146
        %v2148 = vpop.xlane.xlu0 %2147
        %v2149 = vsel %vm286, %v2109, -inf
        %2150 = vmax.xlane.f32.xlu0 %v2149
        %v2151 = vpop.xlane.xlu0 %2150
        %v2152 = vsel %vm286, %v2110, -inf
        %2153 = vmax.xlane.f32.xlu0 %v2152
        %v2154 = vpop.xlane.xlu0 %2153
        %v2155 = vsel %vm286, %v2111, -inf
        %2156 = vmax.xlane.f32.xlu0 %v2155
        %v2157 = vpop.xlane.xlu0 %2156
        %v2158 = vsel %vm286, %v2112, -inf
        %2159 = vmax.xlane.f32.xlu0 %v2158
        %v2160 = vpop.xlane.xlu0 %2159
        %v2161 = vsel %vm286, %v2113, -inf
        %2162 = vmax.xlane.f32.xlu0 %v2161
        %v2163 = vpop.xlane.xlu0 %2162
        %v2164 = vsel %vm286, %v2114, -inf
        %2165 = vmax.xlane.f32.xlu0 %v2164
        %v2166 = vpop.xlane.xlu0 %2165
        %v2167 = vsel %vm286, %v2115, -inf
        %2168 = vmax.xlane.f32.xlu0 %v2167
        %v2169 = vpop.xlane.xlu0 %2168
        %v2170 = vsel %vm286, %v2116, -inf
        %2171 = vmax.xlane.f32.xlu0 %v2170
        %v2172 = vpop.xlane.xlu0 %2171
        %v2173 = vsel %vm286, %v2117, -inf
        %2174 = vmax.xlane.f32.xlu0 %v2173
        %v2175 = vpop.xlane.xlu0 %2174
        %v2176 = vsel %vm286, %v2118, -inf
        %2177 = vmax.xlane.f32.xlu0 %v2176
        %v2178 = vpop.xlane.xlu0 %2177
        %v2179 = vsel %vm286, %v2119, -inf
        %2180 = vmax.xlane.f32.xlu0 %v2179
        %v2181 = vpop.xlane.xlu0 %2180
        %v2182 = vsel %vm286, %v2120, -inf
        %2183 = vmax.xlane.f32.xlu0 %v2182
        %v2184 = vpop.xlane.xlu0 %2183
        %v2185 = vsel %vm286, %v2121, -inf
        %2186 = vmax.xlane.f32.xlu0 %v2185
        %v2187 = vpop.xlane.xlu0 %2186
        %v2188 = vsel %vm286, %v2122, -inf
        %2189 = vmax.xlane.f32.xlu0 %v2188
        %v2190 = vpop.xlane.xlu0 %2189
        %v2191 = vsel %vm286, %v2123, -inf
        %2192 = vmax.xlane.f32.xlu0 %v2191
        %v2193 = vpop.xlane.xlu0 %2192
        %v2194 = vsel %vm286, %v2124, -inf
        %2195 = vmax.xlane.f32.xlu0 %v2194
        %v2196 = vpop.xlane.xlu0 %2195
        %v2197 = vsel %vm286, %v2125, -inf
        %2198 = vmax.xlane.f32.xlu0 %v2197
        %v2199 = vpop.xlane.xlu0 %2198
        %v2200 = vsel %vm286, %v2126, -inf
        %2201 = vmax.xlane.f32.xlu0 %v2200
        %v2202 = vpop.xlane.xlu0 %2201
        %v2203 = vsel %vm286, %v2127, -inf
        %2204 = vmax.xlane.f32.xlu0 %v2203
        %v2205 = vpop.xlane.xlu0 %2204
        %v2206 = vsel %vm286, %v2128, -inf
        %2207 = vmax.xlane.f32.xlu0 %v2206
        %v2208 = vpop.xlane.xlu0 %2207
        %v2209 = vsel %vm286, %v2129, -inf
        %2210 = vmax.xlane.f32.xlu0 %v2209
        %v2211 = vpop.xlane.xlu0 %2210
        %v2212 = vsel %vm286, %v2130, -inf
        %2213 = vmax.xlane.f32.xlu0 %v2212
        %v2214 = vpop.xlane.xlu0 %2213
        %v2215 = vsel %vm286, %v2131, -inf
        %2216 = vmax.xlane.f32.xlu0 %v2215
        %v2217 = vpop.xlane.xlu0 %2216
        %v2218 = vsel %vm286, %v2132, -inf
        %2219 = vmax.xlane.f32.xlu0 %v2218
        %v2220 = vpop.xlane.xlu0 %2219
        %v2221 = vsel %vm286, %v2133, -inf
        %2222 = vmax.xlane.f32.xlu0 %v2221
        %v2223 = vpop.xlane.xlu0 %2222
        %v2224 = vsel %vm286, %v2134, -inf
        %2225 = vmax.xlane.f32.xlu0 %v2224
        %v2226 = vpop.xlane.xlu0 %2225
        %v2227 = vsel %vm286, %v2135, -inf
        %2228 = vmax.xlane.f32.xlu0 %v2227
        %v2229 = vpop.xlane.xlu0 %2228
        %v2230 = vsel %vm286, %v2136, -inf
        %2231 = vmax.xlane.f32.xlu0 %v2230
        %v2232 = vpop.xlane.xlu0 %2231
        %vm2233 = vcmp.eq.s32.totalorder %v613, 9
        %v2234 = vsel %vm2233, %v2139, %v2069
        %v2235 = vsel %vm2233, %v2142, %v2070
        %v2236 = vsel %vm2233, %v2145, %v2071
        %v2237 = vsel %vm2233, %v2148, %v2072
        %v2238 = vsel %vm2233, %v2151, %v2073
        %v2239 = vsel %vm2233, %v2154, %v2074
        %v2240 = vsel %vm2233, %v2157, %v2075
        %v2241 = vsel %vm2233, %v2160, %v2076
        %v2242 = vsel %vm2233, %v2163, %v2077
        %v2243 = vsel %vm2233, %v2166, %v2078
        %v2244 = vsel %vm2233, %v2169, %v2079
        %v2245 = vsel %vm2233, %v2172, %v2080
        %v2246 = vsel %vm2233, %v2175, %v2081
        %v2247 = vsel %vm2233, %v2178, %v2082
        %v2248 = vsel %vm2233, %v2181, %v2083
        %v2249 = vsel %vm2233, %v2184, %v2084
        %v2250 = vsel %vm2233, %v2187, %v2085
        %v2251 = vsel %vm2233, %v2190, %v2086
        %v2252 = vsel %vm2233, %v2193, %v2087
        %v2253 = vsel %vm2233, %v2196, %v2088
        %v2254 = vsel %vm2233, %v2199, %v2089
        %v2255 = vsel %vm2233, %v2202, %v2090
        %v2256 = vsel %vm2233, %v2205, %v2091
        %v2257 = vsel %vm2233, %v2208, %v2092
        %v2258 = vsel %vm2233, %v2211, %v2093
        %v2259 = vsel %vm2233, %v2214, %v2094
        %v2260 = vsel %vm2233, %v2217, %v2095
        %v2261 = vsel %vm2233, %v2220, %v2096
        %v2262 = vsel %vm2233, %v2223, %v2097
        %v2263 = vsel %vm2233, %v2226, %v2098
        %v2264 = vsel %vm2233, %v2229, %v2099
        %v2265 = vsel %vm2233, %v2232, %v2100
        %2266 = vst [vmem:[%s241] sm:$0xff] %v2234
        %2267 = vst [vmem:[%s241 + $0x8] sm:$0xff] %v2235
        %2268 = vst [vmem:[%s241 + $0x10] sm:$0xff] %v2236
        %2269 = vst [vmem:[%s241 + $0x18] sm:$0xff] %v2237
        %2270 = vst [vmem:[%s241 + $0x20] sm:$0xff] %v2238
        %2271 = vst [vmem:[%s241 + $0x28] sm:$0xff] %v2239
        %2272 = vst [vmem:[%s241 + $0x30] sm:$0xff] %v2240
        %2273 = vst [vmem:[%s241 + $0x38] sm:$0xff] %v2241
        %2274 = vst [vmem:[%s241 + $0x40] sm:$0xff] %v2242
        %2275 = vst [vmem:[%s241 + $0x48] sm:$0xff] %v2243
        %2276 = vst [vmem:[%s241 + $0x50] sm:$0xff] %v2244
        %2277 = vst [vmem:[%s241 + $0x58] sm:$0xff] %v2245
        %2278 = vst [vmem:[%s241 + $0x60] sm:$0xff] %v2246
        %2279 = vst [vmem:[%s241 + $0x68] sm:$0xff] %v2247
        %2280 = vst [vmem:[%s241 + $0x70] sm:$0xff] %v2248
        %2281 = vst [vmem:[%s241 + $0x78] sm:$0xff] %v2249
        %2282 = vst [vmem:[%s241 + $0x80] sm:$0xff] %v2250
        %2283 = vst [vmem:[%s241 + $0x88] sm:$0xff] %v2251
        %2284 = vst [vmem:[%s241 + $0x90] sm:$0xff] %v2252
        %2285 = vst [vmem:[%s241 + $0x98] sm:$0xff] %v2253
        %2286 = vst [vmem:[%s241 + $0xa0] sm:$0xff] %v2254
        %2287 = vst [vmem:[%s241 + $0xa8] sm:$0xff] %v2255
        %2288 = vst [vmem:[%s241 + $0xb0] sm:$0xff] %v2256
        %2289 = vst [vmem:[%s241 + $0xb8] sm:$0xff] %v2257
        %2290 = vst [vmem:[%s241 + $0xc0] sm:$0xff] %v2258
        %2291 = vst [vmem:[%s241 + $0xc8] sm:$0xff] %v2259
        %2292 = vst [vmem:[%s241 + $0xd0] sm:$0xff] %v2260
        %2293 = vst [vmem:[%s241 + $0xd8] sm:$0xff] %v2261
        %2294 = vst [vmem:[%s241 + $0xe0] sm:$0xff] %v2262
        %2295 = vst [vmem:[%s241 + $0xe8] sm:$0xff] %v2263
        %2296 = vst [vmem:[%s241 + $0xf0] sm:$0xff] %v2264
        %2297 = vst [vmem:[%s241 + $0xf8] sm:$0xff] %v2265
        %s2298 = smul.u32 32, %s17
        %p2299 = scmp.lt.s32.totalorder %s2298, 63
        %s2300 = scalar_select %p2299, %s2298, 63
        %s2301 = smul.addr %s2300, 8
        %s2302 = scalar_lea.vmem %s4, %s2301
        // Predicated region
        $region49: #{net_forward.5} parent=35 // pred_check
          %p2303 = pneg %p124
        $region50: #{net_forward.5} parent=35 // pred_check_branch
          %2305 = sbr.rel (%p2303) target = $region52
        $region51: #{net_forward.5} parent=35 // pred_region
          %s2306 = smul.u32 32, %s17
        $region52: #{net_forward.5} parent=35 // pred_fallthru
          _
      $region36: #{net_forward.5} parent=5 // pred_fallthru
        _
      %p2307 = scmp.le.s32.totalorder 2, %s12
      // Predicated region
      $region53: #{net_forward.5} parent=5 // pred_check
        %p2308 = pneg %p2307
      $region54: #{net_forward.5} parent=5 // pred_check_branch
        %2310 = sbr.rel (%p2308) target = $region56
      $region55: #{net_forward.5} parent=5 // pred_region
        %s2311 = ssub.s32 %s12, 2
        // Predicated region
        $region57: #{net_forward.5} parent=55 // pred_check
          %p2312 = pneg %p130
        $region58: #{net_forward.5} parent=55 // pred_check_branch
          %2314 = sbr.rel (%p2312) target = $region60
        $region59: #{net_forward.5} parent=55 // pred_region
          %s2315 = smul.u32 32, %s18
          %p2316 = scmp.lt.s32.totalorder %s2315, 63
          %s2317 = scalar_select %p2316, %s2315, 63
          %s2318 = smul.addr %s2317, 8
          %s2319 = scalar_lea.vmem %s4, %s2318
        $region60: #{net_forward.5} parent=55 // pred_fallthru
          _
      $region56: #{net_forward.5} parent=5 // pred_fallthru
        _
    $region6: #{net_forward.5} parent=1 // loop_footer
      %s16 = sadd.s32 1, %s12
    $region7: #{net_forward.5} parent=1 // loop_footer_branch
      %11 = sbr.rel target = $region3
    $region8: #{net_forward.5} parent=1 // loop_exit
      _
    %2320 = vsyncpa [#allocation3], 1
    %s2321 = scalar_lea.sflag [#allocation3], 1
    %2322 = vsyncpa %s2321, 1
    %2323 = vsyncpa [#allocation5], 1

// kernel: net_forward.6
$region0: #{net_forward.6}
  #allocation0 [shape = 'u32[]', space=smem, size = 0x4, offset = 0x4, fixed_abs, tag = 'smem constant byte address 0x4 - core index']
  #allocation1 [shape = 'u32[144,128]{1,0:T(1,128)}', space=vmem, size = 0x12000, scoped, tag = 'internal scratch']
  %s0 = inlined_call_operand.vmem [shape: f32[288,250], index: 0, kind: input, shape index: {}]
  %s1 = inlined_call_operand.vmem [shape: f32[5,250], index: 1, kind: input, shape index: {}]
  %s2 = inlined_call_operand.vmem [shape: bf16[288,500], index: 2, kind: input, shape index: {}]
  %s3 = inlined_call_operand.vmem [shape: bf16[500,128], index: 3, kind: input, shape index: {}]
  %s4 = inlined_call_operand.vmem [shape: f32[1,128], index: 4, kind: input, shape index: {}]
  %s5 = inlined_call_operand.vmem [shape: f32[288,128], index: 5, kind: output, shape index: {}]
  %s6 = sld [smem:[#allocation0]]
  $region53: #{net_forward.6} parent=0
    _
  %s8 = ssub.s32 1, %s6
  %s9 = scalar_select 0, %s8, %s6
  loop: start=0, step=1, limit=4
  $region2: #{net_forward.6} parent=0 // loop_pre_header
    _
  $region3: #{net_forward.6} parent=0 // loop_header
    %s11 = sphi 0, %s15
    %p12 = scmp.ge.s32.totalorder %s11, 4
    %s21 = sphi 0, %s23
    %s24 = sphi 0, %s21
    %s25 = sphi 0, %s24
    %s41 = sphi 0, %s25
    %s45 = sphi 0, %s45
    %s47 = sphi 0, %s45
    %s48 = sphi 0, %s47
    %s62 = sphi 0, %s48
    %s68 = sphi 0, %s70
    %s71 = sphi 0, %s68
    %s72 = sphi 0, %s71
    %s88 = sphi 0, %s72
    %s92 = sphi 0, %s92
    %s94 = sphi 0, %s92
    %s95 = sphi 0, %s94
    %s109 = sphi 0, %s95
    %s113 = sphi 0, %s113
    %s115 = sphi 0, %s113
    %s116 = sphi 0, %s115
    %s130 = sphi 0, %s116
    %s136 = sphi 0, %s138
    %s139 = sphi 0, %s136
    %s140 = sphi 0, %s139
    %s156 = sphi 0, %s140
  $region4: #{net_forward.6} parent=0 // loop_header_branch
    %14 = sbr.rel (%p12) target = $region8
  $region5: #{net_forward.6} parent=0 // loop_body
    %s16 = ssub.s32 %s11, 1
    %s17 = ssub.s32 %s11, 2
    %s18 = sadd.s32 %s11, 1
    %s19 = ssub.s32 %s11, %s18
    %p20 = scmp.eq.s32.totalorder %s19, 0
    %s22 = sadd.s32 %s21, 1
    %s23 = scalar_select %p20, %s21, %s22
    %p26 = pneg %p20
    %p27 = scmp.eq.s32.totalorder %s11, 1
    %p28 = por %p26, %p27
    %p29 = scmp.ne.s32.totalorder %s21, %s24
    %p30 = scmp.eq.s32.totalorder %s11, 0
    %p31 = por %p29, %p30
    %p32 = scmp.ne.s32.totalorder %s21, %s24
    %p33 = scmp.eq.s32.totalorder %s16, 1
    %p34 = por %p32, %p33
    %p35 = scmp.ne.s32.totalorder %s24, %s25
    %p36 = scmp.eq.s32.totalorder %s16, 0
    %p37 = por %p35, %p36
    %p38 = scmp.ne.s32.totalorder %s24, %s25
    %p39 = scmp.eq.s32.totalorder %s17, 1
    %p40 = por %p38, %p39
    %p42 = scmp.ne.s32.totalorder %s25, %s41
    %p43 = scmp.eq.s32.totalorder %s17, 0
    %p44 = por %p42, %p43
    %s46 = sadd.s32 %s45, 1
    %p49 = scmp.eq.s32.totalorder %s11, 1
    %p50 = scmp.ne.s32.totalorder %s45, %s47
    %p51 = scmp.eq.s32.totalorder %s11, 0
    %p52 = por %p50, %p51
    %p53 = scmp.ne.s32.totalorder %s45, %s47
    %p54 = scmp.eq.s32.totalorder %s16, 1
    %p55 = por %p53, %p54
    %p56 = scmp.ne.s32.totalorder %s47, %s48
    %p57 = scmp.eq.s32.totalorder %s16, 0
    %p58 = por %p56, %p57
    %p59 = scmp.ne.s32.totalorder %s47, %s48
    %p60 = scmp.eq.s32.totalorder %s17, 1
    %p61 = por %p59, %p60
    %p63 = scmp.ne.s32.totalorder %s48, %s62
    %p64 = scmp.eq.s32.totalorder %s17, 0
    %p65 = por %p63, %p64
    %s66 = ssub.s32 %s11, %s18
    %p67 = scmp.eq.s32.totalorder %s66, 0
    %s69 = sadd.s32 %s68, 1
    %s70 = scalar_select %p67, %s68, %s69
    %p73 = pneg %p67
    %p74 = scmp.eq.s32.totalorder %s11, 1
    %p75 = por %p73, %p74
    %p76 = scmp.ne.s32.totalorder %s68, %s71
    %p77 = scmp.eq.s32.totalorder %s11, 0
    %p78 = por %p76, %p77
    %p79 = scmp.ne.s32.totalorder %s68, %s71
    %p80 = scmp.eq.s32.totalorder %s16, 1
    %p81 = por %p79, %p80
    %p82 = scmp.ne.s32.totalorder %s71, %s72
    %p83 = scmp.eq.s32.totalorder %s16, 0
    %p84 = por %p82, %p83
    %p85 = scmp.ne.s32.totalorder %s71, %s72
    %p86 = scmp.eq.s32.totalorder %s17, 1
    %p87 = por %p85, %p86
    %p89 = scmp.ne.s32.totalorder %s72, %s88
    %p90 = scmp.eq.s32.totalorder %s17, 0
    %p91 = por %p89, %p90
    %s93 = sadd.s32 %s92, 1
    %p96 = scmp.eq.s32.totalorder %s11, 1
    %p97 = scmp.ne.s32.totalorder %s92, %s94
    %p98 = scmp.eq.s32.totalorder %s11, 0
    %p99 = por %p97, %p98
    %p100 = scmp.ne.s32.totalorder %s92, %s94
    %p101 = scmp.eq.s32.totalorder %s16, 1
    %p102 = por %p100, %p101
    %p103 = scmp.ne.s32.totalorder %s94, %s95
    %p104 = scmp.eq.s32.totalorder %s16, 0
    %p105 = por %p103, %p104
    %p106 = scmp.ne.s32.totalorder %s94, %s95
    %p107 = scmp.eq.s32.totalorder %s17, 1
    %p108 = por %p106, %p107
    %p110 = scmp.ne.s32.totalorder %s95, %s109
    %p111 = scmp.eq.s32.totalorder %s17, 0
    %p112 = por %p110, %p111
    %s114 = sadd.s32 %s113, 1
    %p117 = scmp.eq.s32.totalorder %s11, 1
    %p118 = scmp.ne.s32.totalorder %s113, %s115
    %p119 = scmp.eq.s32.totalorder %s11, 0
    %p120 = por %p118, %p119
    %p121 = scmp.ne.s32.totalorder %s113, %s115
    %p122 = scmp.eq.s32.totalorder %s16, 1
    %p123 = por %p121, %p122
    %p124 = scmp.ne.s32.totalorder %s115, %s116
    %p125 = scmp.eq.s32.totalorder %s16, 0
    %p126 = por %p124, %p125
    %p127 = scmp.ne.s32.totalorder %s115, %s116
    %p128 = scmp.eq.s32.totalorder %s17, 1
    %p129 = por %p127, %p128
    %p131 = scmp.ne.s32.totalorder %s116, %s130
    %p132 = scmp.eq.s32.totalorder %s17, 0
    %p133 = por %p131, %p132
    %s134 = ssub.s32 %s11, %s18
    %p135 = scmp.eq.s32.totalorder %s134, 0
    %s137 = sadd.s32 %s136, 1
    %s138 = scalar_select %p135, %s136, %s137
    %p141 = pneg %p135
    %p142 = scmp.eq.s32.totalorder %s11, 1
    %p143 = por %p141, %p142
    %p144 = scmp.ne.s32.totalorder %s136, %s139
    %p145 = scmp.eq.s32.totalorder %s11, 0
    %p146 = por %p144, %p145
    %p147 = scmp.ne.s32.totalorder %s136, %s139
    %p148 = scmp.eq.s32.totalorder %s16, 1
    %p149 = por %p147, %p148
    %p150 = scmp.ne.s32.totalorder %s139, %s140
    %p151 = scmp.eq.s32.totalorder %s16, 0
    %p152 = por %p150, %p151
    %p153 = scmp.ne.s32.totalorder %s139, %s140
    %p154 = scmp.eq.s32.totalorder %s17, 1
    %p155 = por %p153, %p154
    %p157 = scmp.ne.s32.totalorder %s140, %s156
    %p158 = scmp.eq.s32.totalorder %s17, 0
    %p159 = por %p157, %p158
    %p160 = scmp.le.s32.totalorder 1, %s11
    %p161 = scmp.lt.s32.totalorder %s11, 3
    %p162 = pnand %p160, %p161
    %p163 = pneg %p162
    // Predicated region
    $region9: #{net_forward.6} parent=5 // pred_check
      _
    $region10: #{net_forward.6} parent=5 // pred_check_branch
      %165 = sbr.rel (%p162) target = $region12
    $region11: #{net_forward.6} parent=5 // pred_region
      %s166 = ssub.s32 %s11, 1
      // Predicated region
      $region13: #{net_forward.6} parent=11 // pred_check
        %p167 = pneg %p58
      $region14: #{net_forward.6} parent=11 // pred_check_branch
        %169 = sbr.rel (%p167) target = $region16
      $region15: #{net_forward.6} parent=11 // pred_region
        _
      $region16: #{net_forward.6} parent=11 // pred_fallthru
        _
      // Predicated region
      $region17: #{net_forward.6} parent=11 // pred_check
        %p170 = pneg %p105
      $region18: #{net_forward.6} parent=11 // pred_check_branch
        %172 = sbr.rel (%p170) target = $region20
      $region19: #{net_forward.6} parent=11 // pred_region
        _
      $region20: #{net_forward.6} parent=11 // pred_fallthru
        _
      // Predicated region
      $region21: #{net_forward.6} parent=11 // pred_check
        %p173 = pneg %p126
      $region22: #{net_forward.6} parent=11 // pred_check_branch
        %175 = sbr.rel (%p173) target = $region24
      $region23: #{net_forward.6} parent=11 // pred_region
        _
      $region24: #{net_forward.6} parent=11 // pred_fallthru
        _
    $region12: #{net_forward.6} parent=5 // pred_fallthru
      _
    %p176 = scmp.lt.s32.totalorder %s11, 2
    // Predicated region
    $region25: #{net_forward.6} parent=5 // pred_check
      %p177 = pneg %p176
    $region26: #{net_forward.6} parent=5 // pred_check_branch
      %179 = sbr.rel (%p177) target = $region28
    $region27: #{net_forward.6} parent=5 // pred_region
      // Predicated region
      $region29: #{net_forward.6} parent=27 // pred_check
        %p180 = pneg %p31
      $region30: #{net_forward.6} parent=27 // pred_check_branch
        %182 = sbr.rel (%p180) target = $region32
      $region31: #{net_forward.6} parent=27 // pred_region
        %s183 = smul.u32 18, %s11
        %p184 = scmp.lt.s32.totalorder %s183, 35
        %s185 = scalar_select %p184, %s183, 35
        %s186 = smul.addr %s185, 2
        %s187 = smul.addr %s186, 8
        %s188 = scalar_lea.vmem %s0, %s187
        %s189 = smul.u32 18, %s11
      $region32: #{net_forward.6} parent=27 // pred_fallthru
        _
      // Predicated region
      $region33: #{net_forward.6} parent=27 // pred_check
        %p190 = pneg %p78
      $region34: #{net_forward.6} parent=27 // pred_check_branch
        %192 = sbr.rel (%p190) target = $region36
      $region35: #{net_forward.6} parent=27 // pred_region
        %s193 = smul.u32 18, %s11
        %p194 = scmp.lt.s32.totalorder %s193, 35
        %s195 = scalar_select %p194, %s193, 35
        %s196 = smul.addr %s195, 4
        %s197 = smul.addr %s196, 4
        %s198 = scalar_lea.vmem %s2, %s197
        %s199 = smul.u32 18, %s11
      $region36: #{net_forward.6} parent=27 // pred_fallthru
        _
    $region28: #{net_forward.6} parent=5 // pred_fallthru
      _
    %p200 = scmp.le.s32.totalorder 1, %s11
    %p201 = scmp.lt.s32.totalorder %s11, 3
    %p202 = pnand %p200, %p201
    %p203 = pneg %p202
    // Predicated region
    $region37: #{net_forward.6} parent=5 // pred_check
      _
    $region38: #{net_forward.6} parent=5 // pred_check_branch
      %205 = sbr.rel (%p202) target = $region40
    $region39: #{net_forward.6} parent=5 // pred_region
      %s206 = ssub.s32 %s11, 1
      %s207 = smul.u32 18, %s16
      %p208 = scmp.lt.s32.totalorder %s207, 35
      %s209 = scalar_select %p208, %s207, 35
      %s210 = smul.addr %s209, 2
      %s211 = smul.addr %s210, 8
      %s212 = scalar_lea.vmem %s0, %s211
      %p213 = pneg %p37
      %p214 = pneg %p34
      %p215 = pneg %p58
      %p216 = pneg %p55
      %s217 = smul.u32 18, %s16
      %p218 = scmp.lt.s32.totalorder %s217, 35
      %s219 = scalar_select %p218, %s217, 35
      %s220 = smul.addr %s219, 4
      %s221 = smul.addr %s220, 4
      %s222 = scalar_lea.vmem %s2, %s221
      %p223 = pneg %p84
      %p224 = pneg %p81
      %p225 = pneg %p105
      %p226 = pneg %p102
      %p227 = pneg %p126
      %p228 = pneg %p123
      %p229 = pneg %p152
      %p230 = pneg %p149
      %s231 = smul.u32 18, %s16
      %p232 = scmp.lt.s32.totalorder %s231, 35
      %s233 = scalar_select %p232, %s231, 35
      %s234 = smul.addr %s233, 8
      %s235 = scalar_lea.vmem %s5, %s234
      %s236 = smul.u32 18, %s16
      %p237 = scmp.lt.s32.totalorder %s236, 35
      %s238 = scalar_select %p237, %s236, 35
      %s239 = smul.addr %s238, 2
      %s240 = smul.addr %s239, 8
      %s241 = scalar_lea.vmem %s0, %s240
      %s242 = smul.u32 18, %s16
      %s243 = smul.u32 18, %s16
      %p244 = scmp.lt.s32.totalorder %s243, 35
      %s245 = scalar_select %p244, %s243, 35
      %s246 = smul.addr %s245, 4
      %s247 = smul.addr %s246, 4
      %s248 = scalar_lea.vmem %s2, %s247
      %s249 = smul.u32 18, %s16
      %s250 = smul.u32 18, %s16
      %p251 = scmp.lt.s32.totalorder %s250, 35
      %s252 = scalar_select %p251, %s250, 35
      %s253 = smul.addr %s252, 8
      %s254 = scalar_lea.vmem %s5, %s253
      %s255 = smul.u32 18, %s16
      %v257 = vld [vmem:[%s248] sm:$0xff]
      %v258 = vld [vmem:[%s248 + $0x8] sm:$0xff]
      %v259 = vld [vmem:[%s248 + $0x10] sm:$0xff]
      %v260 = vld [vmem:[%s248 + $0x18] sm:$0xff]
      %v261 = vld [vmem:[%s248 + $0x20] sm:$0xff]
      %v262 = vld [vmem:[%s248 + $0x28] sm:$0xff]
      %v263 = vld [vmem:[%s248 + $0x30] sm:$0xff]
      %v264 = vld [vmem:[%s248 + $0x38] sm:$0xff]
      %v265 = vld [vmem:[%s248 + $0x40] sm:$0xff]
      %v266 = vld [vmem:[%s248 + $0x48] sm:$0xff]
      %v267 = vld [vmem:[%s248 + $0x50] sm:$0xff]
      %v268 = vld [vmem:[%s248 + $0x58] sm:$0xff]
      %v269 = vld [vmem:[%s248 + $0x60] sm:$0xff]
      %v270 = vld [vmem:[%s248 + $0x68] sm:$0xff]
      %v271 = vld [vmem:[%s248 + $0x70] sm:$0xff]
      %v272 = vld [vmem:[%s248 + $0x78] sm:$0xff]
      %v273 = vld [vmem:[%s248 + $0x80] sm:$0xff]
      %v274 = vld [vmem:[%s248 + $0x88] sm:$0xff]
      %v275 = vld [vmem:[%s248 + $0x90] sm:$0xff]
      %v276 = vld [vmem:[%s248 + $0x98] sm:$0xff]
      %v277 = vld [vmem:[%s248 + $0xa0] sm:$0xff]
      %v278 = vld [vmem:[%s248 + $0xa8] sm:$0xff]
      %v279 = vld [vmem:[%s248 + $0xb0] sm:$0xff]
      %v280 = vld [vmem:[%s248 + $0xb8] sm:$0xff]
      %v281 = vld [vmem:[%s248 + $0xc0] sm:$0xff]
      %v282 = vld [vmem:[%s248 + $0xc8] sm:$0xff]
      %v283 = vld [vmem:[%s248 + $0xd0] sm:$0xff]
      %v284 = vld [vmem:[%s248 + $0xd8] sm:$0xff]
      %v285 = vld [vmem:[%s248 + $0xe0] sm:$0xff]
      %v286 = vld [vmem:[%s248 + $0xe8] sm:$0xff]
      %v287 = vld [vmem:[%s248 + $0xf0] sm:$0xff]
      %v288 = vld [vmem:[%s248 + $0xf8] sm:$0xff]
      %v289 = vld [vmem:[%s248 + $0x100] sm:$0xff]
      %v290 = vld [vmem:[%s248 + $0x108] sm:$0xff]
      %v291 = vld [vmem:[%s248 + $0x110] sm:$0xff]
      %v292 = vld [vmem:[%s248 + $0x118] sm:$0xff]
      %v293 = vld [vmem:[%s3] sm:$0xf]
      %v294 = vld [vmem:[%s3 + $0x4] sm:$0xf]
      %v295 = vld [vmem:[%s3 + $0x8] sm:$0xf]
      %v296 = vld [vmem:[%s3 + $0xc] sm:$0xf]
      %v297 = vld [vmem:[%s3 + $0x10] sm:$0xf]
      %v298 = vld [vmem:[%s3 + $0x14] sm:$0xf]
      %v299 = vld [vmem:[%s3 + $0x18] sm:$0xf]
      %v300 = vld [vmem:[%s3 + $0x1c] sm:$0xf]
      %v301 = vld [vmem:[%s3 + $0x20] sm:$0xf]
      %v302 = vld [vmem:[%s3 + $0x24] sm:$0xf]
      %v303 = vld [vmem:[%s3 + $0x28] sm:$0xf]
      %v304 = vld [vmem:[%s3 + $0x2c] sm:$0xf]
      %v305 = vld [vmem:[%s3 + $0x30] sm:$0xf]
      %v306 = vld [vmem:[%s3 + $0x34] sm:$0xf]
      %v307 = vld [vmem:[%s3 + $0x38] sm:$0xf]
      %v308 = vld [vmem:[%s3 + $0x3c] sm:$0xf]
      %v309 = vld [vmem:[%s3 + $0x40] sm:$0xf]
      %v310 = vld [vmem:[%s3 + $0x44] sm:$0xf]
      %v311 = vld [vmem:[%s3 + $0x48] sm:$0xf]
      %v312 = vld [vmem:[%s3 + $0x4c] sm:$0xf]
      %v313 = vld [vmem:[%s3 + $0x50] sm:$0xf]
      %v314 = vld [vmem:[%s3 + $0x54] sm:$0xf]
      %v315 = vld [vmem:[%s3 + $0x58] sm:$0xf]
      %v316 = vld [vmem:[%s3 + $0x5c] sm:$0xf]
      %v317 = vld [vmem:[%s3 + $0x60] sm:$0xf]
      %v318 = vld [vmem:[%s3 + $0x64] sm:$0xf]
      %v319 = vld [vmem:[%s3 + $0x68] sm:$0xf]
      %v320 = vld [vmem:[%s3 + $0x6c] sm:$0xf]
      %v321 = vld [vmem:[%s3 + $0x70] sm:$0xf]
      %v322 = vld [vmem:[%s3 + $0x74] sm:$0xf]
      %v323 = vld [vmem:[%s3 + $0x78] sm:$0xf]
      %v324 = vld [vmem:[%s3 + $0x7c] sm:$0xf]
      %v325 = vld [vmem:[%s3 + $0x80] sm:$0xf]
      %v326 = vld [vmem:[%s3 + $0x84] sm:$0xf]
      %v327 = vld [vmem:[%s3 + $0x88] sm:$0xf]
      %v328 = vld [vmem:[%s3 + $0x8c] sm:$0xf]
      %v329 = vld [vmem:[%s3 + $0x90] sm:$0xf]
      %v330 = vld [vmem:[%s3 + $0x94] sm:$0xf]
      %v331 = vld [vmem:[%s3 + $0x98] sm:$0xf]
      %v332 = vld [vmem:[%s3 + $0x9c] sm:$0xf]
      %v333 = vld [vmem:[%s3 + $0xa0] sm:$0xf]
      %v334 = vld [vmem:[%s3 + $0xa4] sm:$0xf]
      %v335 = vld [vmem:[%s3 + $0xa8] sm:$0xf]
      %v336 = vld [vmem:[%s3 + $0xac] sm:$0xf]
      %v337 = vld [vmem:[%s3 + $0xb0] sm:$0xf]
      %v338 = vld [vmem:[%s3 + $0xb4] sm:$0xf]
      %v339 = vld [vmem:[%s3 + $0xb8] sm:$0xf]
      %v340 = vld [vmem:[%s3 + $0xbc] sm:$0xf]
      %v341 = vld [vmem:[%s3 + $0xc0] sm:$0xf]
      %v342 = vld [vmem:[%s3 + $0xc4] sm:$0xf]
      %v343 = vld [vmem:[%s3 + $0xc8] sm:$0xf]
      %v344 = vld [vmem:[%s3 + $0xcc] sm:$0xf]
      %v345 = vld [vmem:[%s3 + $0xd0] sm:$0xf]
      %v346 = vld [vmem:[%s3 + $0xd4] sm:$0xf]
      %v347 = vld [vmem:[%s3 + $0xd8] sm:$0xf]
      %v348 = vld [vmem:[%s3 + $0xdc] sm:$0xf]
      %v349 = vld [vmem:[%s3 + $0xe0] sm:$0xf]
      %v350 = vld [vmem:[%s3 + $0xe4] sm:$0xf]
      %v351 = vld [vmem:[%s3 + $0xe8] sm:$0xf]
      %v352 = vld [vmem:[%s3 + $0xec] sm:$0xf]
      %v353 = vld [vmem:[%s3 + $0xf0] sm:$0xf]
      %v354 = vld [vmem:[%s3 + $0xf4] sm:$0xf]
      %v355 = vld [vmem:[%s3 + $0xf8] sm:$0x3]
      %v356 = vld [vmem:[%s4] sm:$0x1]
      %v358 = vlaneseq
      %v359 = vshrl.u32 %v358, 7
      %v360 = vsub.s32 0, %v359
      %v361 = vrot.slane %v356, %v360
      %v399 = vunpack.c.l.b16 %v257
      %v400 = vunpack.c.h.b16 %v257
      %v401 = vunpack.c.l.b16 %v258
      %v402 = vunpack.c.h.b16 %v258
      %v403 = vunpack.c.l.b16 %v259
      %v404 = vunpack.c.h.b16 %v259
      %v405 = vunpack.c.l.b16 %v260
      %v406 = vunpack.c.h.b16 %v260
      %v407 = vunpack.c.l.b16 %v261
      %v408 = vunpack.c.h.b16 %v261
      %v409 = vunpack.c.l.b16 %v262
      %v410 = vunpack.c.h.b16 %v262
      %v411 = vunpack.c.l.b16 %v263
      %v412 = vunpack.c.h.b16 %v263
      %v413 = vunpack.c.l.b16 %v264
      %v414 = vunpack.c.h.b16 %v264
      %v415 = vunpack.c.l.b16 %v265
      %v416 = vunpack.c.h.b16 %v265
      %v417 = vunpack.c.l.b16 %v266
      %v418 = vunpack.c.h.b16 %v266
      %v419 = vunpack.c.l.b16 %v267
      %v420 = vunpack.c.h.b16 %v267
      %v421 = vunpack.c.l.b16 %v268
      %v422 = vunpack.c.h.b16 %v268
      %v423 = vunpack.c.l.b16 %v269
      %v424 = vunpack.c.h.b16 %v269
      %v425 = vunpack.c.l.b16 %v270
      %v426 = vunpack.c.h.b16 %v270
      %v427 = vunpack.c.l.b16 %v271
      %v428 = vunpack.c.h.b16 %v271
      %v429 = vunpack.c.l.b16 %v272
      %v430 = vunpack.c.h.b16 %v272
      %v431 = vunpack.c.l.b16 %v273
      %v432 = vunpack.c.h.b16 %v273
      %v433 = vunpack.c.l.b16 %v274
      %v434 = vunpack.c.h.b16 %v274
      %v435 = vunpack.c.l.b16 %v275
      %v436 = vunpack.c.h.b16 %v275
      %v437 = vunpack.c.l.b16 %v276
      %v438 = vunpack.c.h.b16 %v276
      %v439 = vunpack.c.l.b16 %v277
      %v440 = vunpack.c.h.b16 %v277
      %v441 = vunpack.c.l.b16 %v278
      %v442 = vunpack.c.h.b16 %v278
      %v443 = vunpack.c.l.b16 %v279
      %v444 = vunpack.c.h.b16 %v279
      %v445 = vunpack.c.l.b16 %v280
      %v446 = vunpack.c.h.b16 %v280
      %v447 = vunpack.c.l.b16 %v281
      %v448 = vunpack.c.h.b16 %v281
      %v449 = vunpack.c.l.b16 %v282
      %v450 = vunpack.c.h.b16 %v282
      %v451 = vunpack.c.l.b16 %v283
      %v452 = vunpack.c.h.b16 %v283
      %v453 = vunpack.c.l.b16 %v284
      %v454 = vunpack.c.h.b16 %v284
      %v455 = vunpack.c.l.b16 %v285
      %v456 = vunpack.c.h.b16 %v285
      %v457 = vunpack.c.l.b16 %v286
      %v458 = vunpack.c.h.b16 %v286
      %v459 = vunpack.c.l.b16 %v287
      %v460 = vunpack.c.h.b16 %v287
      %v461 = vunpack.c.l.b16 %v288
      %v462 = vunpack.c.h.b16 %v288
      %v463 = vunpack.c.l.b16 %v289
      %v464 = vunpack.c.h.b16 %v289
      %v465 = vunpack.c.l.b16 %v290
      %v466 = vunpack.c.h.b16 %v290
      %v467 = vunpack.c.l.b16 %v291
      %v468 = vunpack.c.h.b16 %v291
      %v469 = vunpack.c.l.b16 %v292
      %v470 = vunpack.c.h.b16 %v292
      %v471 = vpack.c.b16 %v403, %v399
      %v472 = vpack.c.b16 %v404, %v400
      %v473 = vpack.c.b16 %v405, %v401
      %v474 = vpack.c.b16 %v406, %v402
      %v475 = vpack.c.b16 %v411, %v407
      %v476 = vpack.c.b16 %v412, %v408
      %v477 = vpack.c.b16 %v413, %v409
      %v478 = vpack.c.b16 %v414, %v410
      %v479 = vpack.c.b16 %v419, %v415
      %v480 = vpack.c.b16 %v420, %v416
      %v481 = vpack.c.b16 %v421, %v417
      %v482 = vpack.c.b16 %v422, %v418
      %v483 = vpack.c.b16 %v427, %v423
      %v484 = vpack.c.b16 %v428, %v424
      %v485 = vpack.c.b16 %v429, %v425
      %v486 = vpack.c.b16 %v430, %v426
      %v487 = vpack.c.b16 %v435, %v431
      %v488 = vpack.c.b16 %v436, %v432
      %v489 = vpack.c.b16 %v437, %v433
      %v490 = vpack.c.b16 %v438, %v434
      %v491 = vpack.c.b16 %v443, %v439
      %v492 = vpack.c.b16 %v444, %v440
      %v493 = vpack.c.b16 %v445, %v441
      %v494 = vpack.c.b16 %v446, %v442
      %v495 = vpack.c.b16 %v451, %v447
      %v496 = vpack.c.b16 %v452, %v448
      %v497 = vpack.c.b16 %v453, %v449
      %v498 = vpack.c.b16 %v454, %v450
      %v499 = vpack.c.b16 %v459, %v455
      %v500 = vpack.c.b16 %v460, %v456
      %v501 = vpack.c.b16 %v461, %v457
      %v502 = vpack.c.b16 %v462, %v458
      %v503 = vpack.c.b16 %v467, %v463
      %v504 = vpack.c.b16 %v468, %v464
      %v505 = vpack.c.b16 %v469, %v465
      %v506 = vpack.c.b16 %v470, %v466
      %v597 = vunpack.c.l.b16 %v293
      %v598 = vunpack.c.l.b16 %v294
      %v599 = vunpack.c.l.b16 %v295
      %v600 = vunpack.c.l.b16 %v296
      %v601 = vunpack.c.l.b16 %v297
      %v602 = vunpack.c.l.b16 %v298
      %v603 = vunpack.c.l.b16 %v299
      %v604 = vunpack.c.l.b16 %v300
      %v605 = vunpack.c.l.b16 %v301
      %v606 = vunpack.c.l.b16 %v302
      %v607 = vunpack.c.l.b16 %v303
      %v608 = vunpack.c.l.b16 %v304
      %v609 = vunpack.c.l.b16 %v305
      %v610 = vunpack.c.l.b16 %v306
      %v611 = vunpack.c.l.b16 %v307
      %v612 = vunpack.c.l.b16 %v308
      %v613 = vunpack.c.l.b16 %v309
      %v614 = vunpack.c.l.b16 %v310
      %v615 = vunpack.c.l.b16 %v311
      %v616 = vunpack.c.l.b16 %v312
      %v617 = vunpack.c.l.b16 %v313
      %v618 = vunpack.c.l.b16 %v314
      %v619 = vunpack.c.l.b16 %v315
      %v620 = vunpack.c.l.b16 %v316
      %v621 = vunpack.c.l.b16 %v317
      %v622 = vunpack.c.l.b16 %v318
      %v623 = vunpack.c.l.b16 %v319
      %v624 = vunpack.c.l.b16 %v320
      %v625 = vunpack.c.l.b16 %v321
      %v626 = vunpack.c.l.b16 %v322
      %v627 = vunpack.c.l.b16 %v323
      %v628 = vunpack.c.l.b16 %v324
      %v629 = vunpack.c.l.b16 %v325
      %v630 = vunpack.c.l.b16 %v326
      %v631 = vunpack.c.l.b16 %v327
      %v632 = vunpack.c.l.b16 %v328
      %v633 = vunpack.c.l.b16 %v329
      %v634 = vunpack.c.l.b16 %v330
      %v635 = vunpack.c.l.b16 %v331
      %v636 = vunpack.c.l.b16 %v332
      %v637 = vunpack.c.l.b16 %v333
      %v638 = vunpack.c.l.b16 %v334
      %v639 = vunpack.c.l.b16 %v335
      %v640 = vunpack.c.l.b16 %v336
      %v641 = vunpack.c.l.b16 %v337
      %v642 = vunpack.c.l.b16 %v338
      %v643 = vunpack.c.l.b16 %v339
      %v644 = vunpack.c.l.b16 %v340
      %v645 = vunpack.c.l.b16 %v341
      %v646 = vunpack.c.l.b16 %v342
      %v647 = vunpack.c.l.b16 %v343
      %v648 = vunpack.c.l.b16 %v344
      %v649 = vunpack.c.l.b16 %v345
      %v650 = vunpack.c.l.b16 %v346
      %v651 = vunpack.c.l.b16 %v347
      %v652 = vunpack.c.l.b16 %v348
      %v653 = vunpack.c.l.b16 %v349
      %v654 = vunpack.c.l.b16 %v350
      %v655 = vunpack.c.l.b16 %v351
      %v656 = vunpack.c.l.b16 %v352
      %v657 = vunpack.c.l.b16 %v353
      %v658 = vunpack.c.l.b16 %v354
      %v659 = vunpack.c.l.b16 %v355
      %v660 = vpack.c.b16 %v598, %v597
      %v661 = vpack.c.b16 %v600, %v599
      %v662 = vpack.c.b16 %v602, %v601
      %v663 = vpack.c.b16 %v604, %v603
      %v664 = vpack.c.b16 %v606, %v605
      %v665 = vpack.c.b16 %v608, %v607
      %v666 = vpack.c.b16 %v610, %v609
      %v667 = vpack.c.b16 %v612, %v611
      %v668 = vpack.c.b16 %v614, %v613
      %v669 = vpack.c.b16 %v616, %v615
      %v670 = vpack.c.b16 %v618, %v617
      %v671 = vpack.c.b16 %v620, %v619
      %v672 = vpack.c.b16 %v622, %v621
      %v673 = vpack.c.b16 %v624, %v623
      %v674 = vpack.c.b16 %v626, %v625
      %v675 = vpack.c.b16 %v628, %v627
      %v676 = vpack.c.b16 %v630, %v629
      %v677 = vpack.c.b16 %v632, %v631
      %v678 = vpack.c.b16 %v634, %v633
      %v679 = vpack.c.b16 %v636, %v635
      %v680 = vpack.c.b16 %v638, %v637
      %v681 = vpack.c.b16 %v640, %v639
      %v682 = vpack.c.b16 %v642, %v641
      %v683 = vpack.c.b16 %v644, %v643
      %v684 = vpack.c.b16 %v646, %v645
      %v685 = vpack.c.b16 %v648, %v647
      %v686 = vpack.c.b16 %v650, %v649
      %v687 = vpack.c.b16 %v652, %v651
      %v688 = vpack.c.b16 %v654, %v653
      %v689 = vpack.c.b16 %v656, %v655
      %v690 = vpack.c.b16 %v658, %v657
      %v691 = vpack.c.b16 %v659, %v659
      %vm723 = vcmask 949248
      %v725 = vsel %vm723, %v474, 0
      %v728 = vsel %vm723, %v478, 0
      %v731 = vsel %vm723, %v482, 0
      %v734 = vsel %vm723, %v486, 0
      %v737 = vsel %vm723, %v490, 0
      %v740 = vsel %vm723, %v494, 0
      %v743 = vsel %vm723, %v498, 0
      %v746 = vsel %vm723, %v502, 0
      %v749 = vsel %vm723, %v506, 0
      %vm751 = vcmask 1041408
      %v753 = vsel %vm751, %v691, 0
      %755 = vmatprep.subr.bf16.mxu0 0
      %756 = vmatpush1.bf16.msra.mxu0 %v660
      %757 = vmatprep.subr.bf16.mxu0 0
      %758 = vmatpush1.bf16.msra.mxu0 %v661
      %759 = vmatprep.subr.bf16.mxu0 0
      %760 = vmatpush1.bf16.msra.mxu0 %v662
      %761 = vmatprep.subr.bf16.mxu0 0
      %762 = vmatpush1.bf16.msra.mxu0 %v663
      %763 = vmatprep.subr.bf16.mxu0 0
      %764 = vmatpush1.bf16.msra.mxu0 %v664
      %765 = vmatprep.subr.bf16.mxu0 0
      %766 = vmatpush1.bf16.msra.mxu0 %v665
      %767 = vmatprep.subr.bf16.mxu0 0
      %768 = vmatpush1.bf16.msra.mxu0 %v666
      %769 = vmatprep.subr.bf16.mxu0 0
      %770 = vmatpush1.bf16.msra.mxu0 %v667
      %771 = vmatprep.subr.bf16.mxu0 0
      %772 = vmatpush1.bf16.msra.mxu0 %v668
      %773 = vmatprep.subr.bf16.mxu0 0
      %774 = vmatpush1.bf16.msra.mxu0 %v669
      %775 = vmatprep.subr.bf16.mxu0 0
      %776 = vmatpush1.bf16.msra.mxu0 %v670
      %777 = vmatprep.subr.bf16.mxu0 0
      %778 = vmatpush1.bf16.msra.mxu0 %v671
      %779 = vmatprep.subr.bf16.mxu0 0
      %780 = vmatpush1.bf16.msra.mxu0 %v672
      %781 = vmatprep.subr.bf16.mxu0 0
      %782 = vmatpush1.bf16.msra.mxu0 %v673
      %783 = vmatprep.subr.bf16.mxu0 0
      %784 = vmatpush1.bf16.msra.mxu0 %v674
      %785 = vmatprep.subr.bf16.mxu0 0
      %786 = vmatpush1.bf16.msra.mxu0 %v675
      %787 = vmatprep.mubr.bf16.mxu0 %v472
      %788 = vmatmul.mubr.bf16.gmra.mrb[0].mxu0 %v471
      %v789 = vpop.f32.mrb[0].mxu0
      %v790 = vadd.f32 %v361, %v789
      %v791 = vpop.f32.mrb[0].mxu0
      %v792 = vpop.f32.mrb[0].mxu0
      %v793 = vadd.f32 %v361, %v792
      %v794 = vpop.f32.mrb[0].mxu0
      %795 = vmatprep.mubr.bf16.mxu0 %v476
      %796 = vmatmul.mubr.bf16.gmra.mrb[0].mxu0 %v475
      %v797 = vpop.f32.mrb[0].mxu0
      %v798 = vadd.f32 %v361, %v797
      %v799 = vpop.f32.mrb[0].mxu0
      %v800 = vpop.f32.mrb[0].mxu0
      %v801 = vadd.f32 %v361, %v800
      %v802 = vpop.f32.mrb[0].mxu0
      %803 = vmatprep.mubr.bf16.mxu0 %v480
      %804 = vmatmul.mubr.bf16.gmra.mrb[0].mxu0 %v479
      %v805 = vpop.f32.mrb[0].mxu0
      %v806 = vadd.f32 %v361, %v805
      %v807 = vpop.f32.mrb[0].mxu0
      %v808 = vpop.f32.mrb[0].mxu0
      %v809 = vadd.f32 %v361, %v808
      %v810 = vpop.f32.mrb[0].mxu0
      %811 = vmatprep.mubr.bf16.mxu0 %v484
      %812 = vmatmul.mubr.bf16.gmra.mrb[0].mxu0 %v483
      %v813 = vpop.f32.mrb[0].mxu0
      %v814 = vadd.f32 %v361, %v813
      %v815 = vpop.f32.mrb[0].mxu0
      %v816 = vpop.f32.mrb[0].mxu0
      %v817 = vadd.f32 %v361, %v816
      %v818 = vpop.f32.mrb[0].mxu0
      %819 = vmatprep.mubr.bf16.mxu0 %v488
      %820 = vmatmul.mubr.bf16.gmra.mrb[0].mxu0 %v487
      %v821 = vpop.f32.mrb[0].mxu0
      %v822 = vadd.f32 %v361, %v821
      %v823 = vpop.f32.mrb[0].mxu0
      %v824 = vpop.f32.mrb[0].mxu0
      %v825 = vadd.f32 %v361, %v824
      %v826 = vpop.f32.mrb[0].mxu0
      %827 = vmatprep.mubr.bf16.mxu0 %v492
      %828 = vmatmul.mubr.bf16.gmra.mrb[0].mxu0 %v491
      %v829 = vpop.f32.mrb[0].mxu0
      %v830 = vadd.f32 %v361, %v829
      %v831 = vpop.f32.mrb[0].mxu0
      %v832 = vpop.f32.mrb[0].mxu0
      %v833 = vadd.f32 %v361, %v832
      %v834 = vpop.f32.mrb[0].mxu0
      %835 = vmatprep.mubr.bf16.mxu0 %v496
      %836 = vmatmul.mubr.bf16.gmra.mrb[0].mxu0 %v495
      %v837 = vpop.f32.mrb[0].mxu0
      %v838 = vadd.f32 %v361, %v837
      %v839 = vpop.f32.mrb[0].mxu0
      %v840 = vpop.f32.mrb[0].mxu0
      %v841 = vadd.f32 %v361, %v840
      %v842 = vpop.f32.mrb[0].mxu0
      %843 = vmatprep.mubr.bf16.mxu0 %v500
      %844 = vmatmul.mubr.bf16.gmra.mrb[0].mxu0 %v499
      %v845 = vpop.f32.mrb[0].mxu0
      %v846 = vadd.f32 %v361, %v845
      %v847 = vpop.f32.mrb[0].mxu0
      %v848 = vpop.f32.mrb[0].mxu0
      %v849 = vadd.f32 %v361, %v848
      %v850 = vpop.f32.mrb[0].mxu0
      %851 = vmatprep.mubr.bf16.mxu0 %v504
      %852 = vmatmul.mubr.bf16.gmra.mrb[0].mxu0 %v503
      %v853 = vpop.f32.mrb[0].mxu0
      %v854 = vadd.f32 %v361, %v853
      %v855 = vpop.f32.mrb[0].mxu0
      %v856 = vpop.f32.mrb[0].mxu0
      %v857 = vadd.f32 %v361, %v856
      %v858 = vpop.f32.mrb[0].mxu0
      %859 = vdwg.mxu0
      %860 = vmatprep.subr.bf16.mxu0 0
      %861 = vmatpush1.bf16.msra.mxu0 %v676
      %862 = vmatprep.subr.bf16.mxu0 0
      %863 = vmatpush1.bf16.msra.mxu0 %v677
      %864 = vmatprep.subr.bf16.mxu0 0
      %865 = vmatpush1.bf16.msra.mxu0 %v678
      %866 = vmatprep.subr.bf16.mxu0 0
      %867 = vmatpush1.bf16.msra.mxu0 %v679
      %868 = vmatprep.subr.bf16.mxu0 0
      %869 = vmatpush1.bf16.msra.mxu0 %v680
      %870 = vmatprep.subr.bf16.mxu0 0
      %871 = vmatpush1.bf16.msra.mxu0 %v681
      %872 = vmatprep.subr.bf16.mxu0 0
      %873 = vmatpush1.bf16.msra.mxu0 %v682
      %874 = vmatprep.subr.bf16.mxu0 0
      %875 = vmatpush1.bf16.msra.mxu0 %v683
      %876 = vmatprep.subr.bf16.mxu0 0
      %877 = vmatpush1.bf16.msra.mxu0 %v684
      %878 = vmatprep.subr.bf16.mxu0 0
      %879 = vmatpush1.bf16.msra.mxu0 %v685
      %880 = vmatprep.subr.bf16.mxu0 0
      %881 = vmatpush1.bf16.msra.mxu0 %v686
      %882 = vmatprep.subr.bf16.mxu0 0
      %883 = vmatpush1.bf16.msra.mxu0 %v687
      %884 = vmatprep.subr.bf16.mxu0 0
      %885 = vmatpush1.bf16.msra.mxu0 %v688
      %886 = vmatprep.subr.bf16.mxu0 0
      %887 = vmatpush1.bf16.msra.mxu0 %v689
      %888 = vmatprep.subr.bf16.mxu0 0
      %889 = vmatpush1.bf16.msra.mxu0 %v690
      %890 = vmatprep.subr.bf16.mxu0 0
      %891 = vmatpush1.bf16.msra.mxu0 %v753
      %892 = vmatprep.mubr.bf16.mxu0 %v725
      %893 = vmatmul.mubr.bf16.gmra.mrb[0].mxu0 %v473
      %v894 = vpop.f32.mrb[0].mxu0
      %v895 = vadd.f32 %v790, %v894
      %v896 = vpop.f32.mrb[0].mxu0
      %v897 = vpop.f32.mrb[0].mxu0
      %v898 = vadd.f32 %v793, %v897
      %v899 = vpop.f32.mrb[0].mxu0
      %900 = vmatprep.mubr.bf16.mxu0 %v728
      %901 = vmatmul.mubr.bf16.gmra.mrb[0].mxu0 %v477
      %v902 = vpop.f32.mrb[0].mxu0
      %v903 = vadd.f32 %v798, %v902
      %v904 = vpop.f32.mrb[0].mxu0
      %v905 = vpop.f32.mrb[0].mxu0
      %v906 = vadd.f32 %v801, %v905
      %v907 = vpop.f32.mrb[0].mxu0
      %908 = vmatprep.mubr.bf16.mxu0 %v731
      %909 = vmatmul.mubr.bf16.gmra.mrb[0].mxu0 %v481
      %v910 = vpop.f32.mrb[0].mxu0
      %v911 = vadd.f32 %v806, %v910
      %v912 = vpop.f32.mrb[0].mxu0
      %v913 = vpop.f32.mrb[0].mxu0
      %v914 = vadd.f32 %v809, %v913
      %v915 = vpop.f32.mrb[0].mxu0
      %916 = vmatprep.mubr.bf16.mxu0 %v734
      %917 = vmatmul.mubr.bf16.gmra.mrb[0].mxu0 %v485
      %v918 = vpop.f32.mrb[0].mxu0
      %v919 = vadd.f32 %v814, %v918
      %v920 = vpop.f32.mrb[0].mxu0
      %v921 = vpop.f32.mrb[0].mxu0
      %v922 = vadd.f32 %v817, %v921
      %v923 = vpop.f32.mrb[0].mxu0
      %924 = vmatprep.mubr.bf16.mxu0 %v737
      %925 = vmatmul.mubr.bf16.gmra.mrb[0].mxu0 %v489
      %v926 = vpop.f32.mrb[0].mxu0
      %v927 = vadd.f32 %v822, %v926
      %v928 = vpop.f32.mrb[0].mxu0
      %v929 = vpop.f32.mrb[0].mxu0
      %v930 = vadd.f32 %v825, %v929
      %v931 = vpop.f32.mrb[0].mxu0
      %932 = vmatprep.mubr.bf16.mxu0 %v740
      %933 = vmatmul.mubr.bf16.gmra.mrb[0].mxu0 %v493
      %v934 = vpop.f32.mrb[0].mxu0
      %v935 = vadd.f32 %v830, %v934
      %v936 = vpop.f32.mrb[0].mxu0
      %v937 = vpop.f32.mrb[0].mxu0
      %v938 = vadd.f32 %v833, %v937
      %v939 = vpop.f32.mrb[0].mxu0
      %940 = vmatprep.mubr.bf16.mxu0 %v743
      %941 = vmatmul.mubr.bf16.gmra.mrb[0].mxu0 %v497
      %v942 = vpop.f32.mrb[0].mxu0
      %v943 = vadd.f32 %v838, %v942
      %v944 = vpop.f32.mrb[0].mxu0
      %v945 = vpop.f32.mrb[0].mxu0
      %v946 = vadd.f32 %v841, %v945
      %v947 = vpop.f32.mrb[0].mxu0
      %948 = vmatprep.mubr.bf16.mxu0 %v746
      %949 = vmatmul.mubr.bf16.gmra.mrb[0].mxu0 %v501
      %v950 = vpop.f32.mrb[0].mxu0
      %v951 = vadd.f32 %v846, %v950
      %v952 = vpop.f32.mrb[0].mxu0
      %v953 = vpop.f32.mrb[0].mxu0
      %v954 = vadd.f32 %v849, %v953
      %v955 = vpop.f32.mrb[0].mxu0
      %956 = vmatprep.mubr.bf16.mxu0 %v749
      %957 = vmatmul.mubr.bf16.gmra.mrb[0].mxu0 %v505
      %v958 = vpop.f32.mrb[0].mxu0
      %v959 = vadd.f32 %v854, %v958
      %v960 = vpop.f32.mrb[0].mxu0
      %v961 = vpop.f32.mrb[0].mxu0
      %v962 = vadd.f32 %v857, %v961
      %v963 = vpop.f32.mrb[0].mxu0
      %964 = vdwg.mxu0
      %v965 = vlaneseq
      %v966 = vand.u32 %v965, 127
      %v967 = vld [vmem:[%s241] sm:$0xff]
      %v968 = vld [vmem:[%s241 + $0x8] sm:$0xff]
      %v969 = vld [vmem:[%s241 + $0x10] sm:$0xff]
      %v970 = vld [vmem:[%s241 + $0x18] sm:$0xff]
      %v971 = vld [vmem:[%s241 + $0x20] sm:$0xff]
      %v972 = vld [vmem:[%s241 + $0x28] sm:$0xff]
      %v973 = vld [vmem:[%s241 + $0x30] sm:$0xff]
      %v974 = vld [vmem:[%s241 + $0x38] sm:$0xff]
      %v975 = vld [vmem:[%s241 + $0x40] sm:$0xff]
      %v976 = vld [vmem:[%s241 + $0x48] sm:$0xff]
      %v977 = vld [vmem:[%s241 + $0x50] sm:$0xff]
      %v978 = vld [vmem:[%s241 + $0x58] sm:$0xff]
      %v979 = vld [vmem:[%s241 + $0x60] sm:$0xff]
      %v980 = vld [vmem:[%s241 + $0x68] sm:$0xff]
      %v981 = vld [vmem:[%s241 + $0x70] sm:$0xff]
      %v982 = vld [vmem:[%s241 + $0x78] sm:$0xff]
      %v983 = vld [vmem:[%s241 + $0x80] sm:$0xff]
      %v984 = vld [vmem:[%s241 + $0x88] sm:$0xff]
      %v985 = vld [vmem:[%s241 + $0x90] sm:$0xff]
      %v986 = vld [vmem:[%s241 + $0x98] sm:$0xff]
      %v987 = vld [vmem:[%s241 + $0xa0] sm:$0xff]
      %v988 = vld [vmem:[%s241 + $0xa8] sm:$0xff]
      %v989 = vld [vmem:[%s241 + $0xb0] sm:$0xff]
      %v990 = vld [vmem:[%s241 + $0xb8] sm:$0xff]
      %v991 = vld [vmem:[%s241 + $0xc0] sm:$0xff]
      %v992 = vld [vmem:[%s241 + $0xc8] sm:$0xff]
      %v993 = vld [vmem:[%s241 + $0xd0] sm:$0xff]
      %v994 = vld [vmem:[%s241 + $0xd8] sm:$0xff]
      %v995 = vld [vmem:[%s241 + $0xe0] sm:$0xff]
      %v996 = vld [vmem:[%s241 + $0xe8] sm:$0xff]
      %v997 = vld [vmem:[%s241 + $0xf0] sm:$0xff]
      %v998 = vld [vmem:[%s241 + $0xf8] sm:$0xff]
      %v999 = vld [vmem:[%s241 + $0x100] sm:$0xff]
      %v1000 = vld [vmem:[%s241 + $0x108] sm:$0xff]
      %v1001 = vld [vmem:[%s241 + $0x110] sm:$0xff]
      %v1002 = vld [vmem:[%s241 + $0x118] sm:$0xff]
      %v1003 = vld [vmem:[%s1] sm:$0x1f]
      %v1004 = vld [vmem:[%s1 + $0x8] sm:$0x1f]
      %v1005 = vlaneseq
      %v1006 = vshrl.u32 %v1005, 7
      %v1007 = vsub.s32 0, %v1006
      %v1008 = vrot.slane %v1003, %v1007
      %v1009 = vlaneseq
      %v1010 = vshrl.u32 %v1009, 7
      %v1011 = vsub.s32 0, %v1010
      %v1012 = vrot.slane %v1004, %v1011
      %v1013 = vadd.f32 %v967, %v1008
      %v1014 = vadd.f32 %v968, %v1012
      %v1015 = vadd.f32 %v969, %v1008
      %v1016 = vadd.f32 %v970, %v1012
      %v1017 = vadd.f32 %v971, %v1008
      %v1018 = vadd.f32 %v972, %v1012
      %v1019 = vadd.f32 %v973, %v1008
      %v1020 = vadd.f32 %v974, %v1012
      %v1021 = vadd.f32 %v975, %v1008
      %v1022 = vadd.f32 %v976, %v1012
      %v1023 = vadd.f32 %v977, %v1008
      %v1024 = vadd.f32 %v978, %v1012
      %v1025 = vadd.f32 %v979, %v1008
      %v1026 = vadd.f32 %v980, %v1012
      %v1027 = vadd.f32 %v981, %v1008
      %v1028 = vadd.f32 %v982, %v1012
      %v1029 = vadd.f32 %v983, %v1008
      %v1030 = vadd.f32 %v984, %v1012
      %v1031 = vadd.f32 %v985, %v1008
      %v1032 = vadd.f32 %v986, %v1012
      %v1033 = vadd.f32 %v987, %v1008
      %v1034 = vadd.f32 %v988, %v1012
      %v1035 = vadd.f32 %v989, %v1008
      %v1036 = vadd.f32 %v990, %v1012
      %v1037 = vadd.f32 %v991, %v1008
      %v1038 = vadd.f32 %v992, %v1012
      %v1039 = vadd.f32 %v993, %v1008
      %v1040 = vadd.f32 %v994, %v1012
      %v1041 = vadd.f32 %v995, %v1008
      %v1042 = vadd.f32 %v996, %v1012
      %v1043 = vadd.f32 %v997, %v1008
      %v1044 = vadd.f32 %v998, %v1012
      %v1045 = vadd.f32 %v999, %v1008
      %v1046 = vadd.f32 %v1000, %v1012
      %v1047 = vadd.f32 %v1001, %v1008
      %v1048 = vadd.f32 %v1002, %v1012
      %vm1049 = vcmask 998400
      %v1050 = vsel %vm1049, %v1014, -inf
      %v1051 = vmax.f32 %v1013, %v1050
      %1052 = vmax.xlane.f32.xlu0 %v1051
      %v1053 = vpop.xlane.xlu0 %1052
      %v1054 = vsel %vm1049, %v1016, -inf
      %v1055 = vmax.f32 %v1015, %v1054
      %1056 = vmax.xlane.f32.xlu0 %v1055
      %v1057 = vpop.xlane.xlu0 %1056
      %v1058 = vsel %vm1049, %v1018, -inf
      %v1059 = vmax.f32 %v1017, %v1058
      %1060 = vmax.xlane.f32.xlu0 %v1059
      %v1061 = vpop.xlane.xlu0 %1060
      %v1062 = vsel %vm1049, %v1020, -inf
      %v1063 = vmax.f32 %v1019, %v1062
      %1064 = vmax.xlane.f32.xlu0 %v1063
      %v1065 = vpop.xlane.xlu0 %1064
      %v1066 = vsel %vm1049, %v1022, -inf
      %v1067 = vmax.f32 %v1021, %v1066
      %1068 = vmax.xlane.f32.xlu0 %v1067
      %v1069 = vpop.xlane.xlu0 %1068
      %v1070 = vsel %vm1049, %v1024, -inf
      %v1071 = vmax.f32 %v1023, %v1070
      %1072 = vmax.xlane.f32.xlu0 %v1071
      %v1073 = vpop.xlane.xlu0 %1072
      %v1074 = vsel %vm1049, %v1026, -inf
      %v1075 = vmax.f32 %v1025, %v1074
      %1076 = vmax.xlane.f32.xlu0 %v1075
      %v1077 = vpop.xlane.xlu0 %1076
      %v1078 = vsel %vm1049, %v1028, -inf
      %v1079 = vmax.f32 %v1027, %v1078
      %1080 = vmax.xlane.f32.xlu0 %v1079
      %v1081 = vpop.xlane.xlu0 %1080
      %v1082 = vsel %vm1049, %v1030, -inf
      %v1083 = vmax.f32 %v1029, %v1082
      %1084 = vmax.xlane.f32.xlu0 %v1083
      %v1085 = vpop.xlane.xlu0 %1084
      %v1086 = vsel %vm1049, %v1032, -inf
      %v1087 = vmax.f32 %v1031, %v1086
      %1088 = vmax.xlane.f32.xlu0 %v1087
      %v1089 = vpop.xlane.xlu0 %1088
      %v1090 = vsel %vm1049, %v1034, -inf
      %v1091 = vmax.f32 %v1033, %v1090
      %1092 = vmax.xlane.f32.xlu0 %v1091
      %v1093 = vpop.xlane.xlu0 %1092
      %v1094 = vsel %vm1049, %v1036, -inf
      %v1095 = vmax.f32 %v1035, %v1094
      %1096 = vmax.xlane.f32.xlu0 %v1095
      %v1097 = vpop.xlane.xlu0 %1096
      %v1098 = vsel %vm1049, %v1038, -inf
      %v1099 = vmax.f32 %v1037, %v1098
      %1100 = vmax.xlane.f32.xlu0 %v1099
      %v1101 = vpop.xlane.xlu0 %1100
      %v1102 = vsel %vm1049, %v1040, -inf
      %v1103 = vmax.f32 %v1039, %v1102
      %1104 = vmax.xlane.f32.xlu0 %v1103
      %v1105 = vpop.xlane.xlu0 %1104
      %v1106 = vsel %vm1049, %v1042, -inf
      %v1107 = vmax.f32 %v1041, %v1106
      %1108 = vmax.xlane.f32.xlu0 %v1107
      %v1109 = vpop.xlane.xlu0 %1108
      %v1110 = vsel %vm1049, %v1044, -inf
      %v1111 = vmax.f32 %v1043, %v1110
      %1112 = vmax.xlane.f32.xlu0 %v1111
      %v1113 = vpop.xlane.xlu0 %1112
      %v1114 = vsel %vm1049, %v1046, -inf
      %v1115 = vmax.f32 %v1045, %v1114
      %1116 = vmax.xlane.f32.xlu0 %v1115
      %v1117 = vpop.xlane.xlu0 %1116
      %v1118 = vsel %vm1049, %v1048, -inf
      %v1119 = vmax.f32 %v1047, %v1118
      %1120 = vmax.xlane.f32.xlu0 %v1119
      %v1121 = vpop.xlane.xlu0 %1120
      %vm1122 = vcmp.eq.s32.totalorder %v966, 0
      %v1123 = vsel %vm1122, %v1053, %v895
      %v1124 = vsel %vm1122, %v1057, %v898
      %v1125 = vsel %vm1122, %v1061, %v903
      %v1126 = vsel %vm1122, %v1065, %v906
      %v1127 = vsel %vm1122, %v1069, %v911
      %v1128 = vsel %vm1122, %v1073, %v914
      %v1129 = vsel %vm1122, %v1077, %v919
      %v1130 = vsel %vm1122, %v1081, %v922
      %v1131 = vsel %vm1122, %v1085, %v927
      %v1132 = vsel %vm1122, %v1089, %v930
      %v1133 = vsel %vm1122, %v1093, %v935
      %v1134 = vsel %vm1122, %v1097, %v938
      %v1135 = vsel %vm1122, %v1101, %v943
      %v1136 = vsel %vm1122, %v1105, %v946
      %v1137 = vsel %vm1122, %v1109, %v951
      %v1138 = vsel %vm1122, %v1113, %v954
      %v1139 = vsel %vm1122, %v1117, %v959
      %v1140 = vsel %vm1122, %v1121, %v962
      %v1141 = vlaneseq
      %v1142 = vshrl.u32 %v1141, 7
      %v1143 = vsub.s32 1, %v1142
      %v1144 = vrot.slane %v1003, %v1143
      %v1145 = vlaneseq
      %v1146 = vshrl.u32 %v1145, 7
      %v1147 = vsub.s32 1, %v1146
      %v1148 = vrot.slane %v1004, %v1147
      %v1149 = vadd.f32 %v967, %v1144
      %v1150 = vadd.f32 %v968, %v1148
      %v1151 = vadd.f32 %v969, %v1144
      %v1152 = vadd.f32 %v970, %v1148
      %v1153 = vadd.f32 %v971, %v1144
      %v1154 = vadd.f32 %v972, %v1148
      %v1155 = vadd.f32 %v973, %v1144
      %v1156 = vadd.f32 %v974, %v1148
      %v1157 = vadd.f32 %v975, %v1144
      %v1158 = vadd.f32 %v976, %v1148
      %v1159 = vadd.f32 %v977, %v1144
      %v1160 = vadd.f32 %v978, %v1148
      %v1161 = vadd.f32 %v979, %v1144
      %v1162 = vadd.f32 %v980, %v1148
      %v1163 = vadd.f32 %v981, %v1144
      %v1164 = vadd.f32 %v982, %v1148
      %v1165 = vadd.f32 %v983, %v1144
      %v1166 = vadd.f32 %v984, %v1148
      %v1167 = vadd.f32 %v985, %v1144
      %v1168 = vadd.f32 %v986, %v1148
      %v1169 = vadd.f32 %v987, %v1144
      %v1170 = vadd.f32 %v988, %v1148
      %v1171 = vadd.f32 %v989, %v1144
      %v1172 = vadd.f32 %v990, %v1148
      %v1173 = vadd.f32 %v991, %v1144
      %v1174 = vadd.f32 %v992, %v1148
      %v1175 = vadd.f32 %v993, %v1144
      %v1176 = vadd.f32 %v994, %v1148
      %v1177 = vadd.f32 %v995, %v1144
      %v1178 = vadd.f32 %v996, %v1148
      %v1179 = vadd.f32 %v997, %v1144
      %v1180 = vadd.f32 %v998, %v1148
      %v1181 = vadd.f32 %v999, %v1144
      %v1182 = vadd.f32 %v1000, %v1148
      %v1183 = vadd.f32 %v1001, %v1144
      %v1184 = vadd.f32 %v1002, %v1148
      %v1185 = vsel %vm1049, %v1150, -inf
      %v1186 = vmax.f32 %v1149, %v1185
      %1187 = vmax.xlane.f32.xlu0 %v1186
      %v1188 = vpop.xlane.xlu0 %1187
      %v1189 = vsel %vm1049, %v1152, -inf
      %v1190 = vmax.f32 %v1151, %v1189
      %1191 = vmax.xlane.f32.xlu0 %v1190
      %v1192 = vpop.xlane.xlu0 %1191
      %v1193 = vsel %vm1049, %v1154, -inf
      %v1194 = vmax.f32 %v1153, %v1193
      %1195 = vmax.xlane.f32.xlu0 %v1194
      %v1196 = vpop.xlane.xlu0 %1195
      %v1197 = vsel %vm1049, %v1156, -inf
      %v1198 = vmax.f32 %v1155, %v1197
      %1199 = vmax.xlane.f32.xlu0 %v1198
      %v1200 = vpop.xlane.xlu0 %1199
      %v1201 = vsel %vm1049, %v1158, -inf
      %v1202 = vmax.f32 %v1157, %v1201
      %1203 = vmax.xlane.f32.xlu0 %v1202
      %v1204 = vpop.xlane.xlu0 %1203
      %v1205 = vsel %vm1049, %v1160, -inf
      %v1206 = vmax.f32 %v1159, %v1205
      %1207 = vmax.xlane.f32.xlu0 %v1206
      %v1208 = vpop.xlane.xlu0 %1207
      %v1209 = vsel %vm1049, %v1162, -inf
      %v1210 = vmax.f32 %v1161, %v1209
      %1211 = vmax.xlane.f32.xlu0 %v1210
      %v1212 = vpop.xlane.xlu0 %1211
      %v1213 = vsel %vm1049, %v1164, -inf
      %v1214 = vmax.f32 %v1163, %v1213
      %1215 = vmax.xlane.f32.xlu0 %v1214
      %v1216 = vpop.xlane.xlu0 %1215
      %v1217 = vsel %vm1049, %v1166, -inf
      %v1218 = vmax.f32 %v1165, %v1217
      %1219 = vmax.xlane.f32.xlu0 %v1218
      %v1220 = vpop.xlane.xlu0 %1219
      %v1221 = vsel %vm1049, %v1168, -inf
      %v1222 = vmax.f32 %v1167, %v1221
      %1223 = vmax.xlane.f32.xlu0 %v1222
      %v1224 = vpop.xlane.xlu0 %1223
      %v1225 = vsel %vm1049, %v1170, -inf
      %v1226 = vmax.f32 %v1169, %v1225
      %1227 = vmax.xlane.f32.xlu0 %v1226
      %v1228 = vpop.xlane.xlu0 %1227
      %v1229 = vsel %vm1049, %v1172, -inf
      %v1230 = vmax.f32 %v1171, %v1229
      %1231 = vmax.xlane.f32.xlu0 %v1230
      %v1232 = vpop.xlane.xlu0 %1231
      %v1233 = vsel %vm1049, %v1174, -inf
      %v1234 = vmax.f32 %v1173, %v1233
      %1235 = vmax.xlane.f32.xlu0 %v1234
      %v1236 = vpop.xlane.xlu0 %1235
      %v1237 = vsel %vm1049, %v1176, -inf
      %v1238 = vmax.f32 %v1175, %v1237
      %1239 = vmax.xlane.f32.xlu0 %v1238
      %v1240 = vpop.xlane.xlu0 %1239
      %v1241 = vsel %vm1049, %v1178, -inf
      %v1242 = vmax.f32 %v1177, %v1241
      %1243 = vmax.xlane.f32.xlu0 %v1242
      %v1244 = vpop.xlane.xlu0 %1243
      %v1245 = vsel %vm1049, %v1180, -inf
      %v1246 = vmax.f32 %v1179, %v1245
      %1247 = vmax.xlane.f32.xlu0 %v1246
      %v1248 = vpop.xlane.xlu0 %1247
      %v1249 = vsel %vm1049, %v1182, -inf
      %v1250 = vmax.f32 %v1181, %v1249
      %1251 = vmax.xlane.f32.xlu0 %v1250
      %v1252 = vpop.xlane.xlu0 %1251
      %v1253 = vsel %vm1049, %v1184, -inf
      %v1254 = vmax.f32 %v1183, %v1253
      %1255 = vmax.xlane.f32.xlu0 %v1254
      %v1256 = vpop.xlane.xlu0 %1255
      %vm1257 = vcmp.eq.s32.totalorder %v966, 1
      %v1258 = vsel %vm1257, %v1188, %v1123
      %v1259 = vsel %vm1257, %v1192, %v1124
      %v1260 = vsel %vm1257, %v1196, %v1125
      %v1261 = vsel %vm1257, %v1200, %v1126
      %v1262 = vsel %vm1257, %v1204, %v1127
      %v1263 = vsel %vm1257, %v1208, %v1128
      %v1264 = vsel %vm1257, %v1212, %v1129
      %v1265 = vsel %vm1257, %v1216, %v1130
      %v1266 = vsel %vm1257, %v1220, %v1131
      %v1267 = vsel %vm1257, %v1224, %v1132
      %v1268 = vsel %vm1257, %v1228, %v1133
      %v1269 = vsel %vm1257, %v1232, %v1134
      %v1270 = vsel %vm1257, %v1236, %v1135
      %v1271 = vsel %vm1257, %v1240, %v1136
      %v1272 = vsel %vm1257, %v1244, %v1137
      %v1273 = vsel %vm1257, %v1248, %v1138
      %v1274 = vsel %vm1257, %v1252, %v1139
      %v1275 = vsel %vm1257, %v1256, %v1140
      %v1276 = vlaneseq
      %v1277 = vshrl.u32 %v1276, 7
      %v1278 = vsub.s32 2, %v1277
      %v1279 = vrot.slane %v1003, %v1278
      %v1280 = vlaneseq
      %v1281 = vshrl.u32 %v1280, 7
      %v1282 = vsub.s32 2, %v1281
      %v1283 = vrot.slane %v1004, %v1282
      %v1284 = vadd.f32 %v967, %v1279
      %v1285 = vadd.f32 %v968, %v1283
      %v1286 = vadd.f32 %v969, %v1279
      %v1287 = vadd.f32 %v970, %v1283
      %v1288 = vadd.f32 %v971, %v1279
      %v1289 = vadd.f32 %v972, %v1283
      %v1290 = vadd.f32 %v973, %v1279
      %v1291 = vadd.f32 %v974, %v1283
      %v1292 = vadd.f32 %v975, %v1279
      %v1293 = vadd.f32 %v976, %v1283
      %v1294 = vadd.f32 %v977, %v1279
      %v1295 = vadd.f32 %v978, %v1283
      %v1296 = vadd.f32 %v979, %v1279
      %v1297 = vadd.f32 %v980, %v1283
      %v1298 = vadd.f32 %v981, %v1279
      %v1299 = vadd.f32 %v982, %v1283
      %v1300 = vadd.f32 %v983, %v1279
      %v1301 = vadd.f32 %v984, %v1283
      %v1302 = vadd.f32 %v985, %v1279
      %v1303 = vadd.f32 %v986, %v1283
      %v1304 = vadd.f32 %v987, %v1279
      %v1305 = vadd.f32 %v988, %v1283
      %v1306 = vadd.f32 %v989, %v1279
      %v1307 = vadd.f32 %v990, %v1283
      %v1308 = vadd.f32 %v991, %v1279
      %v1309 = vadd.f32 %v992, %v1283
      %v1310 = vadd.f32 %v993, %v1279
      %v1311 = vadd.f32 %v994, %v1283
      %v1312 = vadd.f32 %v995, %v1279
      %v1313 = vadd.f32 %v996, %v1283
      %v1314 = vadd.f32 %v997, %v1279
      %v1315 = vadd.f32 %v998, %v1283
      %v1316 = vadd.f32 %v999, %v1279
      %v1317 = vadd.f32 %v1000, %v1283
      %v1318 = vadd.f32 %v1001, %v1279
      %v1319 = vadd.f32 %v1002, %v1283
      %v1320 = vsel %vm1049, %v1285, -inf
      %v1321 = vmax.f32 %v1284, %v1320
      %1322 = vmax.xlane.f32.xlu0 %v1321
      %v1323 = vpop.xlane.xlu0 %1322
      %v1324 = vsel %vm1049, %v1287, -inf
      %v1325 = vmax.f32 %v1286, %v1324
      %1326 = vmax.xlane.f32.xlu0 %v1325
      %v1327 = vpop.xlane.xlu0 %1326
      %v1328 = vsel %vm1049, %v1289, -inf
      %v1329 = vmax.f32 %v1288, %v1328
      %1330 = vmax.xlane.f32.xlu0 %v1329
      %v1331 = vpop.xlane.xlu0 %1330
      %v1332 = vsel %vm1049, %v1291, -inf
      %v1333 = vmax.f32 %v1290, %v1332
      %1334 = vmax.xlane.f32.xlu0 %v1333
      %v1335 = vpop.xlane.xlu0 %1334
      %v1336 = vsel %vm1049, %v1293, -inf
      %v1337 = vmax.f32 %v1292, %v1336
      %1338 = vmax.xlane.f32.xlu0 %v1337
      %v1339 = vpop.xlane.xlu0 %1338
      %v1340 = vsel %vm1049, %v1295, -inf
      %v1341 = vmax.f32 %v1294, %v1340
      %1342 = vmax.xlane.f32.xlu0 %v1341
      %v1343 = vpop.xlane.xlu0 %1342
      %v1344 = vsel %vm1049, %v1297, -inf
      %v1345 = vmax.f32 %v1296, %v1344
      %1346 = vmax.xlane.f32.xlu0 %v1345
      %v1347 = vpop.xlane.xlu0 %1346
      %v1348 = vsel %vm1049, %v1299, -inf
      %v1349 = vmax.f32 %v1298, %v1348
      %1350 = vmax.xlane.f32.xlu0 %v1349
      %v1351 = vpop.xlane.xlu0 %1350
      %v1352 = vsel %vm1049, %v1301, -inf
      %v1353 = vmax.f32 %v1300, %v1352
      %1354 = vmax.xlane.f32.xlu0 %v1353
      %v1355 = vpop.xlane.xlu0 %1354
      %v1356 = vsel %vm1049, %v1303, -inf
      %v1357 = vmax.f32 %v1302, %v1356
      %1358 = vmax.xlane.f32.xlu0 %v1357
      %v1359 = vpop.xlane.xlu0 %1358
      %v1360 = vsel %vm1049, %v1305, -inf
      %v1361 = vmax.f32 %v1304, %v1360
      %1362 = vmax.xlane.f32.xlu0 %v1361
      %v1363 = vpop.xlane.xlu0 %1362
      %v1364 = vsel %vm1049, %v1307, -inf
      %v1365 = vmax.f32 %v1306, %v1364
      %1366 = vmax.xlane.f32.xlu0 %v1365
      %v1367 = vpop.xlane.xlu0 %1366
      %v1368 = vsel %vm1049, %v1309, -inf
      %v1369 = vmax.f32 %v1308, %v1368
      %1370 = vmax.xlane.f32.xlu0 %v1369
      %v1371 = vpop.xlane.xlu0 %1370
      %v1372 = vsel %vm1049, %v1311, -inf
      %v1373 = vmax.f32 %v1310, %v1372
      %1374 = vmax.xlane.f32.xlu0 %v1373
      %v1375 = vpop.xlane.xlu0 %1374
      %v1376 = vsel %vm1049, %v1313, -inf
      %v1377 = vmax.f32 %v1312, %v1376
      %1378 = vmax.xlane.f32.xlu0 %v1377
      %v1379 = vpop.xlane.xlu0 %1378
      %v1380 = vsel %vm1049, %v1315, -inf
      %v1381 = vmax.f32 %v1314, %v1380
      %1382 = vmax.xlane.f32.xlu0 %v1381
      %v1383 = vpop.xlane.xlu0 %1382
      %v1384 = vsel %vm1049, %v1317, -inf
      %v1385 = vmax.f32 %v1316, %v1384
      %1386 = vmax.xlane.f32.xlu0 %v1385
      %v1387 = vpop.xlane.xlu0 %1386
      %v1388 = vsel %vm1049, %v1319, -inf
      %v1389 = vmax.f32 %v1318, %v1388
      %1390 = vmax.xlane.f32.xlu0 %v1389
      %v1391 = vpop.xlane.xlu0 %1390
      %vm1392 = vcmp.eq.s32.totalorder %v966, 2
      %v1393 = vsel %vm1392, %v1323, %v1258
      %v1394 = vsel %vm1392, %v1327, %v1259
      %v1395 = vsel %vm1392, %v1331, %v1260
      %v1396 = vsel %vm1392, %v1335, %v1261
      %v1397 = vsel %vm1392, %v1339, %v1262
      %v1398 = vsel %vm1392, %v1343, %v1263
      %v1399 = vsel %vm1392, %v1347, %v1264
      %v1400 = vsel %vm1392, %v1351, %v1265
      %v1401 = vsel %vm1392, %v1355, %v1266
      %v1402 = vsel %vm1392, %v1359, %v1267
      %v1403 = vsel %vm1392, %v1363, %v1268
      %v1404 = vsel %vm1392, %v1367, %v1269
      %v1405 = vsel %vm1392, %v1371, %v1270
      %v1406 = vsel %vm1392, %v1375, %v1271
      %v1407 = vsel %vm1392, %v1379, %v1272
      %v1408 = vsel %vm1392, %v1383, %v1273
      %v1409 = vsel %vm1392, %v1387, %v1274
      %v1410 = vsel %vm1392, %v1391, %v1275
      %v1411 = vlaneseq
      %v1412 = vshrl.u32 %v1411, 7
      %v1413 = vsub.s32 3, %v1412
      %v1414 = vrot.slane %v1003, %v1413
      %v1415 = vlaneseq
      %v1416 = vshrl.u32 %v1415, 7
      %v1417 = vsub.s32 3, %v1416
      %v1418 = vrot.slane %v1004, %v1417
      %v1419 = vadd.f32 %v967, %v1414
      %v1420 = vadd.f32 %v968, %v1418
      %v1421 = vadd.f32 %v969, %v1414
      %v1422 = vadd.f32 %v970, %v1418
      %v1423 = vadd.f32 %v971, %v1414
      %v1424 = vadd.f32 %v972, %v1418
      %v1425 = vadd.f32 %v973, %v1414
      %v1426 = vadd.f32 %v974, %v1418
      %v1427 = vadd.f32 %v975, %v1414
      %v1428 = vadd.f32 %v976, %v1418
      %v1429 = vadd.f32 %v977, %v1414
      %v1430 = vadd.f32 %v978, %v1418
      %v1431 = vadd.f32 %v979, %v1414
      %v1432 = vadd.f32 %v980, %v1418
      %v1433 = vadd.f32 %v981, %v1414
      %v1434 = vadd.f32 %v982, %v1418
      %v1435 = vadd.f32 %v983, %v1414
      %v1436 = vadd.f32 %v984, %v1418
      %v1437 = vadd.f32 %v985, %v1414
      %v1438 = vadd.f32 %v986, %v1418
      %v1439 = vadd.f32 %v987, %v1414
      %v1440 = vadd.f32 %v988, %v1418
      %v1441 = vadd.f32 %v989, %v1414
      %v1442 = vadd.f32 %v990, %v1418
      %v1443 = vadd.f32 %v991, %v1414
      %v1444 = vadd.f32 %v992, %v1418
      %v1445 = vadd.f32 %v993, %v1414
      %v1446 = vadd.f32 %v994, %v1418
      %v1447 = vadd.f32 %v995, %v1414
      %v1448 = vadd.f32 %v996, %v1418
      %v1449 = vadd.f32 %v997, %v1414
      %v1450 = vadd.f32 %v998, %v1418
      %v1451 = vadd.f32 %v999, %v1414
      %v1452 = vadd.f32 %v1000, %v1418
      %v1453 = vadd.f32 %v1001, %v1414
      %v1454 = vadd.f32 %v1002, %v1418
      %v1455 = vsel %vm1049, %v1420, -inf
      %v1456 = vmax.f32 %v1419, %v1455
      %1457 = vmax.xlane.f32.xlu0 %v1456
      %v1458 = vpop.xlane.xlu0 %1457
      %v1459 = vsel %vm1049, %v1422, -inf
      %v1460 = vmax.f32 %v1421, %v1459
      %1461 = vmax.xlane.f32.xlu0 %v1460
      %v1462 = vpop.xlane.xlu0 %1461
      %v1463 = vsel %vm1049, %v1424, -inf
      %v1464 = vmax.f32 %v1423, %v1463
      %1465 = vmax.xlane.f32.xlu0 %v1464
      %v1466 = vpop.xlane.xlu0 %1465
      %v1467 = vsel %vm1049, %v1426, -inf
      %v1468 = vmax.f32 %v1425, %v1467
      %1469 = vmax.xlane.f32.xlu0 %v1468
      %v1470 = vpop.xlane.xlu0 %1469
      %v1471 = vsel %vm1049, %v1428, -inf
      %v1472 = vmax.f32 %v1427, %v1471
      %1473 = vmax.xlane.f32.xlu0 %v1472
      %v1474 = vpop.xlane.xlu0 %1473
      %v1475 = vsel %vm1049, %v1430, -inf
      %v1476 = vmax.f32 %v1429, %v1475
      %1477 = vmax.xlane.f32.xlu0 %v1476
      %v1478 = vpop.xlane.xlu0 %1477
      %v1479 = vsel %vm1049, %v1432, -inf
      %v1480 = vmax.f32 %v1431, %v1479
      %1481 = vmax.xlane.f32.xlu0 %v1480
      %v1482 = vpop.xlane.xlu0 %1481
      %v1483 = vsel %vm1049, %v1434, -inf
      %v1484 = vmax.f32 %v1433, %v1483
      %1485 = vmax.xlane.f32.xlu0 %v1484
      %v1486 = vpop.xlane.xlu0 %1485
      %v1487 = vsel %vm1049, %v1436, -inf
      %v1488 = vmax.f32 %v1435, %v1487
      %1489 = vmax.xlane.f32.xlu0 %v1488
      %v1490 = vpop.xlane.xlu0 %1489
      %v1491 = vsel %vm1049, %v1438, -inf
      %v1492 = vmax.f32 %v1437, %v1491
      %1493 = vmax.xlane.f32.xlu0 %v1492
      %v1494 = vpop.xlane.xlu0 %1493
      %v1495 = vsel %vm1049, %v1440, -inf
      %v1496 = vmax.f32 %v1439, %v1495
      %1497 = vmax.xlane.f32.xlu0 %v1496
      %v1498 = vpop.xlane.xlu0 %1497
      %v1499 = vsel %vm1049, %v1442, -inf
      %v1500 = vmax.f32 %v1441, %v1499
      %1501 = vmax.xlane.f32.xlu0 %v1500
      %v1502 = vpop.xlane.xlu0 %1501
      %v1503 = vsel %vm1049, %v1444, -inf
      %v1504 = vmax.f32 %v1443, %v1503
      %1505 = vmax.xlane.f32.xlu0 %v1504
      %v1506 = vpop.xlane.xlu0 %1505
      %v1507 = vsel %vm1049, %v1446, -inf
      %v1508 = vmax.f32 %v1445, %v1507
      %1509 = vmax.xlane.f32.xlu0 %v1508
      %v1510 = vpop.xlane.xlu0 %1509
      %v1511 = vsel %vm1049, %v1448, -inf
      %v1512 = vmax.f32 %v1447, %v1511
      %1513 = vmax.xlane.f32.xlu0 %v1512
      %v1514 = vpop.xlane.xlu0 %1513
      %v1515 = vsel %vm1049, %v1450, -inf
      %v1516 = vmax.f32 %v1449, %v1515
      %1517 = vmax.xlane.f32.xlu0 %v1516
      %v1518 = vpop.xlane.xlu0 %1517
      %v1519 = vsel %vm1049, %v1452, -inf
      %v1520 = vmax.f32 %v1451, %v1519
      %1521 = vmax.xlane.f32.xlu0 %v1520
      %v1522 = vpop.xlane.xlu0 %1521
      %v1523 = vsel %vm1049, %v1454, -inf
      %v1524 = vmax.f32 %v1453, %v1523
      %1525 = vmax.xlane.f32.xlu0 %v1524
      %v1526 = vpop.xlane.xlu0 %1525
      %vm1527 = vcmp.eq.s32.totalorder %v966, 3
      %v1528 = vsel %vm1527, %v1458, %v1393
      %v1529 = vsel %vm1527, %v1462, %v1394
      %v1530 = vsel %vm1527, %v1466, %v1395
      %v1531 = vsel %vm1527, %v1470, %v1396
      %v1532 = vsel %vm1527, %v1474, %v1397
      %v1533 = vsel %vm1527, %v1478, %v1398
      %v1534 = vsel %vm1527, %v1482, %v1399
      %v1535 = vsel %vm1527, %v1486, %v1400
      %v1536 = vsel %vm1527, %v1490, %v1401
      %v1537 = vsel %vm1527, %v1494, %v1402
      %v1538 = vsel %vm1527, %v1498, %v1403
      %v1539 = vsel %vm1527, %v1502, %v1404
      %v1540 = vsel %vm1527, %v1506, %v1405
      %v1541 = vsel %vm1527, %v1510, %v1406
      %v1542 = vsel %vm1527, %v1514, %v1407
      %v1543 = vsel %vm1527, %v1518, %v1408
      %v1544 = vsel %vm1527, %v1522, %v1409
      %v1545 = vsel %vm1527, %v1526, %v1410
      %v1546 = vlaneseq
      %v1547 = vshrl.u32 %v1546, 7
      %v1548 = vsub.s32 4, %v1547
      %v1549 = vrot.slane %v1003, %v1548
      %v1550 = vlaneseq
      %v1551 = vshrl.u32 %v1550, 7
      %v1552 = vsub.s32 4, %v1551
      %v1553 = vrot.slane %v1004, %v1552
      %v1554 = vadd.f32 %v967, %v1549
      %v1555 = vadd.f32 %v968, %v1553
      %v1556 = vadd.f32 %v969, %v1549
      %v1557 = vadd.f32 %v970, %v1553
      %v1558 = vadd.f32 %v971, %v1549
      %v1559 = vadd.f32 %v972, %v1553
      %v1560 = vadd.f32 %v973, %v1549
      %v1561 = vadd.f32 %v974, %v1553
      %v1562 = vadd.f32 %v975, %v1549
      %v1563 = vadd.f32 %v976, %v1553
      %v1564 = vadd.f32 %v977, %v1549
      %v1565 = vadd.f32 %v978, %v1553
      %v1566 = vadd.f32 %v979, %v1549
      %v1567 = vadd.f32 %v980, %v1553
      %v1568 = vadd.f32 %v981, %v1549
      %v1569 = vadd.f32 %v982, %v1553
      %v1570 = vadd.f32 %v983, %v1549
      %v1571 = vadd.f32 %v984, %v1553
      %v1572 = vadd.f32 %v985, %v1549
      %v1573 = vadd.f32 %v986, %v1553
      %v1574 = vadd.f32 %v987, %v1549
      %v1575 = vadd.f32 %v988, %v1553
      %v1576 = vadd.f32 %v989, %v1549
      %v1577 = vadd.f32 %v990, %v1553
      %v1578 = vadd.f32 %v991, %v1549
      %v1579 = vadd.f32 %v992, %v1553
      %v1580 = vadd.f32 %v993, %v1549
      %v1581 = vadd.f32 %v994, %v1553
      %v1582 = vadd.f32 %v995, %v1549
      %v1583 = vadd.f32 %v996, %v1553
      %v1584 = vadd.f32 %v997, %v1549
      %v1585 = vadd.f32 %v998, %v1553
      %v1586 = vadd.f32 %v999, %v1549
      %v1587 = vadd.f32 %v1000, %v1553
      %v1588 = vadd.f32 %v1001, %v1549
      %v1589 = vadd.f32 %v1002, %v1553
      %v1590 = vsel %vm1049, %v1555, -inf
      %v1591 = vmax.f32 %v1554, %v1590
      %1592 = vmax.xlane.f32.xlu0 %v1591
      %v1593 = vpop.xlane.xlu0 %1592
      %v1594 = vsel %vm1049, %v1557, -inf
      %v1595 = vmax.f32 %v1556, %v1594
      %1596 = vmax.xlane.f32.xlu0 %v1595
      %v1597 = vpop.xlane.xlu0 %1596
      %v1598 = vsel %vm1049, %v1559, -inf
      %v1599 = vmax.f32 %v1558, %v1598
      %1600 = vmax.xlane.f32.xlu0 %v1599
      %v1601 = vpop.xlane.xlu0 %1600
      %v1602 = vsel %vm1049, %v1561, -inf
      %v1603 = vmax.f32 %v1560, %v1602
      %1604 = vmax.xlane.f32.xlu0 %v1603
      %v1605 = vpop.xlane.xlu0 %1604
      %v1606 = vsel %vm1049, %v1563, -inf
      %v1607 = vmax.f32 %v1562, %v1606
      %1608 = vmax.xlane.f32.xlu0 %v1607
      %v1609 = vpop.xlane.xlu0 %1608
      %v1610 = vsel %vm1049, %v1565, -inf
      %v1611 = vmax.f32 %v1564, %v1610
      %1612 = vmax.xlane.f32.xlu0 %v1611
      %v1613 = vpop.xlane.xlu0 %1612
      %v1614 = vsel %vm1049, %v1567, -inf
      %v1615 = vmax.f32 %v1566, %v1614
      %1616 = vmax.xlane.f32.xlu0 %v1615
      %v1617 = vpop.xlane.xlu0 %1616
      %v1618 = vsel %vm1049, %v1569, -inf
      %v1619 = vmax.f32 %v1568, %v1618
      %1620 = vmax.xlane.f32.xlu0 %v1619
      %v1621 = vpop.xlane.xlu0 %1620
      %v1622 = vsel %vm1049, %v1571, -inf
      %v1623 = vmax.f32 %v1570, %v1622
      %1624 = vmax.xlane.f32.xlu0 %v1623
      %v1625 = vpop.xlane.xlu0 %1624
      %v1626 = vsel %vm1049, %v1573, -inf
      %v1627 = vmax.f32 %v1572, %v1626
      %1628 = vmax.xlane.f32.xlu0 %v1627
      %v1629 = vpop.xlane.xlu0 %1628
      %v1630 = vsel %vm1049, %v1575, -inf
      %v1631 = vmax.f32 %v1574, %v1630
      %1632 = vmax.xlane.f32.xlu0 %v1631
      %v1633 = vpop.xlane.xlu0 %1632
      %v1634 = vsel %vm1049, %v1577, -inf
      %v1635 = vmax.f32 %v1576, %v1634
      %1636 = vmax.xlane.f32.xlu0 %v1635
      %v1637 = vpop.xlane.xlu0 %1636
      %v1638 = vsel %vm1049, %v1579, -inf
      %v1639 = vmax.f32 %v1578, %v1638
      %1640 = vmax.xlane.f32.xlu0 %v1639
      %v1641 = vpop.xlane.xlu0 %1640
      %v1642 = vsel %vm1049, %v1581, -inf
      %v1643 = vmax.f32 %v1580, %v1642
      %1644 = vmax.xlane.f32.xlu0 %v1643
      %v1645 = vpop.xlane.xlu0 %1644
      %v1646 = vsel %vm1049, %v1583, -inf
      %v1647 = vmax.f32 %v1582, %v1646
      %1648 = vmax.xlane.f32.xlu0 %v1647
      %v1649 = vpop.xlane.xlu0 %1648
      %v1650 = vsel %vm1049, %v1585, -inf
      %v1651 = vmax.f32 %v1584, %v1650
      %1652 = vmax.xlane.f32.xlu0 %v1651
      %v1653 = vpop.xlane.xlu0 %1652
      %v1654 = vsel %vm1049, %v1587, -inf
      %v1655 = vmax.f32 %v1586, %v1654
      %1656 = vmax.xlane.f32.xlu0 %v1655
      %v1657 = vpop.xlane.xlu0 %1656
      %v1658 = vsel %vm1049, %v1589, -inf
      %v1659 = vmax.f32 %v1588, %v1658
      %1660 = vmax.xlane.f32.xlu0 %v1659
      %v1661 = vpop.xlane.xlu0 %1660
      %vm1662 = vcmp.eq.s32.totalorder %v966, 4
      %v1663 = vsel %vm1662, %v1593, %v1528
      %v1664 = vsel %vm1662, %v1597, %v1529
      %v1665 = vsel %vm1662, %v1601, %v1530
      %v1666 = vsel %vm1662, %v1605, %v1531
      %v1667 = vsel %vm1662, %v1609, %v1532
      %v1668 = vsel %vm1662, %v1613, %v1533
      %v1669 = vsel %vm1662, %v1617, %v1534
      %v1670 = vsel %vm1662, %v1621, %v1535
      %v1671 = vsel %vm1662, %v1625, %v1536
      %v1672 = vsel %vm1662, %v1629, %v1537
      %v1673 = vsel %vm1662, %v1633, %v1538
      %v1674 = vsel %vm1662, %v1637, %v1539
      %v1675 = vsel %vm1662, %v1641, %v1540
      %v1676 = vsel %vm1662, %v1645, %v1541
      %v1677 = vsel %vm1662, %v1649, %v1542
      %v1678 = vsel %vm1662, %v1653, %v1543
      %v1679 = vsel %vm1662, %v1657, %v1544
      %v1680 = vsel %vm1662, %v1661, %v1545
      %1681 = vst [vmem:[%s254] sm:$0xff] %v1663
      %1682 = vst [vmem:[%s254 + $0x8] sm:$0xff] %v1664
      %1683 = vst [vmem:[%s254 + $0x10] sm:$0xff] %v1665
      %1684 = vst [vmem:[%s254 + $0x18] sm:$0xff] %v1666
      %1685 = vst [vmem:[%s254 + $0x20] sm:$0xff] %v1667
      %1686 = vst [vmem:[%s254 + $0x28] sm:$0xff] %v1668
      %1687 = vst [vmem:[%s254 + $0x30] sm:$0xff] %v1669
      %1688 = vst [vmem:[%s254 + $0x38] sm:$0xff] %v1670
      %1689 = vst [vmem:[%s254 + $0x40] sm:$0xff] %v1671
      %1690 = vst [vmem:[%s254 + $0x48] sm:$0xff] %v1672
      %1691 = vst [vmem:[%s254 + $0x50] sm:$0xff] %v1673
      %1692 = vst [vmem:[%s254 + $0x58] sm:$0xff] %v1674
      %1693 = vst [vmem:[%s254 + $0x60] sm:$0xff] %v1675
      %1694 = vst [vmem:[%s254 + $0x68] sm:$0xff] %v1676
      %1695 = vst [vmem:[%s254 + $0x70] sm:$0xff] %v1677
      %1696 = vst [vmem:[%s254 + $0x78] sm:$0xff] %v1678
      %1697 = vst [vmem:[%s254 + $0x80] sm:$0xff] %v1679
      %1698 = vst [vmem:[%s254 + $0x88] sm:$0xff] %v1680
      %s1699 = smul.u32 18, %s16
      %p1700 = scmp.lt.s32.totalorder %s1699, 35
      %s1701 = scalar_select %p1700, %s1699, 35
      %s1702 = smul.addr %s1701, 8
      %s1703 = scalar_lea.vmem %s5, %s1702
      // Predicated region
      $region41: #{net_forward.6} parent=39 // pred_check
        %p1704 = pneg %p149
      $region42: #{net_forward.6} parent=39 // pred_check_branch
        %1706 = sbr.rel (%p1704) target = $region44
      $region43: #{net_forward.6} parent=39 // pred_region
        %s1707 = smul.u32 18, %s16
      $region44: #{net_forward.6} parent=39 // pred_fallthru
        _
    $region40: #{net_forward.6} parent=5 // pred_fallthru
      _
    %p1708 = scmp.le.s32.totalorder 2, %s11
    // Predicated region
    $region45: #{net_forward.6} parent=5 // pred_check
      %p1709 = pneg %p1708
    $region46: #{net_forward.6} parent=5 // pred_check_branch
      %1711 = sbr.rel (%p1709) target = $region48
    $region47: #{net_forward.6} parent=5 // pred_region
      %s1712 = ssub.s32 %s11, 2
      // Predicated region
      $region49: #{net_forward.6} parent=47 // pred_check
        %p1713 = pneg %p155
      $region50: #{net_forward.6} parent=47 // pred_check_branch
        %1715 = sbr.rel (%p1713) target = $region52
      $region51: #{net_forward.6} parent=47 // pred_region
        %s1716 = smul.u32 18, %s17
        %p1717 = scmp.lt.s32.totalorder %s1716, 35
        %s1718 = scalar_select %p1717, %s1716, 35
        %s1719 = smul.addr %s1718, 8
        %s1720 = scalar_lea.vmem %s5, %s1719
      $region52: #{net_forward.6} parent=47 // pred_fallthru
        _
    $region48: #{net_forward.6} parent=5 // pred_fallthru
      _
  $region6: #{net_forward.6} parent=0 // loop_footer
    %s15 = sadd.s32 1, %s11
  $region7: #{net_forward.6} parent=0 // loop_footer_branch
    %10 = sbr.rel target = $region3
  $region8: #{net_forward.6} parent=0 // loop_exit
    _

// kernel: net_forward.7
$region0: #{net_forward.7}
  #allocation0 [shape = 'u32[]', space=smem, size = 0x4, offset = 0x4, fixed_abs, tag = 'smem constant byte address 0x4 - core index']
  #allocation1 [shape = 'u32[144,128]{1,0:T(1,128)}', space=vmem, size = 0x12000, scoped, tag = 'internal scratch']
  %s0 = inlined_call_operand.vmem [shape: bf16[8,2160], index: 0, kind: input, shape index: {}]
  %s1 = inlined_call_operand.vmem [shape: bf16[2160,128], index: 1, kind: input, shape index: {}]
  %s2 = inlined_call_operand.vmem [shape: f32[1,128], index: 2, kind: input, shape index: {}]
  %s3 = inlined_call_operand.vmem [shape: f32[128,2], index: 3, kind: input, shape index: {}]
  %s4 = inlined_call_operand.vmem [shape: f32[1,2], index: 4, kind: input, shape index: {}]
  %s5 = inlined_call_operand.vmem [shape: f32[8,2], index: 5, kind: output, shape index: {}]
  %s6 = sld [smem:[#allocation0]]
  $region30: #{net_forward.7} parent=0
    _
  %s8 = ssub.s32 1, %s6
  %s9 = scalar_select 0, %s8, %s6
  // Predicated region
  $region2: #{net_forward.7} parent=0 // pred_check
    _
  $region3: #{net_forward.7} parent=0 // pred_check_branch
    %11 = sbr.rel (0) target = $region5
  $region4: #{net_forward.7} parent=0 // pred_region
    _
  $region5: #{net_forward.7} parent=0 // pred_fallthru
    _
  // Predicated region
  $region6: #{net_forward.7} parent=0 // pred_check
    _
  $region7: #{net_forward.7} parent=0 // pred_check_branch
    %13 = sbr.rel (0) target = $region9
  $region8: #{net_forward.7} parent=0 // pred_region
    _
  $region9: #{net_forward.7} parent=0 // pred_fallthru
    _
  // Predicated region
  $region10: #{net_forward.7} parent=0 // pred_check
    _
  $region11: #{net_forward.7} parent=0 // pred_check_branch
    %15 = sbr.rel (0) target = $region13
  $region12: #{net_forward.7} parent=0 // pred_region
    _
  $region13: #{net_forward.7} parent=0 // pred_fallthru
    _
  // Predicated region
  $region14: #{net_forward.7} parent=0 // pred_check
    _
  $region15: #{net_forward.7} parent=0 // pred_check_branch
    %17 = sbr.rel (0) target = $region17
  $region16: #{net_forward.7} parent=0 // pred_region
    _
  $region17: #{net_forward.7} parent=0 // pred_fallthru
    _
  // Predicated region
  $region18: #{net_forward.7} parent=0 // pred_check
    _
  $region19: #{net_forward.7} parent=0 // pred_check_branch
    %19 = sbr.rel (0) target = $region21
  $region20: #{net_forward.7} parent=0 // pred_region
    _
  $region21: #{net_forward.7} parent=0 // pred_fallthru
    _
  %v21 = vld [vmem:[%s0] sm:$0xff]
  %v22 = vld [vmem:[%s0 + $0x8] sm:$0xff]
  %v23 = vld [vmem:[%s0 + $0x10] sm:$0xff]
  %v24 = vld [vmem:[%s0 + $0x18] sm:$0xff]
  %v25 = vld [vmem:[%s0 + $0x20] sm:$0xff]
  %v26 = vld [vmem:[%s0 + $0x28] sm:$0xff]
  %v27 = vld [vmem:[%s0 + $0x30] sm:$0xff]
  %v28 = vld [vmem:[%s0 + $0x38] sm:$0xff]
  %v29 = vld [vmem:[%s0 + $0x40] sm:$0xf]
  %v30 = vld [vmem:[%s1] sm:$0xf]
  %v31 = vld [vmem:[%s1 + $0x4] sm:$0xf]
  %v32 = vld [vmem:[%s1 + $0x8] sm:$0xf]
  %v33 = vld [vmem:[%s1 + $0xc] sm:$0xf]
  %v34 = vld [vmem:[%s1 + $0x10] sm:$0xf]
  %v35 = vld [vmem:[%s1 + $0x14] sm:$0xf]
  %v36 = vld [vmem:[%s1 + $0x18] sm:$0xf]
  %v37 = vld [vmem:[%s1 + $0x1c] sm:$0xf]
  %v38 = vld [vmem:[%s1 + $0x20] sm:$0xf]
  %v39 = vld [vmem:[%s1 + $0x24] sm:$0xf]
  %v40 = vld [vmem:[%s1 + $0x28] sm:$0xf]
  %v41 = vld [vmem:[%s1 + $0x2c] sm:$0xf]
  %v42 = vld [vmem:[%s1 + $0x30] sm:$0xf]
  %v43 = vld [vmem:[%s1 + $0x34] sm:$0xf]
  %v44 = vld [vmem:[%s1 + $0x38] sm:$0xf]
  %v45 = vld [vmem:[%s1 + $0x3c] sm:$0xf]
  %v46 = vld [vmem:[%s1 + $0x40] sm:$0xf]
  %v47 = vld [vmem:[%s1 + $0x44] sm:$0xf]
  %v48 = vld [vmem:[%s1 + $0x48] sm:$0xf]
  %v49 = vld [vmem:[%s1 + $0x4c] sm:$0xf]
  %v50 = vld [vmem:[%s1 + $0x50] sm:$0xf]
  %v51 = vld [vmem:[%s1 + $0x54] sm:$0xf]
  %v52 = vld [vmem:[%s1 + $0x58] sm:$0xf]
  %v53 = vld [vmem:[%s1 + $0x5c] sm:$0xf]
  %v54 = vld [vmem:[%s1 + $0x60] sm:$0xf]
  %v55 = vld [vmem:[%s1 + $0x64] sm:$0xf]
  %v56 = vld [vmem:[%s1 + $0x68] sm:$0xf]
  %v57 = vld [vmem:[%s1 + $0x6c] sm:$0xf]
  %v58 = vld [vmem:[%s1 + $0x70] sm:$0xf]
  %v59 = vld [vmem:[%s1 + $0x74] sm:$0xf]
  %v60 = vld [vmem:[%s1 + $0x78] sm:$0xf]
  %v61 = vld [vmem:[%s1 + $0x7c] sm:$0xf]
  %v62 = vld [vmem:[%s1 + $0x80] sm:$0xf]
  %v63 = vld [vmem:[%s1 + $0x84] sm:$0xf]
  %v64 = vld [vmem:[%s1 + $0x88] sm:$0xf]
  %v65 = vld [vmem:[%s1 + $0x8c] sm:$0xf]
  %v66 = vld [vmem:[%s1 + $0x90] sm:$0xf]
  %v67 = vld [vmem:[%s1 + $0x94] sm:$0xf]
  %v68 = vld [vmem:[%s1 + $0x98] sm:$0xf]
  %v69 = vld [vmem:[%s1 + $0x9c] sm:$0xf]
  %v70 = vld [vmem:[%s1 + $0xa0] sm:$0xf]
  %v71 = vld [vmem:[%s1 + $0xa4] sm:$0xf]
  %v72 = vld [vmem:[%s1 + $0xa8] sm:$0xf]
  %v73 = vld [vmem:[%s1 + $0xac] sm:$0xf]
  %v74 = vld [vmem:[%s1 + $0xb0] sm:$0xf]
  %v75 = vld [vmem:[%s1 + $0xb4] sm:$0xf]
  %v76 = vld [vmem:[%s1 + $0xb8] sm:$0xf]
  %v77 = vld [vmem:[%s1 + $0xbc] sm:$0xf]
  %v78 = vld [vmem:[%s1 + $0xc0] sm:$0xf]
  %v79 = vld [vmem:[%s1 + $0xc4] sm:$0xf]
  %v80 = vld [vmem:[%s1 + $0xc8] sm:$0xf]
  %v81 = vld [vmem:[%s1 + $0xcc] sm:$0xf]
  %v82 = vld [vmem:[%s1 + $0xd0] sm:$0xf]
  %v83 = vld [vmem:[%s1 + $0xd4] sm:$0xf]
  %v84 = vld [vmem:[%s1 + $0xd8] sm:$0xf]
  %v85 = vld [vmem:[%s1 + $0xdc] sm:$0xf]
  %v86 = vld [vmem:[%s1 + $0xe0] sm:$0xf]
  %v87 = vld [vmem:[%s1 + $0xe4] sm:$0xf]
  %v88 = vld [vmem:[%s1 + $0xe8] sm:$0xf]
  %v89 = vld [vmem:[%s1 + $0xec] sm:$0xf]
  %v90 = vld [vmem:[%s1 + $0xf0] sm:$0xf]
  %v91 = vld [vmem:[%s1 + $0xf4] sm:$0xf]
  %v92 = vld [vmem:[%s1 + $0xf8] sm:$0xf]
  %v93 = vld [vmem:[%s1 + $0xfc] sm:$0xf]
  %v94 = vld [vmem:[%s1 + $0x100] sm:$0xf]
  %v95 = vld [vmem:[%s1 + $0x104] sm:$0xf]
  %v96 = vld [vmem:[%s1 + $0x108] sm:$0xf]
  %v97 = vld [vmem:[%s1 + $0x10c] sm:$0xf]
  %v98 = vld [vmem:[%s1 + $0x110] sm:$0xf]
  %v99 = vld [vmem:[%s1 + $0x114] sm:$0xf]
  %v100 = vld [vmem:[%s1 + $0x118] sm:$0xf]
  %v101 = vld [vmem:[%s1 + $0x11c] sm:$0xf]
  %v102 = vld [vmem:[%s1 + $0x120] sm:$0xf]
  %v103 = vld [vmem:[%s1 + $0x124] sm:$0xf]
  %v104 = vld [vmem:[%s1 + $0x128] sm:$0xf]
  %v105 = vld [vmem:[%s1 + $0x12c] sm:$0xf]
  %v106 = vld [vmem:[%s1 + $0x130] sm:$0xf]
  %v107 = vld [vmem:[%s1 + $0x134] sm:$0xf]
  %v108 = vld [vmem:[%s1 + $0x138] sm:$0xf]
  %v109 = vld [vmem:[%s1 + $0x13c] sm:$0xf]
  %v110 = vld [vmem:[%s1 + $0x140] sm:$0xf]
  %v111 = vld [vmem:[%s1 + $0x144] sm:$0xf]
  %v112 = vld [vmem:[%s1 + $0x148] sm:$0xf]
  %v113 = vld [vmem:[%s1 + $0x14c] sm:$0xf]
  %v114 = vld [vmem:[%s1 + $0x150] sm:$0xf]
  %v115 = vld [vmem:[%s1 + $0x154] sm:$0xf]
  %v116 = vld [vmem:[%s1 + $0x158] sm:$0xf]
  %v117 = vld [vmem:[%s1 + $0x15c] sm:$0xf]
  %v118 = vld [vmem:[%s1 + $0x160] sm:$0xf]
  %v119 = vld [vmem:[%s1 + $0x164] sm:$0xf]
  %v120 = vld [vmem:[%s1 + $0x168] sm:$0xf]
  %v121 = vld [vmem:[%s1 + $0x16c] sm:$0xf]
  %v122 = vld [vmem:[%s1 + $0x170] sm:$0xf]
  %v123 = vld [vmem:[%s1 + $0x174] sm:$0xf]
  %v124 = vld [vmem:[%s1 + $0x178] sm:$0xf]
  %v125 = vld [vmem:[%s1 + $0x17c] sm:$0xf]
  %v126 = vld [vmem:[%s1 + $0x180] sm:$0xf]
  %v127 = vld [vmem:[%s1 + $0x184] sm:$0xf]
  %v128 = vld [vmem:[%s1 + $0x188] sm:$0xf]
  %v129 = vld [vmem:[%s1 + $0x18c] sm:$0xf]
  %v130 = vld [vmem:[%s1 + $0x190] sm:$0xf]
  %v131 = vld [vmem:[%s1 + $0x194] sm:$0xf]
  %v132 = vld [vmem:[%s1 + $0x198] sm:$0xf]
  %v133 = vld [vmem:[%s1 + $0x19c] sm:$0xf]
  %v134 = vld [vmem:[%s1 + $0x1a0] sm:$0xf]
  %v135 = vld [vmem:[%s1 + $0x1a4] sm:$0xf]
  %v136 = vld [vmem:[%s1 + $0x1a8] sm:$0xf]
  %v137 = vld [vmem:[%s1 + $0x1ac] sm:$0xf]
  %v138 = vld [vmem:[%s1 + $0x1b0] sm:$0xf]
  %v139 = vld [vmem:[%s1 + $0x1b4] sm:$0xf]
  %v140 = vld [vmem:[%s1 + $0x1b8] sm:$0xf]
  %v141 = vld [vmem:[%s1 + $0x1bc] sm:$0xf]
  %v142 = vld [vmem:[%s1 + $0x1c0] sm:$0xf]
  %v143 = vld [vmem:[%s1 + $0x1c4] sm:$0xf]
  %v144 = vld [vmem:[%s1 + $0x1c8] sm:$0xf]
  %v145 = vld [vmem:[%s1 + $0x1cc] sm:$0xf]
  %v146 = vld [vmem:[%s1 + $0x1d0] sm:$0xf]
  %v147 = vld [vmem:[%s1 + $0x1d4] sm:$0xf]
  %v148 = vld [vmem:[%s1 + $0x1d8] sm:$0xf]
  %v149 = vld [vmem:[%s1 + $0x1dc] sm:$0xf]
  %v150 = vld [vmem:[%s1 + $0x1e0] sm:$0xf]
  %v151 = vld [vmem:[%s1 + $0x1e4] sm:$0xf]
  %v152 = vld [vmem:[%s1 + $0x1e8] sm:$0xf]
  %v153 = vld [vmem:[%s1 + $0x1ec] sm:$0xf]
  %v154 = vld [vmem:[%s1 + $0x1f0] sm:$0xf]
  %v155 = vld [vmem:[%s1 + $0x1f4] sm:$0xf]
  %v156 = vld [vmem:[%s1 + $0x1f8] sm:$0xf]
  %v157 = vld [vmem:[%s1 + $0x1fc] sm:$0xf]
  %v158 = vld [vmem:[%s1 + $0x200] sm:$0xf]
  %v159 = vld [vmem:[%s1 + $0x204] sm:$0xf]
  %v160 = vld [vmem:[%s1 + $0x208] sm:$0xf]
  %v161 = vld [vmem:[%s1 + $0x20c] sm:$0xf]
  %v162 = vld [vmem:[%s1 + $0x210] sm:$0xf]
  %v163 = vld [vmem:[%s1 + $0x214] sm:$0xf]
  %v164 = vld [vmem:[%s1 + $0x218] sm:$0xf]
  %v165 = vld [vmem:[%s1 + $0x21c] sm:$0xf]
  %v166 = vld [vmem:[%s1 + $0x220] sm:$0xf]
  %v167 = vld [vmem:[%s1 + $0x224] sm:$0xf]
  %v168 = vld [vmem:[%s1 + $0x228] sm:$0xf]
  %v169 = vld [vmem:[%s1 + $0x22c] sm:$0xf]
  %v170 = vld [vmem:[%s1 + $0x230] sm:$0xf]
  %v171 = vld [vmem:[%s1 + $0x234] sm:$0xf]
  %v172 = vld [vmem:[%s1 + $0x238] sm:$0xf]
  %v173 = vld [vmem:[%s1 + $0x23c] sm:$0xf]
  %v174 = vld [vmem:[%s1 + $0x240] sm:$0xf]
  %v175 = vld [vmem:[%s1 + $0x244] sm:$0xf]
  %v176 = vld [vmem:[%s1 + $0x248] sm:$0xf]
  %v177 = vld [vmem:[%s1 + $0x24c] sm:$0xf]
  %v178 = vld [vmem:[%s1 + $0x250] sm:$0xf]
  %v179 = vld [vmem:[%s1 + $0x254] sm:$0xf]
  %v180 = vld [vmem:[%s1 + $0x258] sm:$0xf]
  %v181 = vld [vmem:[%s1 + $0x25c] sm:$0xf]
  %v182 = vld [vmem:[%s1 + $0x260] sm:$0xf]
  %v183 = vld [vmem:[%s1 + $0x264] sm:$0xf]
  %v184 = vld [vmem:[%s1 + $0x268] sm:$0xf]
  %v185 = vld [vmem:[%s1 + $0x26c] sm:$0xf]
  %v186 = vld [vmem:[%s1 + $0x270] sm:$0xf]
  %v187 = vld [vmem:[%s1 + $0x274] sm:$0xf]
  %v188 = vld [vmem:[%s1 + $0x278] sm:$0xf]
  %v189 = vld [vmem:[%s1 + $0x27c] sm:$0xf]
  %v190 = vld [vmem:[%s1 + $0x280] sm:$0xf]
  %v191 = vld [vmem:[%s1 + $0x284] sm:$0xf]
  %v192 = vld [vmem:[%s1 + $0x288] sm:$0xf]
  %v193 = vld [vmem:[%s1 + $0x28c] sm:$0xf]
  %v194 = vld [vmem:[%s1 + $0x290] sm:$0xf]
  %v195 = vld [vmem:[%s1 + $0x294] sm:$0xf]
  %v196 = vld [vmem:[%s1 + $0x298] sm:$0xf]
  %v197 = vld [vmem:[%s1 + $0x29c] sm:$0xf]
  %v198 = vld [vmem:[%s1 + $0x2a0] sm:$0xf]
  %v199 = vld [vmem:[%s1 + $0x2a4] sm:$0xf]
  %v200 = vld [vmem:[%s1 + $0x2a8] sm:$0xf]
  %v201 = vld [vmem:[%s1 + $0x2ac] sm:$0xf]
  %v202 = vld [vmem:[%s1 + $0x2b0] sm:$0xf]
  %v203 = vld [vmem:[%s1 + $0x2b4] sm:$0xf]
  %v204 = vld [vmem:[%s1 + $0x2b8] sm:$0xf]
  %v205 = vld [vmem:[%s1 + $0x2bc] sm:$0xf]
  %v206 = vld [vmem:[%s1 + $0x2c0] sm:$0xf]
  %v207 = vld [vmem:[%s1 + $0x2c4] sm:$0xf]
  %v208 = vld [vmem:[%s1 + $0x2c8] sm:$0xf]
  %v209 = vld [vmem:[%s1 + $0x2cc] sm:$0xf]
  %v210 = vld [vmem:[%s1 + $0x2d0] sm:$0xf]
  %v211 = vld [vmem:[%s1 + $0x2d4] sm:$0xf]
  %v212 = vld [vmem:[%s1 + $0x2d8] sm:$0xf]
  %v213 = vld [vmem:[%s1 + $0x2dc] sm:$0xf]
  %v214 = vld [vmem:[%s1 + $0x2e0] sm:$0xf]
  %v215 = vld [vmem:[%s1 + $0x2e4] sm:$0xf]
  %v216 = vld [vmem:[%s1 + $0x2e8] sm:$0xf]
  %v217 = vld [vmem:[%s1 + $0x2ec] sm:$0xf]
  %v218 = vld [vmem:[%s1 + $0x2f0] sm:$0xf]
  %v219 = vld [vmem:[%s1 + $0x2f4] sm:$0xf]
  %v220 = vld [vmem:[%s1 + $0x2f8] sm:$0xf]
  %v221 = vld [vmem:[%s1 + $0x2fc] sm:$0xf]
  %v222 = vld [vmem:[%s1 + $0x300] sm:$0xf]
  %v223 = vld [vmem:[%s1 + $0x304] sm:$0xf]
  %v224 = vld [vmem:[%s1 + $0x308] sm:$0xf]
  %v225 = vld [vmem:[%s1 + $0x30c] sm:$0xf]
  %v226 = vld [vmem:[%s1 + $0x310] sm:$0xf]
  %v227 = vld [vmem:[%s1 + $0x314] sm:$0xf]
  %v228 = vld [vmem:[%s1 + $0x318] sm:$0xf]
  %v229 = vld [vmem:[%s1 + $0x31c] sm:$0xf]
  %v230 = vld [vmem:[%s1 + $0x320] sm:$0xf]
  %v231 = vld [vmem:[%s1 + $0x324] sm:$0xf]
  %v232 = vld [vmem:[%s1 + $0x328] sm:$0xf]
  %v233 = vld [vmem:[%s1 + $0x32c] sm:$0xf]
  %v234 = vld [vmem:[%s1 + $0x330] sm:$0xf]
  %v235 = vld [vmem:[%s1 + $0x334] sm:$0xf]
  %v236 = vld [vmem:[%s1 + $0x338] sm:$0xf]
  %v237 = vld [vmem:[%s1 + $0x33c] sm:$0xf]
  %v238 = vld [vmem:[%s1 + $0x340] sm:$0xf]
  %v239 = vld [vmem:[%s1 + $0x344] sm:$0xf]
  %v240 = vld [vmem:[%s1 + $0x348] sm:$0xf]
  %v241 = vld [vmem:[%s1 + $0x34c] sm:$0xf]
  %v242 = vld [vmem:[%s1 + $0x350] sm:$0xf]
  %v243 = vld [vmem:[%s1 + $0x354] sm:$0xf]
  %v244 = vld [vmem:[%s1 + $0x358] sm:$0xf]
  %v245 = vld [vmem:[%s1 + $0x35c] sm:$0xf]
  %v246 = vld [vmem:[%s1 + $0x360] sm:$0xf]
  %v247 = vld [vmem:[%s1 + $0x364] sm:$0xf]
  %v248 = vld [vmem:[%s1 + $0x368] sm:$0xf]
  %v249 = vld [vmem:[%s1 + $0x36c] sm:$0xf]
  %v250 = vld [vmem:[%s1 + $0x370] sm:$0xf]
  %v251 = vld [vmem:[%s1 + $0x374] sm:$0xf]
  %v252 = vld [vmem:[%s1 + $0x378] sm:$0xf]
  %v253 = vld [vmem:[%s1 + $0x37c] sm:$0xf]
  %v254 = vld [vmem:[%s1 + $0x380] sm:$0xf]
  %v255 = vld [vmem:[%s1 + $0x384] sm:$0xf]
  %v256 = vld [vmem:[%s1 + $0x388] sm:$0xf]
  %v257 = vld [vmem:[%s1 + $0x38c] sm:$0xf]
  %v258 = vld [vmem:[%s1 + $0x390] sm:$0xf]
  %v259 = vld [vmem:[%s1 + $0x394] sm:$0xf]
  %v260 = vld [vmem:[%s1 + $0x398] sm:$0xf]
  %v261 = vld [vmem:[%s1 + $0x39c] sm:$0xf]
  %v262 = vld [vmem:[%s1 + $0x3a0] sm:$0xf]
  %v263 = vld [vmem:[%s1 + $0x3a4] sm:$0xf]
  %v264 = vld [vmem:[%s1 + $0x3a8] sm:$0xf]
  %v265 = vld [vmem:[%s1 + $0x3ac] sm:$0xf]
  %v266 = vld [vmem:[%s1 + $0x3b0] sm:$0xf]
  %v267 = vld [vmem:[%s1 + $0x3b4] sm:$0xf]
  %v268 = vld [vmem:[%s1 + $0x3b8] sm:$0xf]
  %v269 = vld [vmem:[%s1 + $0x3bc] sm:$0xf]
  %v270 = vld [vmem:[%s1 + $0x3c0] sm:$0xf]
  %v271 = vld [vmem:[%s1 + $0x3c4] sm:$0xf]
  %v272 = vld [vmem:[%s1 + $0x3c8] sm:$0xf]
  %v273 = vld [vmem:[%s1 + $0x3cc] sm:$0xf]
  %v274 = vld [vmem:[%s1 + $0x3d0] sm:$0xf]
  %v275 = vld [vmem:[%s1 + $0x3d4] sm:$0xf]
  %v276 = vld [vmem:[%s1 + $0x3d8] sm:$0xf]
  %v277 = vld [vmem:[%s1 + $0x3dc] sm:$0xf]
  %v278 = vld [vmem:[%s1 + $0x3e0] sm:$0xf]
  %v279 = vld [vmem:[%s1 + $0x3e4] sm:$0xf]
  %v280 = vld [vmem:[%s1 + $0x3e8] sm:$0xf]
  %v281 = vld [vmem:[%s1 + $0x3ec] sm:$0xf]
  %v282 = vld [vmem:[%s1 + $0x3f0] sm:$0xf]
  %v283 = vld [vmem:[%s1 + $0x3f4] sm:$0xf]
  %v284 = vld [vmem:[%s1 + $0x3f8] sm:$0xf]
  %v285 = vld [vmem:[%s1 + $0x3fc] sm:$0xf]
  %v286 = vld [vmem:[%s1 + $0x400] sm:$0xf]
  %v287 = vld [vmem:[%s1 + $0x404] sm:$0xf]
  %v288 = vld [vmem:[%s1 + $0x408] sm:$0xf]
  %v289 = vld [vmem:[%s1 + $0x40c] sm:$0xf]
  %v290 = vld [vmem:[%s1 + $0x410] sm:$0xf]
  %v291 = vld [vmem:[%s1 + $0x414] sm:$0xf]
  %v292 = vld [vmem:[%s1 + $0x418] sm:$0xf]
  %v293 = vld [vmem:[%s1 + $0x41c] sm:$0xf]
  %v294 = vld [vmem:[%s1 + $0x420] sm:$0xf]
  %v295 = vld [vmem:[%s1 + $0x424] sm:$0xf]
  %v296 = vld [vmem:[%s1 + $0x428] sm:$0xf]
  %v297 = vld [vmem:[%s1 + $0x42c] sm:$0xf]
  %v298 = vld [vmem:[%s1 + $0x430] sm:$0xf]
  %v299 = vld [vmem:[%s1 + $0x434] sm:$0xf]
  %v300 = vld [vmem:[%s2] sm:$0x1]
  %v302 = vlaneseq
  %v303 = vshrl.u32 %v302, 7
  %v304 = vsub.s32 0, %v303
  %v305 = vrot.slane %v300, %v304
  %v316 = vunpack.c.l.b16 %v21
  %v317 = vunpack.c.h.b16 %v21
  %v318 = vunpack.c.l.b16 %v22
  %v319 = vunpack.c.h.b16 %v22
  %v320 = vunpack.c.l.b16 %v23
  %v321 = vunpack.c.h.b16 %v23
  %v322 = vunpack.c.l.b16 %v24
  %v323 = vunpack.c.h.b16 %v24
  %v324 = vunpack.c.l.b16 %v25
  %v325 = vunpack.c.h.b16 %v25
  %v326 = vunpack.c.l.b16 %v26
  %v327 = vunpack.c.h.b16 %v26
  %v328 = vunpack.c.l.b16 %v27
  %v329 = vunpack.c.h.b16 %v27
  %v330 = vunpack.c.l.b16 %v28
  %v331 = vunpack.c.h.b16 %v28
  %v332 = vunpack.c.l.b16 %v29
  %v333 = vpack.c.b16 %v316, %v316
  %v334 = vpack.c.b16 %v317, %v317
  %v335 = vpack.c.b16 %v318, %v318
  %v336 = vpack.c.b16 %v319, %v319
  %v337 = vpack.c.b16 %v320, %v320
  %v338 = vpack.c.b16 %v321, %v321
  %v339 = vpack.c.b16 %v322, %v322
  %v340 = vpack.c.b16 %v323, %v323
  %v341 = vpack.c.b16 %v324, %v324
  %v342 = vpack.c.b16 %v325, %v325
  %v343 = vpack.c.b16 %v326, %v326
  %v344 = vpack.c.b16 %v327, %v327
  %v345 = vpack.c.b16 %v328, %v328
  %v346 = vpack.c.b16 %v329, %v329
  %v347 = vpack.c.b16 %v330, %v330
  %v348 = vpack.c.b16 %v331, %v331
  %v349 = vpack.c.b16 %v332, %v332
  %v636 = vunpack.c.l.b16 %v30
  %v637 = vunpack.c.l.b16 %v31
  %v638 = vunpack.c.l.b16 %v32
  %v639 = vunpack.c.l.b16 %v33
  %v640 = vunpack.c.l.b16 %v34
  %v641 = vunpack.c.l.b16 %v35
  %v642 = vunpack.c.l.b16 %v36
  %v643 = vunpack.c.l.b16 %v37
  %v644 = vunpack.c.l.b16 %v38
  %v645 = vunpack.c.l.b16 %v39
  %v646 = vunpack.c.l.b16 %v40
  %v647 = vunpack.c.l.b16 %v41
  %v648 = vunpack.c.l.b16 %v42
  %v649 = vunpack.c.l.b16 %v43
  %v650 = vunpack.c.l.b16 %v44
  %v651 = vunpack.c.l.b16 %v45
  %v652 = vunpack.c.l.b16 %v46
  %v653 = vunpack.c.l.b16 %v47
  %v654 = vunpack.c.l.b16 %v48
  %v655 = vunpack.c.l.b16 %v49
  %v656 = vunpack.c.l.b16 %v50
  %v657 = vunpack.c.l.b16 %v51
  %v658 = vunpack.c.l.b16 %v52
  %v659 = vunpack.c.l.b16 %v53
  %v660 = vunpack.c.l.b16 %v54
  %v661 = vunpack.c.l.b16 %v55
  %v662 = vunpack.c.l.b16 %v56
  %v663 = vunpack.c.l.b16 %v57
  %v664 = vunpack.c.l.b16 %v58
  %v665 = vunpack.c.l.b16 %v59
  %v666 = vunpack.c.l.b16 %v60
  %v667 = vunpack.c.l.b16 %v61
  %v668 = vunpack.c.l.b16 %v62
  %v669 = vunpack.c.l.b16 %v63
  %v670 = vunpack.c.l.b16 %v64
  %v671 = vunpack.c.l.b16 %v65
  %v672 = vunpack.c.l.b16 %v66
  %v673 = vunpack.c.l.b16 %v67
  %v674 = vunpack.c.l.b16 %v68
  %v675 = vunpack.c.l.b16 %v69
  %v676 = vunpack.c.l.b16 %v70
  %v677 = vunpack.c.l.b16 %v71
  %v678 = vunpack.c.l.b16 %v72
  %v679 = vunpack.c.l.b16 %v73
  %v680 = vunpack.c.l.b16 %v74
  %v681 = vunpack.c.l.b16 %v75
  %v682 = vunpack.c.l.b16 %v76
  %v683 = vunpack.c.l.b16 %v77
  %v684 = vunpack.c.l.b16 %v78
  %v685 = vunpack.c.l.b16 %v79
  %v686 = vunpack.c.l.b16 %v80
  %v687 = vunpack.c.l.b16 %v81
  %v688 = vunpack.c.l.b16 %v82
  %v689 = vunpack.c.l.b16 %v83
  %v690 = vunpack.c.l.b16 %v84
  %v691 = vunpack.c.l.b16 %v85
  %v692 = vunpack.c.l.b16 %v86
  %v693 = vunpack.c.l.b16 %v87
  %v694 = vunpack.c.l.b16 %v88
  %v695 = vunpack.c.l.b16 %v89
  %v696 = vunpack.c.l.b16 %v90
  %v697 = vunpack.c.l.b16 %v91
  %v698 = vunpack.c.l.b16 %v92
  %v699 = vunpack.c.l.b16 %v93
  %v700 = vunpack.c.l.b16 %v94
  %v701 = vunpack.c.l.b16 %v95
  %v702 = vunpack.c.l.b16 %v96
  %v703 = vunpack.c.l.b16 %v97
  %v704 = vunpack.c.l.b16 %v98
  %v705 = vunpack.c.l.b16 %v99
  %v706 = vunpack.c.l.b16 %v100
  %v707 = vunpack.c.l.b16 %v101
  %v708 = vunpack.c.l.b16 %v102
  %v709 = vunpack.c.l.b16 %v103
  %v710 = vunpack.c.l.b16 %v104
  %v711 = vunpack.c.l.b16 %v105
  %v712 = vunpack.c.l.b16 %v106
  %v713 = vunpack.c.l.b16 %v107
  %v714 = vunpack.c.l.b16 %v108
  %v715 = vunpack.c.l.b16 %v109
  %v716 = vunpack.c.l.b16 %v110
  %v717 = vunpack.c.l.b16 %v111
  %v718 = vunpack.c.l.b16 %v112
  %v719 = vunpack.c.l.b16 %v113
  %v720 = vunpack.c.l.b16 %v114
  %v721 = vunpack.c.l.b16 %v115
  %v722 = vunpack.c.l.b16 %v116
  %v723 = vunpack.c.l.b16 %v117
  %v724 = vunpack.c.l.b16 %v118
  %v725 = vunpack.c.l.b16 %v119
  %v726 = vunpack.c.l.b16 %v120
  %v727 = vunpack.c.l.b16 %v121
  %v728 = vunpack.c.l.b16 %v122
  %v729 = vunpack.c.l.b16 %v123
  %v730 = vunpack.c.l.b16 %v124
  %v731 = vunpack.c.l.b16 %v125
  %v732 = vunpack.c.l.b16 %v126
  %v733 = vunpack.c.l.b16 %v127
  %v734 = vunpack.c.l.b16 %v128
  %v735 = vunpack.c.l.b16 %v129
  %v736 = vunpack.c.l.b16 %v130
  %v737 = vunpack.c.l.b16 %v131
  %v738 = vunpack.c.l.b16 %v132
  %v739 = vunpack.c.l.b16 %v133
  %v740 = vunpack.c.l.b16 %v134
  %v741 = vunpack.c.l.b16 %v135
  %v742 = vunpack.c.l.b16 %v136
  %v743 = vunpack.c.l.b16 %v137
  %v744 = vunpack.c.l.b16 %v138
  %v745 = vunpack.c.l.b16 %v139
  %v746 = vunpack.c.l.b16 %v140
  %v747 = vunpack.c.l.b16 %v141
  %v748 = vunpack.c.l.b16 %v142
  %v749 = vunpack.c.l.b16 %v143
  %v750 = vunpack.c.l.b16 %v144
  %v751 = vunpack.c.l.b16 %v145
  %v752 = vunpack.c.l.b16 %v146
  %v753 = vunpack.c.l.b16 %v147
  %v754 = vunpack.c.l.b16 %v148
  %v755 = vunpack.c.l.b16 %v149
  %v756 = vunpack.c.l.b16 %v150
  %v757 = vunpack.c.l.b16 %v151
  %v758 = vunpack.c.l.b16 %v152
  %v759 = vunpack.c.l.b16 %v153
  %v760 = vunpack.c.l.b16 %v154
  %v761 = vunpack.c.l.b16 %v155
  %v762 = vunpack.c.l.b16 %v156
  %v763 = vunpack.c.l.b16 %v157
  %v764 = vunpack.c.l.b16 %v158
  %v765 = vunpack.c.l.b16 %v159
  %v766 = vunpack.c.l.b16 %v160
  %v767 = vunpack.c.l.b16 %v161
  %v768 = vunpack.c.l.b16 %v162
  %v769 = vunpack.c.l.b16 %v163
  %v770 = vunpack.c.l.b16 %v164
  %v771 = vunpack.c.l.b16 %v165
  %v772 = vunpack.c.l.b16 %v166
  %v773 = vunpack.c.l.b16 %v167
  %v774 = vunpack.c.l.b16 %v168
  %v775 = vunpack.c.l.b16 %v169
  %v776 = vunpack.c.l.b16 %v170
  %v777 = vunpack.c.l.b16 %v171
  %v778 = vunpack.c.l.b16 %v172
  %v779 = vunpack.c.l.b16 %v173
  %v780 = vunpack.c.l.b16 %v174
  %v781 = vunpack.c.l.b16 %v175
  %v782 = vunpack.c.l.b16 %v176
  %v783 = vunpack.c.l.b16 %v177
  %v784 = vunpack.c.l.b16 %v178
  %v785 = vunpack.c.l.b16 %v179
  %v786 = vunpack.c.l.b16 %v180
  %v787 = vunpack.c.l.b16 %v181
  %v788 = vunpack.c.l.b16 %v182
  %v789 = vunpack.c.l.b16 %v183
  %v790 = vunpack.c.l.b16 %v184
  %v791 = vunpack.c.l.b16 %v185
  %v792 = vunpack.c.l.b16 %v186
  %v793 = vunpack.c.l.b16 %v187
  %v794 = vunpack.c.l.b16 %v188
  %v795 = vunpack.c.l.b16 %v189
  %v796 = vunpack.c.l.b16 %v190
  %v797 = vunpack.c.l.b16 %v191
  %v798 = vunpack.c.l.b16 %v192
  %v799 = vunpack.c.l.b16 %v193
  %v800 = vunpack.c.l.b16 %v194
  %v801 = vunpack.c.l.b16 %v195
  %v802 = vunpack.c.l.b16 %v196
  %v803 = vunpack.c.l.b16 %v197
  %v804 = vunpack.c.l.b16 %v198
  %v805 = vunpack.c.l.b16 %v199
  %v806 = vunpack.c.l.b16 %v200
  %v807 = vunpack.c.l.b16 %v201
  %v808 = vunpack.c.l.b16 %v202
  %v809 = vunpack.c.l.b16 %v203
  %v810 = vunpack.c.l.b16 %v204
  %v811 = vunpack.c.l.b16 %v205
  %v812 = vunpack.c.l.b16 %v206
  %v813 = vunpack.c.l.b16 %v207
  %v814 = vunpack.c.l.b16 %v208
  %v815 = vunpack.c.l.b16 %v209
  %v816 = vunpack.c.l.b16 %v210
  %v817 = vunpack.c.l.b16 %v211
  %v818 = vunpack.c.l.b16 %v212
  %v819 = vunpack.c.l.b16 %v213
  %v820 = vunpack.c.l.b16 %v214
  %v821 = vunpack.c.l.b16 %v215
  %v822 = vunpack.c.l.b16 %v216
  %v823 = vunpack.c.l.b16 %v217
  %v824 = vunpack.c.l.b16 %v218
  %v825 = vunpack.c.l.b16 %v219
  %v826 = vunpack.c.l.b16 %v220
  %v827 = vunpack.c.l.b16 %v221
  %v828 = vunpack.c.l.b16 %v222
  %v829 = vunpack.c.l.b16 %v223
  %v830 = vunpack.c.l.b16 %v224
  %v831 = vunpack.c.l.b16 %v225
  %v832 = vunpack.c.l.b16 %v226
  %v833 = vunpack.c.l.b16 %v227
  %v834 = vunpack.c.l.b16 %v228
  %v835 = vunpack.c.l.b16 %v229
  %v836 = vunpack.c.l.b16 %v230
  %v837 = vunpack.c.l.b16 %v231
  %v838 = vunpack.c.l.b16 %v232
  %v839 = vunpack.c.l.b16 %v233
  %v840 = vunpack.c.l.b16 %v234
  %v841 = vunpack.c.l.b16 %v235
  %v842 = vunpack.c.l.b16 %v236
  %v843 = vunpack.c.l.b16 %v237
  %v844 = vunpack.c.l.b16 %v238
  %v845 = vunpack.c.l.b16 %v239
  %v846 = vunpack.c.l.b16 %v240
  %v847 = vunpack.c.l.b16 %v241
  %v848 = vunpack.c.l.b16 %v242
  %v849 = vunpack.c.l.b16 %v243
  %v850 = vunpack.c.l.b16 %v244
  %v851 = vunpack.c.l.b16 %v245
  %v852 = vunpack.c.l.b16 %v246
  %v853 = vunpack.c.l.b16 %v247
  %v854 = vunpack.c.l.b16 %v248
  %v855 = vunpack.c.l.b16 %v249
  %v856 = vunpack.c.l.b16 %v250
  %v857 = vunpack.c.l.b16 %v251
  %v858 = vunpack.c.l.b16 %v252
  %v859 = vunpack.c.l.b16 %v253
  %v860 = vunpack.c.l.b16 %v254
  %v861 = vunpack.c.l.b16 %v255
  %v862 = vunpack.c.l.b16 %v256
  %v863 = vunpack.c.l.b16 %v257
  %v864 = vunpack.c.l.b16 %v258
  %v865 = vunpack.c.l.b16 %v259
  %v866 = vunpack.c.l.b16 %v260
  %v867 = vunpack.c.l.b16 %v261
  %v868 = vunpack.c.l.b16 %v262
  %v869 = vunpack.c.l.b16 %v263
  %v870 = vunpack.c.l.b16 %v264
  %v871 = vunpack.c.l.b16 %v265
  %v872 = vunpack.c.l.b16 %v266
  %v873 = vunpack.c.l.b16 %v267
  %v874 = vunpack.c.l.b16 %v268
  %v875 = vunpack.c.l.b16 %v269
  %v876 = vunpack.c.l.b16 %v270
  %v877 = vunpack.c.l.b16 %v271
  %v878 = vunpack.c.l.b16 %v272
  %v879 = vunpack.c.l.b16 %v273
  %v880 = vunpack.c.l.b16 %v274
  %v881 = vunpack.c.l.b16 %v275
  %v882 = vunpack.c.l.b16 %v276
  %v883 = vunpack.c.l.b16 %v277
  %v884 = vunpack.c.l.b16 %v278
  %v885 = vunpack.c.l.b16 %v279
  %v886 = vunpack.c.l.b16 %v280
  %v887 = vunpack.c.l.b16 %v281
  %v888 = vunpack.c.l.b16 %v282
  %v889 = vunpack.c.l.b16 %v283
  %v890 = vunpack.c.l.b16 %v284
  %v891 = vunpack.c.l.b16 %v285
  %v892 = vunpack.c.l.b16 %v286
  %v893 = vunpack.c.l.b16 %v287
  %v894 = vunpack.c.l.b16 %v288
  %v895 = vunpack.c.l.b16 %v289
  %v896 = vunpack.c.l.b16 %v290
  %v897 = vunpack.c.l.b16 %v291
  %v898 = vunpack.c.l.b16 %v292
  %v899 = vunpack.c.l.b16 %v293
  %v900 = vunpack.c.l.b16 %v294
  %v901 = vunpack.c.l.b16 %v295
  %v902 = vunpack.c.l.b16 %v296
  %v903 = vunpack.c.l.b16 %v297
  %v904 = vunpack.c.l.b16 %v298
  %v905 = vunpack.c.l.b16 %v299
  %v906 = vpack.c.b16 %v637, %v636
  %v907 = vpack.c.b16 %v639, %v638
  %v908 = vpack.c.b16 %v641, %v640
  %v909 = vpack.c.b16 %v643, %v642
  %v910 = vpack.c.b16 %v645, %v644
  %v911 = vpack.c.b16 %v647, %v646
  %v912 = vpack.c.b16 %v649, %v648
  %v913 = vpack.c.b16 %v651, %v650
  %v914 = vpack.c.b16 %v653, %v652
  %v915 = vpack.c.b16 %v655, %v654
  %v916 = vpack.c.b16 %v657, %v656
  %v917 = vpack.c.b16 %v659, %v658
  %v918 = vpack.c.b16 %v661, %v660
  %v919 = vpack.c.b16 %v663, %v662
  %v920 = vpack.c.b16 %v665, %v664
  %v921 = vpack.c.b16 %v667, %v666
  %v922 = vpack.c.b16 %v669, %v668
  %v923 = vpack.c.b16 %v671, %v670
  %v924 = vpack.c.b16 %v673, %v672
  %v925 = vpack.c.b16 %v675, %v674
  %v926 = vpack.c.b16 %v677, %v676
  %v927 = vpack.c.b16 %v679, %v678
  %v928 = vpack.c.b16 %v681, %v680
  %v929 = vpack.c.b16 %v683, %v682
  %v930 = vpack.c.b16 %v685, %v684
  %v931 = vpack.c.b16 %v687, %v686
  %v932 = vpack.c.b16 %v689, %v688
  %v933 = vpack.c.b16 %v691, %v690
  %v934 = vpack.c.b16 %v693, %v692
  %v935 = vpack.c.b16 %v695, %v694
  %v936 = vpack.c.b16 %v697, %v696
  %v937 = vpack.c.b16 %v699, %v698
  %v938 = vpack.c.b16 %v701, %v700
  %v939 = vpack.c.b16 %v703, %v702
  %v940 = vpack.c.b16 %v705, %v704
  %v941 = vpack.c.b16 %v707, %v706
  %v942 = vpack.c.b16 %v709, %v708
  %v943 = vpack.c.b16 %v711, %v710
  %v944 = vpack.c.b16 %v713, %v712
  %v945 = vpack.c.b16 %v715, %v714
  %v946 = vpack.c.b16 %v717, %v716
  %v947 = vpack.c.b16 %v719, %v718
  %v948 = vpack.c.b16 %v721, %v720
  %v949 = vpack.c.b16 %v723, %v722
  %v950 = vpack.c.b16 %v725, %v724
  %v951 = vpack.c.b16 %v727, %v726
  %v952 = vpack.c.b16 %v729, %v728
  %v953 = vpack.c.b16 %v731, %v730
  %v954 = vpack.c.b16 %v733, %v732
  %v955 = vpack.c.b16 %v735, %v734
  %v956 = vpack.c.b16 %v737, %v736
  %v957 = vpack.c.b16 %v739, %v738
  %v958 = vpack.c.b16 %v741, %v740
  %v959 = vpack.c.b16 %v743, %v742
  %v960 = vpack.c.b16 %v745, %v744
  %v961 = vpack.c.b16 %v747, %v746
  %v962 = vpack.c.b16 %v749, %v748
  %v963 = vpack.c.b16 %v751, %v750
  %v964 = vpack.c.b16 %v753, %v752
  %v965 = vpack.c.b16 %v755, %v754
  %v966 = vpack.c.b16 %v757, %v756
  %v967 = vpack.c.b16 %v759, %v758
  %v968 = vpack.c.b16 %v761, %v760
  %v969 = vpack.c.b16 %v763, %v762
  %v970 = vpack.c.b16 %v765, %v764
  %v971 = vpack.c.b16 %v767, %v766
  %v972 = vpack.c.b16 %v769, %v768
  %v973 = vpack.c.b16 %v771, %v770
  %v974 = vpack.c.b16 %v773, %v772
  %v975 = vpack.c.b16 %v775, %v774
  %v976 = vpack.c.b16 %v777, %v776
  %v977 = vpack.c.b16 %v779, %v778
  %v978 = vpack.c.b16 %v781, %v780
  %v979 = vpack.c.b16 %v783, %v782
  %v980 = vpack.c.b16 %v785, %v784
  %v981 = vpack.c.b16 %v787, %v786
  %v982 = vpack.c.b16 %v789, %v788
  %v983 = vpack.c.b16 %v791, %v790
  %v984 = vpack.c.b16 %v793, %v792
  %v985 = vpack.c.b16 %v795, %v794
  %v986 = vpack.c.b16 %v797, %v796
  %v987 = vpack.c.b16 %v799, %v798
  %v988 = vpack.c.b16 %v801, %v800
  %v989 = vpack.c.b16 %v803, %v802
  %v990 = vpack.c.b16 %v805, %v804
  %v991 = vpack.c.b16 %v807, %v806
  %v992 = vpack.c.b16 %v809, %v808
  %v993 = vpack.c.b16 %v811, %v810
  %v994 = vpack.c.b16 %v813, %v812
  %v995 = vpack.c.b16 %v815, %v814
  %v996 = vpack.c.b16 %v817, %v816
  %v997 = vpack.c.b16 %v819, %v818
  %v998 = vpack.c.b16 %v821, %v820
  %v999 = vpack.c.b16 %v823, %v822
  %v1000 = vpack.c.b16 %v825, %v824
  %v1001 = vpack.c.b16 %v827, %v826
  %v1002 = vpack.c.b16 %v829, %v828
  %v1003 = vpack.c.b16 %v831, %v830
  %v1004 = vpack.c.b16 %v833, %v832
  %v1005 = vpack.c.b16 %v835, %v834
  %v1006 = vpack.c.b16 %v837, %v836
  %v1007 = vpack.c.b16 %v839, %v838
  %v1008 = vpack.c.b16 %v841, %v840
  %v1009 = vpack.c.b16 %v843, %v842
  %v1010 = vpack.c.b16 %v845, %v844
  %v1011 = vpack.c.b16 %v847, %v846
  %v1012 = vpack.c.b16 %v849, %v848
  %v1013 = vpack.c.b16 %v851, %v850
  %v1014 = vpack.c.b16 %v853, %v852
  %v1015 = vpack.c.b16 %v855, %v854
  %v1016 = vpack.c.b16 %v857, %v856
  %v1017 = vpack.c.b16 %v859, %v858
  %v1018 = vpack.c.b16 %v861, %v860
  %v1019 = vpack.c.b16 %v863, %v862
  %v1020 = vpack.c.b16 %v865, %v864
  %v1021 = vpack.c.b16 %v867, %v866
  %v1022 = vpack.c.b16 %v869, %v868
  %v1023 = vpack.c.b16 %v871, %v870
  %v1024 = vpack.c.b16 %v873, %v872
  %v1025 = vpack.c.b16 %v875, %v874
  %v1026 = vpack.c.b16 %v877, %v876
  %v1027 = vpack.c.b16 %v879, %v878
  %v1028 = vpack.c.b16 %v881, %v880
  %v1029 = vpack.c.b16 %v883, %v882
  %v1030 = vpack.c.b16 %v885, %v884
  %v1031 = vpack.c.b16 %v887, %v886
  %v1032 = vpack.c.b16 %v889, %v888
  %v1033 = vpack.c.b16 %v891, %v890
  %v1034 = vpack.c.b16 %v893, %v892
  %v1035 = vpack.c.b16 %v895, %v894
  %v1036 = vpack.c.b16 %v897, %v896
  %v1037 = vpack.c.b16 %v899, %v898
  %v1038 = vpack.c.b16 %v901, %v900
  %v1039 = vpack.c.b16 %v903, %v902
  %v1040 = vpack.c.b16 %v905, %v904
  %vm1176 = vcmask 916480
  %v1178 = vsel %vm1176, %v349, 0
  %1180 = vmatprep.subr.bf16.mxu0 0
  %1181 = vmatpush1.bf16.msra.mxu0 %v906
  %1182 = vmatprep.subr.bf16.mxu0 0
  %1183 = vmatpush1.bf16.msra.mxu0 %v907
  %1184 = vmatprep.subr.bf16.mxu0 0
  %1185 = vmatpush1.bf16.msra.mxu0 %v908
  %1186 = vmatprep.subr.bf16.mxu0 0
  %1187 = vmatpush1.bf16.msra.mxu0 %v909
  %1188 = vmatprep.subr.bf16.mxu0 0
  %1189 = vmatpush1.bf16.msra.mxu0 %v910
  %1190 = vmatprep.subr.bf16.mxu0 0
  %1191 = vmatpush1.bf16.msra.mxu0 %v911
  %1192 = vmatprep.subr.bf16.mxu0 0
  %1193 = vmatpush1.bf16.msra.mxu0 %v912
  %1194 = vmatprep.subr.bf16.mxu0 0
  %1195 = vmatpush1.bf16.msra.mxu0 %v913
  %1196 = vmatprep.subr.bf16.mxu0 0
  %1197 = vmatpush1.bf16.msra.mxu0 %v914
  %1198 = vmatprep.subr.bf16.mxu0 0
  %1199 = vmatpush1.bf16.msra.mxu0 %v915
  %1200 = vmatprep.subr.bf16.mxu0 0
  %1201 = vmatpush1.bf16.msra.mxu0 %v916
  %1202 = vmatprep.subr.bf16.mxu0 0
  %1203 = vmatpush1.bf16.msra.mxu0 %v917
  %1204 = vmatprep.subr.bf16.mxu0 0
  %1205 = vmatpush1.bf16.msra.mxu0 %v918
  %1206 = vmatprep.subr.bf16.mxu0 0
  %1207 = vmatpush1.bf16.msra.mxu0 %v919
  %1208 = vmatprep.subr.bf16.mxu0 0
  %1209 = vmatpush1.bf16.msra.mxu0 %v920
  %1210 = vmatprep.subr.bf16.mxu0 0
  %1211 = vmatpush1.bf16.msra.mxu0 %v921
  %1212 = vmatprep.mubr.bf16.mxu0 %v334
  %1213 = vmatmul.mubr.bf16.gmra.mrb[0].mxu0 %v333
  %v1214 = vpop.f32.mrb[0].mxu0
  %v1215 = vadd.f32 %v305, %v1214
  %v1216 = vpop.f32.mrb[0].mxu0
  %v1217 = vpop.f32.mrb[0].mxu0
  %v1218 = vpop.f32.mrb[0].mxu0
  %1219 = vdwg.mxu0
  %1220 = vmatprep.subr.bf16.mxu0 0
  %1221 = vmatpush1.bf16.msra.mxu0 %v922
  %1222 = vmatprep.subr.bf16.mxu0 0
  %1223 = vmatpush1.bf16.msra.mxu0 %v923
  %1224 = vmatprep.subr.bf16.mxu0 0
  %1225 = vmatpush1.bf16.msra.mxu0 %v924
  %1226 = vmatprep.subr.bf16.mxu0 0
  %1227 = vmatpush1.bf16.msra.mxu0 %v925
  %1228 = vmatprep.subr.bf16.mxu0 0
  %1229 = vmatpush1.bf16.msra.mxu0 %v926
  %1230 = vmatprep.subr.bf16.mxu0 0
  %1231 = vmatpush1.bf16.msra.mxu0 %v927
  %1232 = vmatprep.subr.bf16.mxu0 0
  %1233 = vmatpush1.bf16.msra.mxu0 %v928
  %1234 = vmatprep.subr.bf16.mxu0 0
  %1235 = vmatpush1.bf16.msra.mxu0 %v929
  %1236 = vmatprep.subr.bf16.mxu0 0
  %1237 = vmatpush1.bf16.msra.mxu0 %v930
  %1238 = vmatprep.subr.bf16.mxu0 0
  %1239 = vmatpush1.bf16.msra.mxu0 %v931
  %1240 = vmatprep.subr.bf16.mxu0 0
  %1241 = vmatpush1.bf16.msra.mxu0 %v932
  %1242 = vmatprep.subr.bf16.mxu0 0
  %1243 = vmatpush1.bf16.msra.mxu0 %v933
  %1244 = vmatprep.subr.bf16.mxu0 0
  %1245 = vmatpush1.bf16.msra.mxu0 %v934
  %1246 = vmatprep.subr.bf16.mxu0 0
  %1247 = vmatpush1.bf16.msra.mxu0 %v935
  %1248 = vmatprep.subr.bf16.mxu0 0
  %1249 = vmatpush1.bf16.msra.mxu0 %v936
  %1250 = vmatprep.subr.bf16.mxu0 0
  %1251 = vmatpush1.bf16.msra.mxu0 %v937
  %1252 = vmatprep.mubr.bf16.mxu0 %v336
  %1253 = vmatmul.mubr.bf16.gmra.mrb[0].mxu0 %v335
  %v1254 = vpop.f32.mrb[0].mxu0
  %v1255 = vadd.f32 %v1215, %v1254
  %v1256 = vpop.f32.mrb[0].mxu0
  %v1257 = vpop.f32.mrb[0].mxu0
  %v1258 = vpop.f32.mrb[0].mxu0
  %1259 = vdwg.mxu0
  %1260 = vmatprep.subr.bf16.mxu0 0
  %1261 = vmatpush1.bf16.msra.mxu0 %v938
  %1262 = vmatprep.subr.bf16.mxu0 0
  %1263 = vmatpush1.bf16.msra.mxu0 %v939
  %1264 = vmatprep.subr.bf16.mxu0 0
  %1265 = vmatpush1.bf16.msra.mxu0 %v940
  %1266 = vmatprep.subr.bf16.mxu0 0
  %1267 = vmatpush1.bf16.msra.mxu0 %v941
  %1268 = vmatprep.subr.bf16.mxu0 0
  %1269 = vmatpush1.bf16.msra.mxu0 %v942
  %1270 = vmatprep.subr.bf16.mxu0 0
  %1271 = vmatpush1.bf16.msra.mxu0 %v943
  %1272 = vmatprep.subr.bf16.mxu0 0
  %1273 = vmatpush1.bf16.msra.mxu0 %v944
  %1274 = vmatprep.subr.bf16.mxu0 0
  %1275 = vmatpush1.bf16.msra.mxu0 %v945
  %1276 = vmatprep.subr.bf16.mxu0 0
  %1277 = vmatpush1.bf16.msra.mxu0 %v946
  %1278 = vmatprep.subr.bf16.mxu0 0
  %1279 = vmatpush1.bf16.msra.mxu0 %v947
  %1280 = vmatprep.subr.bf16.mxu0 0
  %1281 = vmatpush1.bf16.msra.mxu0 %v948
  %1282 = vmatprep.subr.bf16.mxu0 0
  %1283 = vmatpush1.bf16.msra.mxu0 %v949
  %1284 = vmatprep.subr.bf16.mxu0 0
  %1285 = vmatpush1.bf16.msra.mxu0 %v950
  %1286 = vmatprep.subr.bf16.mxu0 0
  %1287 = vmatpush1.bf16.msra.mxu0 %v951
  %1288 = vmatprep.subr.bf16.mxu0 0
  %1289 = vmatpush1.bf16.msra.mxu0 %v952
  %1290 = vmatprep.subr.bf16.mxu0 0
  %1291 = vmatpush1.bf16.msra.mxu0 %v953
  %1292 = vmatprep.mubr.bf16.mxu0 %v338
  %1293 = vmatmul.mubr.bf16.gmra.mrb[0].mxu0 %v337
  %v1294 = vpop.f32.mrb[0].mxu0
  %v1295 = vadd.f32 %v1255, %v1294
  %v1296 = vpop.f32.mrb[0].mxu0
  %v1297 = vpop.f32.mrb[0].mxu0
  %v1298 = vpop.f32.mrb[0].mxu0
  %1299 = vdwg.mxu0
  %1300 = vmatprep.subr.bf16.mxu0 0
  %1301 = vmatpush1.bf16.msra.mxu0 %v954
  %1302 = vmatprep.subr.bf16.mxu0 0
  %1303 = vmatpush1.bf16.msra.mxu0 %v955
  %1304 = vmatprep.subr.bf16.mxu0 0
  %1305 = vmatpush1.bf16.msra.mxu0 %v956
  %1306 = vmatprep.subr.bf16.mxu0 0
  %1307 = vmatpush1.bf16.msra.mxu0 %v957
  %1308 = vmatprep.subr.bf16.mxu0 0
  %1309 = vmatpush1.bf16.msra.mxu0 %v958
  %1310 = vmatprep.subr.bf16.mxu0 0
  %1311 = vmatpush1.bf16.msra.mxu0 %v959
  %1312 = vmatprep.subr.bf16.mxu0 0
  %1313 = vmatpush1.bf16.msra.mxu0 %v960
  %1314 = vmatprep.subr.bf16.mxu0 0
  %1315 = vmatpush1.bf16.msra.mxu0 %v961
  %1316 = vmatprep.subr.bf16.mxu0 0
  %1317 = vmatpush1.bf16.msra.mxu0 %v962
  %1318 = vmatprep.subr.bf16.mxu0 0
  %1319 = vmatpush1.bf16.msra.mxu0 %v963
  %1320 = vmatprep.subr.bf16.mxu0 0
  %1321 = vmatpush1.bf16.msra.mxu0 %v964
  %1322 = vmatprep.subr.bf16.mxu0 0
  %1323 = vmatpush1.bf16.msra.mxu0 %v965
  %1324 = vmatprep.subr.bf16.mxu0 0
  %1325 = vmatpush1.bf16.msra.mxu0 %v966
  %1326 = vmatprep.subr.bf16.mxu0 0
  %1327 = vmatpush1.bf16.msra.mxu0 %v967
  %1328 = vmatprep.subr.bf16.mxu0 0
  %1329 = vmatpush1.bf16.msra.mxu0 %v968
  %1330 = vmatprep.subr.bf16.mxu0 0
  %1331 = vmatpush1.bf16.msra.mxu0 %v969
  %1332 = vmatprep.mubr.bf16.mxu0 %v340
  %1333 = vmatmul.mubr.bf16.gmra.mrb[0].mxu0 %v339
  %v1334 = vpop.f32.mrb[0].mxu0
  %v1335 = vadd.f32 %v1295, %v1334
  %v1336 = vpop.f32.mrb[0].mxu0
  %v1337 = vpop.f32.mrb[0].mxu0
  %v1338 = vpop.f32.mrb[0].mxu0
  %1339 = vdwg.mxu0
  %1340 = vmatprep.subr.bf16.mxu0 0
  %1341 = vmatpush1.bf16.msra.mxu0 %v970
  %1342 = vmatprep.subr.bf16.mxu0 0
  %1343 = vmatpush1.bf16.msra.mxu0 %v971
  %1344 = vmatprep.subr.bf16.mxu0 0
  %1345 = vmatpush1.bf16.msra.mxu0 %v972
  %1346 = vmatprep.subr.bf16.mxu0 0
  %1347 = vmatpush1.bf16.msra.mxu0 %v973
  %1348 = vmatprep.subr.bf16.mxu0 0
  %1349 = vmatpush1.bf16.msra.mxu0 %v974
  %1350 = vmatprep.subr.bf16.mxu0 0
  %1351 = vmatpush1.bf16.msra.mxu0 %v975
  %1352 = vmatprep.subr.bf16.mxu0 0
  %1353 = vmatpush1.bf16.msra.mxu0 %v976
  %1354 = vmatprep.subr.bf16.mxu0 0
  %1355 = vmatpush1.bf16.msra.mxu0 %v977
  %1356 = vmatprep.subr.bf16.mxu0 0
  %1357 = vmatpush1.bf16.msra.mxu0 %v978
  %1358 = vmatprep.subr.bf16.mxu0 0
  %1359 = vmatpush1.bf16.msra.mxu0 %v979
  %1360 = vmatprep.subr.bf16.mxu0 0
  %1361 = vmatpush1.bf16.msra.mxu0 %v980
  %1362 = vmatprep.subr.bf16.mxu0 0
  %1363 = vmatpush1.bf16.msra.mxu0 %v981
  %1364 = vmatprep.subr.bf16.mxu0 0
  %1365 = vmatpush1.bf16.msra.mxu0 %v982
  %1366 = vmatprep.subr.bf16.mxu0 0
  %1367 = vmatpush1.bf16.msra.mxu0 %v983
  %1368 = vmatprep.subr.bf16.mxu0 0
  %1369 = vmatpush1.bf16.msra.mxu0 %v984
  %1370 = vmatprep.subr.bf16.mxu0 0
  %1371 = vmatpush1.bf16.msra.mxu0 %v985
  %1372 = vmatprep.mubr.bf16.mxu0 %v342
  %1373 = vmatmul.mubr.bf16.gmra.mrb[0].mxu0 %v341
  %v1374 = vpop.f32.mrb[0].mxu0
  %v1375 = vadd.f32 %v1335, %v1374
  %v1376 = vpop.f32.mrb[0].mxu0
  %v1377 = vpop.f32.mrb[0].mxu0
  %v1378 = vpop.f32.mrb[0].mxu0
  %1379 = vdwg.mxu0
  %1380 = vmatprep.subr.bf16.mxu0 0
  %1381 = vmatpush1.bf16.msra.mxu0 %v986
  %1382 = vmatprep.subr.bf16.mxu0 0
  %1383 = vmatpush1.bf16.msra.mxu0 %v987
  %1384 = vmatprep.subr.bf16.mxu0 0
  %1385 = vmatpush1.bf16.msra.mxu0 %v988
  %1386 = vmatprep.subr.bf16.mxu0 0
  %1387 = vmatpush1.bf16.msra.mxu0 %v989
  %1388 = vmatprep.subr.bf16.mxu0 0
  %1389 = vmatpush1.bf16.msra.mxu0 %v990
  %1390 = vmatprep.subr.bf16.mxu0 0
  %1391 = vmatpush1.bf16.msra.mxu0 %v991
  %1392 = vmatprep.subr.bf16.mxu0 0
  %1393 = vmatpush1.bf16.msra.mxu0 %v992
  %1394 = vmatprep.subr.bf16.mxu0 0
  %1395 = vmatpush1.bf16.msra.mxu0 %v993
  %1396 = vmatprep.subr.bf16.mxu0 0
  %1397 = vmatpush1.bf16.msra.mxu0 %v994
  %1398 = vmatprep.subr.bf16.mxu0 0
  %1399 = vmatpush1.bf16.msra.mxu0 %v995
  %1400 = vmatprep.subr.bf16.mxu0 0
  %1401 = vmatpush1.bf16.msra.mxu0 %v996
  %1402 = vmatprep.subr.bf16.mxu0 0
  %1403 = vmatpush1.bf16.msra.mxu0 %v997
  %1404 = vmatprep.subr.bf16.mxu0 0
  %1405 = vmatpush1.bf16.msra.mxu0 %v998
  %1406 = vmatprep.subr.bf16.mxu0 0
  %1407 = vmatpush1.bf16.msra.mxu0 %v999
  %1408 = vmatprep.subr.bf16.mxu0 0
  %1409 = vmatpush1.bf16.msra.mxu0 %v1000
  %1410 = vmatprep.subr.bf16.mxu0 0
  %1411 = vmatpush1.bf16.msra.mxu0 %v1001
  %1412 = vmatprep.mubr.bf16.mxu0 %v344
  %1413 = vmatmul.mubr.bf16.gmra.mrb[0].mxu0 %v343
  %v1414 = vpop.f32.mrb[0].mxu0
  %v1415 = vadd.f32 %v1375, %v1414
  %v1416 = vpop.f32.mrb[0].mxu0
  %v1417 = vpop.f32.mrb[0].mxu0
  %v1418 = vpop.f32.mrb[0].mxu0
  %1419 = vdwg.mxu0
  %1420 = vmatprep.subr.bf16.mxu0 0
  %1421 = vmatpush1.bf16.msra.mxu0 %v1002
  %1422 = vmatprep.subr.bf16.mxu0 0
  %1423 = vmatpush1.bf16.msra.mxu0 %v1003
  %1424 = vmatprep.subr.bf16.mxu0 0
  %1425 = vmatpush1.bf16.msra.mxu0 %v1004
  %1426 = vmatprep.subr.bf16.mxu0 0
  %1427 = vmatpush1.bf16.msra.mxu0 %v1005
  %1428 = vmatprep.subr.bf16.mxu0 0
  %1429 = vmatpush1.bf16.msra.mxu0 %v1006
  %1430 = vmatprep.subr.bf16.mxu0 0
  %1431 = vmatpush1.bf16.msra.mxu0 %v1007
  %1432 = vmatprep.subr.bf16.mxu0 0
  %1433 = vmatpush1.bf16.msra.mxu0 %v1008
  %1434 = vmatprep.subr.bf16.mxu0 0
  %1435 = vmatpush1.bf16.msra.mxu0 %v1009
  %1436 = vmatprep.subr.bf16.mxu0 0
  %1437 = vmatpush1.bf16.msra.mxu0 %v1010
  %1438 = vmatprep.subr.bf16.mxu0 0
  %1439 = vmatpush1.bf16.msra.mxu0 %v1011
  %1440 = vmatprep.subr.bf16.mxu0 0
  %1441 = vmatpush1.bf16.msra.mxu0 %v1012
  %1442 = vmatprep.subr.bf16.mxu0 0
  %1443 = vmatpush1.bf16.msra.mxu0 %v1013
  %1444 = vmatprep.subr.bf16.mxu0 0
  %1445 = vmatpush1.bf16.msra.mxu0 %v1014
  %1446 = vmatprep.subr.bf16.mxu0 0
  %1447 = vmatpush1.bf16.msra.mxu0 %v1015
  %1448 = vmatprep.subr.bf16.mxu0 0
  %1449 = vmatpush1.bf16.msra.mxu0 %v1016
  %1450 = vmatprep.subr.bf16.mxu0 0
  %1451 = vmatpush1.bf16.msra.mxu0 %v1017
  %1452 = vmatprep.mubr.bf16.mxu0 %v346
  %1453 = vmatmul.mubr.bf16.gmra.mrb[0].mxu0 %v345
  %v1454 = vpop.f32.mrb[0].mxu0
  %v1455 = vadd.f32 %v1415, %v1454
  %v1456 = vpop.f32.mrb[0].mxu0
  %v1457 = vpop.f32.mrb[0].mxu0
  %v1458 = vpop.f32.mrb[0].mxu0
  %1459 = vdwg.mxu0
  %1460 = vmatprep.subr.bf16.mxu0 0
  %1461 = vmatpush1.bf16.msra.mxu0 %v1018
  %1462 = vmatprep.subr.bf16.mxu0 0
  %1463 = vmatpush1.bf16.msra.mxu0 %v1019
  %1464 = vmatprep.subr.bf16.mxu0 0
  %1465 = vmatpush1.bf16.msra.mxu0 %v1020
  %1466 = vmatprep.subr.bf16.mxu0 0
  %1467 = vmatpush1.bf16.msra.mxu0 %v1021
  %1468 = vmatprep.subr.bf16.mxu0 0
  %1469 = vmatpush1.bf16.msra.mxu0 %v1022
  %1470 = vmatprep.subr.bf16.mxu0 0
  %1471 = vmatpush1.bf16.msra.mxu0 %v1023
  %1472 = vmatprep.subr.bf16.mxu0 0
  %1473 = vmatpush1.bf16.msra.mxu0 %v1024
  %1474 = vmatprep.subr.bf16.mxu0 0
  %1475 = vmatpush1.bf16.msra.mxu0 %v1025
  %1476 = vmatprep.subr.bf16.mxu0 0
  %1477 = vmatpush1.bf16.msra.mxu0 %v1026
  %1478 = vmatprep.subr.bf16.mxu0 0
  %1479 = vmatpush1.bf16.msra.mxu0 %v1027
  %1480 = vmatprep.subr.bf16.mxu0 0
  %1481 = vmatpush1.bf16.msra.mxu0 %v1028
  %1482 = vmatprep.subr.bf16.mxu0 0
  %1483 = vmatpush1.bf16.msra.mxu0 %v1029
  %1484 = vmatprep.subr.bf16.mxu0 0
  %1485 = vmatpush1.bf16.msra.mxu0 %v1030
  %1486 = vmatprep.subr.bf16.mxu0 0
  %1487 = vmatpush1.bf16.msra.mxu0 %v1031
  %1488 = vmatprep.subr.bf16.mxu0 0
  %1489 = vmatpush1.bf16.msra.mxu0 %v1032
  %1490 = vmatprep.subr.bf16.mxu0 0
  %1491 = vmatpush1.bf16.msra.mxu0 %v1033
  %1492 = vmatprep.mubr.bf16.mxu0 %v348
  %1493 = vmatmul.mubr.bf16.gmra.mrb[0].mxu0 %v347
  %v1494 = vpop.f32.mrb[0].mxu0
  %v1495 = vadd.f32 %v1455, %v1494
  %v1496 = vpop.f32.mrb[0].mxu0
  %v1497 = vpop.f32.mrb[0].mxu0
  %v1498 = vpop.f32.mrb[0].mxu0
  %1499 = vdwg.mxu0
  %1500 = vmatprep.subr.bf16.mxu0 0
  %1501 = vmatpush1.bf16.msra.mxu0 %v1034
  %1502 = vmatprep.subr.bf16.mxu0 0
  %1503 = vmatpush1.bf16.msra.mxu0 %v1035
  %1504 = vmatprep.subr.bf16.mxu0 0
  %1505 = vmatpush1.bf16.msra.mxu0 %v1036
  %1506 = vmatprep.subr.bf16.mxu0 0
  %1507 = vmatpush1.bf16.msra.mxu0 %v1037
  %1508 = vmatprep.subr.bf16.mxu0 0
  %1509 = vmatpush1.bf16.msra.mxu0 %v1038
  %1510 = vmatprep.subr.bf16.mxu0 0
  %1511 = vmatpush1.bf16.msra.mxu0 %v1039
  %1512 = vmatprep.subr.bf16.mxu0 0
  %1513 = vmatpush1.bf16.msra.mxu0 %v1040
  %1514 = vmatprep.subr.bf16.mxu0 0
  %1515 = vmatpush1.bf16.msra.mxu0 0
  %1516 = vmatprep.subr.bf16.mxu0 0
  %1517 = vmatpush1.bf16.msra.mxu0 0
  %1518 = vmatprep.subr.bf16.mxu0 0
  %1519 = vmatpush1.bf16.msra.mxu0 0
  %1520 = vmatprep.subr.bf16.mxu0 0
  %1521 = vmatpush1.bf16.msra.mxu0 0
  %1522 = vmatprep.subr.bf16.mxu0 0
  %1523 = vmatpush1.bf16.msra.mxu0 0
  %1524 = vmatprep.subr.bf16.mxu0 0
  %1525 = vmatpush1.bf16.msra.mxu0 0
  %1526 = vmatprep.subr.bf16.mxu0 0
  %1527 = vmatpush1.bf16.msra.mxu0 0
  %1528 = vmatprep.subr.bf16.mxu0 0
  %1529 = vmatpush1.bf16.msra.mxu0 0
  %1530 = vmatprep.subr.bf16.mxu0 0
  %1531 = vmatpush1.bf16.msra.mxu0 0
  %1532 = vmatprep.mubr.bf16.mxu0 0
  %1533 = vmatmul.mubr.bf16.gmra.mrb[0].mxu0 %v1178
  %v1534 = vpop.f32.mrb[0].mxu0
  %v1535 = vadd.f32 %v1495, %v1534
  %v1536 = vpop.f32.mrb[0].mxu0
  %v1537 = vpop.f32.mrb[0].mxu0
  %v1538 = vpop.f32.mrb[0].mxu0
  %1539 = vdwg.mxu0
  %v1540 = vmax.f32 %v1535, 0.0
  %v1541 = vld [vmem:[%s3] sm:$0xff]
  %v1542 = vld [vmem:[%s3 + $0x8] sm:$0xff]
  %v1543 = vld [vmem:[%s3 + $0x10] sm:$0xff]
  %v1544 = vld [vmem:[%s3 + $0x18] sm:$0xff]
  %v1545 = vld [vmem:[%s3 + $0x20] sm:$0xff]
  %v1546 = vld [vmem:[%s3 + $0x28] sm:$0xff]
  %v1547 = vld [vmem:[%s3 + $0x30] sm:$0xff]
  %v1548 = vld [vmem:[%s3 + $0x38] sm:$0xff]
  %v1549 = vld [vmem:[%s3 + $0x40] sm:$0xff]
  %v1550 = vld [vmem:[%s3 + $0x48] sm:$0xff]
  %v1551 = vld [vmem:[%s3 + $0x50] sm:$0xff]
  %v1552 = vld [vmem:[%s3 + $0x58] sm:$0xff]
  %v1553 = vld [vmem:[%s3 + $0x60] sm:$0xff]
  %v1554 = vld [vmem:[%s3 + $0x68] sm:$0xff]
  %v1555 = vld [vmem:[%s3 + $0x70] sm:$0xff]
  %v1556 = vld [vmem:[%s3 + $0x78] sm:$0xff]
  %v1557 = vld [vmem:[%s4] sm:$0x1]
  %v1559 = vlaneseq
  %v1560 = vshrl.u32 %v1559, 7
  %v1561 = vsub.s32 0, %v1560
  %v1562 = vrot.slane %v1557, %v1561
  %1564 = vmatprep.subr.mxu0 0.0
  %1565 = vmatpush1.msra.mxu0 %v1541
  %1566 = vmatprep.subr.mxu0 0.0
  %1567 = vmatpush1.msra.mxu0 %v1542
  %1568 = vmatprep.subr.mxu0 0.0
  %1569 = vmatpush1.msra.mxu0 %v1543
  %1570 = vmatprep.subr.mxu0 0.0
  %1571 = vmatpush1.msra.mxu0 %v1544
  %1572 = vmatprep.subr.mxu0 0.0
  %1573 = vmatpush1.msra.mxu0 %v1545
  %1574 = vmatprep.subr.mxu0 0.0
  %1575 = vmatpush1.msra.mxu0 %v1546
  %1576 = vmatprep.subr.mxu0 0.0
  %1577 = vmatpush1.msra.mxu0 %v1547
  %1578 = vmatprep.subr.mxu0 0.0
  %1579 = vmatpush1.msra.mxu0 %v1548
  %1580 = vmatprep.subr.mxu0 0.0
  %1581 = vmatpush1.msra.mxu0 %v1549
  %1582 = vmatprep.subr.mxu0 0.0
  %1583 = vmatpush1.msra.mxu0 %v1550
  %1584 = vmatprep.subr.mxu0 0.0
  %1585 = vmatpush1.msra.mxu0 %v1551
  %1586 = vmatprep.subr.mxu0 0.0
  %1587 = vmatpush1.msra.mxu0 %v1552
  %1588 = vmatprep.subr.mxu0 0.0
  %1589 = vmatpush1.msra.mxu0 %v1553
  %1590 = vmatprep.subr.mxu0 0.0
  %1591 = vmatpush1.msra.mxu0 %v1554
  %1592 = vmatprep.subr.mxu0 0.0
  %1593 = vmatpush1.msra.mxu0 %v1555
  %1594 = vmatprep.subr.mxu0 0.0
  %1595 = vmatpush1.msra.mxu0 %v1556
  %1596 = vmatprep.subr.mxu0 0.0
  %1597 = vmatpush1.msra.mxu0 0.0
  %1598 = vmatprep.subr.mxu0 0.0
  %1599 = vmatpush1.msra.mxu0 0.0
  %1600 = vmatprep.subr.mxu0 0.0
  %1601 = vmatpush1.msra.mxu0 0.0
  %1602 = vmatprep.subr.mxu0 0.0
  %1603 = vmatpush1.msra.mxu0 0.0
  %1604 = vmatprep.subr.mxu0 0.0
  %1605 = vmatpush1.msra.mxu0 0.0
  %1606 = vmatprep.subr.mxu0 0.0
  %1607 = vmatpush1.msra.mxu0 0.0
  %1608 = vmatprep.subr.mxu0 0.0
  %1609 = vmatpush1.msra.mxu0 0.0
  %1610 = vmatprep.subr.mxu0 0.0
  %1611 = vmatpush1.msra.mxu0 0.0
  %1612 = vmatprep.subr.mxu0 0.0
  %1613 = vmatpush1.msra.mxu0 0.0
  %1614 = vmatprep.subr.mxu0 0.0
  %1615 = vmatpush1.msra.mxu0 0.0
  %1616 = vmatprep.subr.mxu0 0.0
  %1617 = vmatpush1.msra.mxu0 0.0
  %1618 = vmatprep.subr.mxu0 0.0
  %1619 = vmatpush1.msra.mxu0 0.0
  %1620 = vmatprep.subr.mxu0 0.0
  %1621 = vmatpush1.msra.mxu0 0.0
  %1622 = vmatprep.subr.mxu0 0.0
  %1623 = vmatpush1.msra.mxu0 0.0
  %1624 = vmatprep.subr.mxu0 0.0
  %1625 = vmatpush1.msra.mxu0 0.0
  %1626 = vmatprep.subr.mxu0 0.0
  %1627 = vmatpush1.msra.mxu0 0.0
  %1628 = vmatprep.mubr.f32.mxu0 0.0
  %1629 = vmatmul.mubr.f32.gmra.mrb[0].mxu0 %v1540
  %v1630 = vpop.f32.mrb[0].mxu0
  %v1631 = vadd.f32 %v1562, %v1630
  %v1632 = vpop.f32.mrb[0].mxu0
  %1633 = vdwg.mxu0
  %vm1634 = vcmask 15360
  %v1635 = vsel %vm1634, %v1631, -inf
  %1636 = vmax.xlane.f32.xlu0 %v1635
  %v1637 = vpop.xlane.xlu0 %1636
  %v1638 = vsub.f32 %v1631, %v1637
  %v1639 = vmul.f32 %v1638, 1.442695
  %v1640 = vpow.pop %v1639
  %v1641 = vsel %vm1634, %v1640, 0.0
  %1642 = vadd.xlane.f32.xlu0 %v1641
  %v1643 = vpop.xlane.xlu0 %1642
  %v1644 = vlog2.pop %v1643
  %v1645 = vmul.f32 %v1644, 0.6931472
  %v1646 = vadd.f32 %v1637, %v1645
  %v1647 = vsub.f32 %v1631, %v1646
  %1648 = vst.msk [vmem:[%s5] sm:$0xff] %vm1634, %v1647
  // Predicated region
  $region22: #{net_forward.7} parent=0 // pred_check
    _
  $region23: #{net_forward.7} parent=0 // pred_check_branch
    %1650 = sbr.rel (0) target = $region25
  $region24: #{net_forward.7} parent=0 // pred_region
    _
  $region25: #{net_forward.7} parent=0 // pred_fallthru
    _
  // Predicated region
  $region26: #{net_forward.7} parent=0 // pred_check
    _
  $region27: #{net_forward.7} parent=0 // pred_check_branch
    %1652 = sbr.rel (0) target = $region29
  $region28: #{net_forward.7} parent=0 // pred_region
    _
  $region29: #{net_forward.7} parent=0 // pred_fallthru
    _

</llo_original>
